<compile_context>
chip_gen: v5e
topology: v5e:2x2
jax: 0.10.0
libtpu: 0.0.40
codegen_flags: <defaults>
</compile_context>

<pallas_src>
import functools

import jax
import jax.numpy as jnp
from jax.experimental import pallas as pl
from jax.experimental.pallas import tpu as pltpu


def _dwconv_module_kernel(x_cur, x_left, x_right, gamma, beta, w_dw, b_dw,
                          w_pw, b_pw, o_ref, xbuf_ref, h_ref, *,
                          K, pad, HB, TL, CHUNK, dim, expansion, L_real,
                          lrelu_slope, eps, unroll):
    i = pl.program_id(1)
    n_ck = TL // CHUNK
    cdt = xbuf_ref.dtype              # depthwise / activation compute dtype
    mdt = h_ref.dtype                 # MXU operand dtype

    g = gamma[...]                    # (1, dim) f32
    b = beta[...]                     # (1, dim) f32

    def layer_norm(v):                # per-row LN, statistics in f32
        v = v.astype(jnp.float32)
        mean = jnp.mean(v, axis=-1, keepdims=True)
        var = jnp.mean(jnp.square(v - mean), axis=-1, keepdims=True)
        return (v - mean) * jax.lax.rsqrt(var + eps) * g + b

    # ---- LayerNorm fused with halo-window assembly ---------------------------
    # xbuf row r  <->  global sequence index  i*TL - HB + r
    def assemble(apply_mask):
        def ln_store(raw, row_off, rows):
            v = layer_norm(raw)
            if apply_mask:
                # Zero rows outside [0, L): reproduces Conv1d zero padding
                # applied after LayerNorm, and hides stale data of partial /
                # clamped blocks (select -> stale NaN/Inf cannot leak through).
                ridx = jax.lax.broadcasted_iota(jnp.int32, (rows, 1), 0)
                gidx = i * TL - HB + row_off + ridx
                valid = jnp.logical_and(gidx >= 0, gidx < L_real)
                v = jnp.where(valid, v, 0.0)
            xbuf_ref[pl.ds(row_off, rows), :] = v.astype(cdt)

        ln_store(x_left[0], 0, HB)

        def body(c, carry):
            off = pl.multiple_of(c * CHUNK, CHUNK)
            ln_store(x_cur[0, pl.ds(off, CHUNK), :], HB + off, CHUNK)
            return carry
        jax.lax.fori_loop(0, n_ck, body, None, unroll=unroll)

        ln_store(x_right[0], HB + TL, HB)

    # Only boundary tiles can touch rows outside [0, L); interior tiles skip
    # the mask (it is pure VPU overhead for them).
    needs_mask = jnp.logical_or(i == 0, (i + 1) * TL + HB > L_real)

    @pl.when(needs_mask)
    def _():
        assemble(True)

    @pl.when(jnp.logical_not(needs_mask))
    def _():
        assemble(False)

    # ---- depthwise conv + LeakyReLU + pointwise conv, chunked ----------------
    # Small per-channel params hoisted out of the chunk loop.
    wdw_rows = [w_dw[pl.ds(r, 1), :] for r in range(K * expansion)]   # (1,dim)
    bdw_rows = [b_dw[pl.ds(e, 1), :] for e in range(expansion)]       # (1,dim)
    bpw = b_pw[...]                                                   # (1,dim) f32
    fused_pw = (dim % 128 == 0)       # lane-aligned: single deep MXU matmul

    def depthwise(off, e):
        h = jnp.zeros((CHUNK, dim), cdt) + bdw_rows[e]
        for k in range(K):
            # shifted windows re-read from VMEM (vld slots are idle here)
            win = xbuf_ref[pl.ds(off + (HB - pad) + k, CHUNK), :]
            h = h + win * wdw_rows[k * expansion + e]
        return jnp.where(h >= 0, h, h * lrelu_slope)                  # LeakyReLU

    def conv_body(c, carry):
        off = pl.multiple_of(c * CHUNK, CHUNK)
        if fused_pw:
            # pack groups on lanes -> one (CHUNK, E*dim) @ (E*dim, dim) matmul
            for e in range(expansion):
                h_ref[:, pl.ds(e * dim, dim)] = depthwise(off, e).astype(mdt)
            acc = jnp.dot(h_ref[...], w_pw[...],
                          preferred_element_type=jnp.float32)
        else:
            # lane-unaligned dim: fall back to `expansion` shallow matmuls
            acc = jnp.zeros((CHUNK, dim), jnp.float32)
            for e in range(expansion):
                acc = acc + jnp.dot(depthwise(off, e).astype(mdt),
                                    w_pw[pl.ds(e * dim, dim), :],
                                    preferred_element_type=jnp.float32)
        o_ref[0, pl.ds(off, CHUNK), :] = (acc + bpw).astype(o_ref.dtype)
        return carry

    jax.lax.fori_loop(0, n_ck, conv_body, None, unroll=unroll)


def depthwise_conv_module(x, gamma, beta, w_dw, b_dw, w_pw, b_pw, *,
                          kernel_size=7, expansion=4, lrelu_slope=0.3,
                          eps=1e-5, tile_l=512,
                          compute_dtype=jnp.bfloat16,
                          matmul_dtype=jnp.bfloat16,
                          vmem_limit_bytes=None):
    """Fused LayerNorm + depthwise Conv1d + LeakyReLU + pointwise Conv1d.

    x:     (B, L, dim)             activations (NLC layout kept end-to-end)
    gamma, beta: (dim,)            LayerNorm affine params
    w_dw:  (dim*expansion, 1, K)   depthwise Conv1d weight (PyTorch layout)
    b_dw:  (dim*expansion,)
    w_pw:  (dim, dim*expansion, 1) pointwise Conv1d weight (PyTorch layout)
    b_pw:  (dim,)
    compute_dtype: dtype of depthwise/LeakyReLU VPU math and the normalized
        scratch window (LN statistics always f32). bf16 for v6e/v7x; use
        jnp.float32 on v5e (no bf16 VPU).
    matmul_dtype: dtype of pointwise MXU operands (accumulation always f32).
    returns (B, L, dim), dtype of x.
    """
    B, L, dim = x.shape
    K = int(kernel_size)
    # TODO(synk): even kernel_size (PyTorch pads K//2 both sides -> length L+1)
    # is not supported here.
    assert K % 2 == 1, "only odd kernel_size is supported"
    pad = K // 2

    # halo block height (sublane multiple >= pad)
    HB = 8 * -(-pad // 8)
    # inner chunk rows: bound the (h, acc, window) live set to ~the vreg file
    CHUNK = min(64, max(8, ((64 * 128) // max(dim, 1)) // 8 * 8))
    CHUNK = HB * -(-max(CHUNK, HB) // HB)
    # L tile (multiple of CHUNK, hence of HB). No host-side pad of x: the grid
    # uses cdiv over L and the kernel masks rows >= L.
    TL = max(CHUNK, min(int(tile_l), CHUNK * -(-L // CHUNK)))
    TL = CHUNK * -(-TL // CHUNK)
    n_tiles = -(-L // TL)
    spb = TL // HB                      # halo blocks per L tile
    n_hb = -(-L // HB)                  # halo-block grid extent along L
    n_ck = TL // CHUNK
    unroll = n_ck <= 8

    # --- tiny one-time parameter re-layouts (negligible HBM traffic) ----------
    # depthwise weight -> (K*expansion, dim); row = k*expansion + e
    wdw = jnp.transpose(w_dw[:, 0, :].reshape(dim, expansion, K), (2, 1, 0))
    wdw = wdw.reshape(K * expansion, dim).astype(compute_dtype)
    # depthwise bias -> (expansion, dim)
    bdw = jnp.transpose(b_dw.reshape(dim, expansion), (1, 0)).astype(compute_dtype)
    # pointwise weight -> (expansion*dim, dim); row = e*dim + d_in
    wpw = jnp.transpose(w_pw[:, :, 0].reshape(dim, dim, expansion), (2, 1, 0))
    wpw = wpw.reshape(expansion * dim, dim).astype(matmul_dtype)
    bpw = b_pw.reshape(1, dim).astype(jnp.float32)
    g2 = gamma.reshape(1, dim).astype(jnp.float32)
    b2 = beta.reshape(1, dim).astype(jnp.float32)

    kernel = functools.partial(
        _dwconv_module_kernel, K=K, pad=pad, HB=HB, TL=TL, CHUNK=CHUNK,
        dim=dim, expansion=expansion, L_real=L, lrelu_slope=lrelu_slope,
        eps=eps, unroll=unroll)

    in_specs = [
        # current L tile of x (partial last block handled by Pallas + mask)
        pl.BlockSpec((1, TL, dim), lambda b, i: (b, i, 0)),
        # left halo (last HB rows of the previous tile), clamped at L=0
        pl.BlockSpec((1, HB, dim),
                     lambda b, i: (b, jnp.maximum(i * spb - 1, 0), 0)),
        # right halo (first HB rows of the next tile), clamped at the end
        pl.BlockSpec((1, HB, dim),
                     lambda b, i: (b, jnp.minimum((i + 1) * spb, n_hb - 1), 0)),
        pl.BlockSpec((1, dim), lambda b, i: (0, 0)),                   # gamma
        pl.BlockSpec((1, dim), lambda b, i: (0, 0)),                   # beta
        pl.BlockSpec((K * expansion, dim), lambda b, i: (0, 0)),       # w_dw
        pl.BlockSpec((expansion, dim), lambda b, i: (0, 0)),           # b_dw
        pl.BlockSpec((expansion * dim, dim), lambda b, i: (0, 0)),     # w_pw
        pl.BlockSpec((1, dim), lambda b, i: (0, 0)),                   # b_pw
    ]

    return pl.pallas_call(
        kernel,
        out_shape=jax.ShapeDtypeStruct((B, L, dim), x.dtype),
        grid_spec=pltpu.PrefetchScalarGridSpec(
            num_scalar_prefetch=0,
            grid=(B, n_tiles),
            in_specs=in_specs,
            out_specs=pl.BlockSpec((1, TL, dim), lambda b, i: (b, i, 0)),
            scratch_shapes=[
                pltpu.VMEM((HB + TL + HB, dim), compute_dtype),        # LN window
                pltpu.VMEM((CHUNK, expansion * dim), matmul_dtype),    # H chunk
            ],
        ),
        compiler_params=pltpu.CompilerParams(
            dimension_semantics=("parallel", "parallel"),
            vmem_limit_bytes=vmem_limit_bytes),
    )(x, x, x, g2, b2, wdw, bdw, wpw, bpw)


# ---- pure-JAX reference mirroring the PyTorch forward exactly ----------------
def _reference(x, gamma, beta, w_dw, b_dw, w_pw, b_pw, K, expansion, slope, eps):
    B, L, dim = x.shape
    pad = K // 2
    mean = jnp.mean(x, axis=-1, keepdims=True)
    var = jnp.mean((x - mean) ** 2, axis=-1, keepdims=True)
    xn = (x - mean) / jnp.sqrt(var + eps) * gamma + beta            # (B, L, dim)
    xn_ncl = jnp.transpose(xn, (0, 2, 1))                           # (B, dim, L)
    xp = jnp.pad(xn_ncl, ((0, 0), (0, 0), (pad, pad)))
    taps = jnp.stack([xp[:, :, k:k + L] for k in range(K)], axis=-1)  # (B,dim,L,K)
    w_r = w_dw[:, 0, :].reshape(dim, expansion, K)
    h = jnp.einsum("bdlk,dek->bdel", taps, w_r)
    h = h + b_dw.reshape(dim, expansion)[None, :, :, None]
    h = h.reshape(B, dim * expansion, L)                            # (B, dim*E, L)
    h = jnp.where(h >= 0, h, slope * h)
    out = jnp.einsum("oc,bcl->bol", w_pw[:, :, 0], h) + b_pw[None, :, None]
    return jnp.transpose(out, (0, 2, 1))                            # (B, L, dim)


if __name__ == "__main__":
    K, expansion, slope, eps = 7, 4, 0.3, 1e-5

    def run_case(B, L, dim, **kw):
        ks = jax.random.split(jax.random.PRNGKey(0), 7)
        x = jax.random.normal(ks[0], (B, L, dim), dtype=jnp.float32)
        gamma = 1.0 + 0.1 * jax.random.normal(ks[1], (dim,), dtype=jnp.float32)
        beta = 0.1 * jax.random.normal(ks[2], (dim,), dtype=jnp.float32)
        w_dw = 0.2 * jax.random.normal(ks[3], (dim * expansion, 1, K), dtype=jnp.float32)
        b_dw = 0.1 * jax.random.normal(ks[4], (dim * expansion,), dtype=jnp.float32)
        w_pw = 0.2 * jax.random.normal(ks[5], (dim, dim * expansion, 1), dtype=jnp.float32)
        b_pw = 0.1 * jax.random.normal(ks[6], (dim,), dtype=jnp.float32)
        out = depthwise_conv_module(x, gamma, beta, w_dw, b_dw, w_pw, b_pw,
                                    kernel_size=K, expansion=expansion,
                                    lrelu_slope=slope, eps=eps, **kw)
        out = jax.block_until_ready(out)
        assert out.shape == (B, L, dim)
        ref = _reference(x, gamma, beta, w_dw, b_dw, w_pw, b_pw,
                         K, expansion, slope, eps)
        return float(jnp.max(jnp.abs(out - ref)))

    # 1) small lane-unaligned dim (per-group pointwise fallback), all-f32: tight
    err = run_case(2, 64, 16, compute_dtype=jnp.float32, matmul_dtype=jnp.float32)
    assert err < 2e-3, f"f32 path max abs err {err}"

    # 2) same shapes, default bf16 compute / bf16 MXU operands (v6e/v7x config):
    #    bf16 activations -> loose tolerance
    err_bf16 = run_case(2, 64, 16)
    assert err_bf16 < 1e-1, f"bf16 path max abs err {err_bf16}"

    # 3) lane-aligned dim=128 (single fused pointwise MXU matmul) with a partial
    #    last L tile (L=40 < TL): tight f32 check of fused path + edge masking
    err128 = run_case(1, 40, 128, compute_dtype=jnp.float32,
                      matmul_dtype=jnp.float32)
    assert err128 < 2e-3, f"fused-matmul path max abs err {err128}"

    print("KERNEL_OK")
</pallas_src>

<mosaic_0001>
module attributes {stable_mosaic.version = 11 : i64} {
  func.func @_dwconv_module_kernel(%arg0: i32, %arg1: i32, %arg2: memref<1x64x16xf32, #tpu.memory_space<vmem>>, %arg3: memref<1x8x16xf32, #tpu.memory_space<vmem>>, %arg4: memref<1x8x16xf32, #tpu.memory_space<vmem>>, %arg5: memref<1x16xf32, #tpu.memory_space<vmem>>, %arg6: memref<1x16xf32, #tpu.memory_space<vmem>>, %arg7: memref<28x16xf32, #tpu.memory_space<vmem>>, %arg8: memref<4x16xf32, #tpu.memory_space<vmem>>, %arg9: memref<64x16xf32, #tpu.memory_space<vmem>>, %arg10: memref<1x16xf32, #tpu.memory_space<vmem>>, %arg11: memref<1x64x16xf32, #tpu.memory_space<vmem>>, %arg12: memref<80x16xf32, #tpu.memory_space<vmem>>, %arg13: memref<64x64xf32, #tpu.memory_space<vmem>>) attributes {dimension_semantics = [#tpu.dimension_semantics<parallel>, #tpu.dimension_semantics<parallel>], iteration_bounds = array<i64: 2, 1>, scalar_prefetch = 0 : i64, scratch_operands = 2 : i64, tpu.core_type = #tpu.core_type<tc>, window_params = [{transform_indices = @transform_0, window_bounds = array<i64: 1, 64, 16>}, {transform_indices = @transform_1, window_bounds = array<i64: 1, 8, 16>}, {transform_indices = @transform_2, window_bounds = array<i64: 1, 8, 16>}, {pipeline_mode = #tpu.pipeline_mode<synchronous>, transform_indices = @transform_3, window_bounds = array<i64: 1, 16>}, {pipeline_mode = #tpu.pipeline_mode<synchronous>, transform_indices = @transform_4, window_bounds = array<i64: 1, 16>}, {pipeline_mode = #tpu.pipeline_mode<synchronous>, transform_indices = @transform_5, window_bounds = array<i64: 28, 16>}, {pipeline_mode = #tpu.pipeline_mode<synchronous>, transform_indices = @transform_6, window_bounds = array<i64: 4, 16>}, {pipeline_mode = #tpu.pipeline_mode<synchronous>, transform_indices = @transform_7, window_bounds = array<i64: 64, 16>}, {pipeline_mode = #tpu.pipeline_mode<synchronous>, transform_indices = @transform_8, window_bounds = array<i64: 1, 16>}, {transform_indices = @transform_9, window_bounds = array<i64: 1, 64, 16>}]} {
    %c0 = arith.constant 0 : index
    %c0_0 = arith.constant 0 : index
    %0 = vector.load %arg5[%c0, %c0_0] : memref<1x16xf32, #tpu.memory_space<vmem>>, vector<1x16xf32>
    %c0_1 = arith.constant 0 : index
    %c0_2 = arith.constant 0 : index
    %1 = vector.load %arg6[%c0_1, %c0_2] : memref<1x16xf32, #tpu.memory_space<vmem>>, vector<1x16xf32>
    %c0_i32 = arith.constant 0 : i32
    %2 = arith.cmpi eq, %arg1, %c0_i32 : i32
    %c1_i32 = arith.constant 1 : i32
    %3 = arith.addi %arg1, %c1_i32 : i32
    %c64_i32 = arith.constant 64 : i32
    %4 = arith.muli %3, %c64_i32 : i32
    %c8_i32 = arith.constant 8 : i32
    %5 = arith.addi %4, %c8_i32 : i32
    %c64_i32_3 = arith.constant 64 : i32
    %6 = arith.cmpi sgt, %5, %c64_i32_3 : i32
    %7 = arith.ori %2, %6 : i1
    %8 = arith.extui %7 : i1 to i32
    %c0_i32_4 = arith.constant 0 : i32
    %9 = arith.cmpi ne, %8, %c0_i32_4 : i32
    scf.if %9 {
      %c0_151 = arith.constant 0 : index
      %c0_152 = arith.constant 0 : index
      %c0_153 = arith.constant 0 : index
      %295 = vector.load %arg3[%c0_151, %c0_152, %c0_153] : memref<1x8x16xf32, #tpu.memory_space<vmem>>, vector<1x8x16xf32>
      %296 = vector.shape_cast %295 : vector<1x8x16xf32> to vector<8x16xf32>
      %cst_154 = arith.constant dense<0.000000e+00> : vector<8xf32>
      %297 = vector.multi_reduction <add>, %296, %cst_154 [1] : vector<8x16xf32> to vector<8xf32>
      %298 = vector.shape_cast %297 : vector<8xf32> to vector<8x1xf32>
      %cst_155 = arith.constant 1.600000e+01 : f32
      %299 = vector.broadcast %cst_155 : f32 to vector<8x1xf32>
      %300 = arith.divf %298, %299 : vector<8x1xf32>
      %301 = vector.broadcast %300 : vector<8x1xf32> to vector<8x16xf32>
      %302 = arith.subf %296, %301 : vector<8x16xf32>
      %303 = arith.mulf %302, %302 : vector<8x16xf32>
      %cst_156 = arith.constant dense<0.000000e+00> : vector<8xf32>
      %304 = vector.multi_reduction <add>, %303, %cst_156 [1] : vector<8x16xf32> to vector<8xf32>
      %305 = vector.shape_cast %304 : vector<8xf32> to vector<8x1xf32>
      %cst_157 = arith.constant 1.600000e+01 : f32
      %306 = vector.broadcast %cst_157 : f32 to vector<8x1xf32>
      %307 = arith.divf %305, %306 : vector<8x1xf32>
      %308 = vector.broadcast %300 : vector<8x1xf32> to vector<8x16xf32>
      %309 = arith.subf %296, %308 : vector<8x16xf32>
      %cst_158 = arith.constant 9.99999974E-6 : f32
      %310 = vector.broadcast %cst_158 : f32 to vector<8x1xf32>
      %311 = arith.addf %307, %310 : vector<8x1xf32>
      %312 = math.rsqrt %311 : vector<8x1xf32>
      %313 = vector.broadcast %312 : vector<8x1xf32> to vector<8x16xf32>
      %314 = arith.mulf %309, %313 : vector<8x16xf32>
      %315 = vector.broadcast %0 : vector<1x16xf32> to vector<8x16xf32>
      %316 = arith.mulf %314, %315 : vector<8x16xf32>
      %317 = vector.broadcast %1 : vector<1x16xf32> to vector<8x16xf32>
      %318 = arith.addf %316, %317 : vector<8x16xf32>
      %319 = tpu.iota {dimensions = array<i32: 0>} : vector<8x1xi32>
      %c64_i32_159 = arith.constant 64 : i32
      %320 = arith.muli %arg1, %c64_i32_159 : i32
      %c8_i32_160 = arith.constant 8 : i32
      %321 = arith.subi %320, %c8_i32_160 : i32
      %c0_i32_161 = arith.constant 0 : i32
      %322 = arith.addi %321, %c0_i32_161 : i32
      %323 = vector.broadcast %322 : i32 to vector<8x1xi32>
      %324 = arith.addi %323, %319 : vector<8x1xi32>
      %c0_i32_162 = arith.constant 0 : i32
      %325 = vector.broadcast %c0_i32_162 : i32 to vector<8x1xi32>
      %326 = arith.cmpi sge, %324, %325 : vector<8x1xi32>
      %c64_i32_163 = arith.constant 64 : i32
      %327 = vector.broadcast %c64_i32_163 : i32 to vector<8x1xi32>
      %328 = arith.cmpi slt, %324, %327 : vector<8x1xi32>
      %329 = arith.andi %326, %328 : vector<8x1xi1>
      %cst_164 = arith.constant 0.000000e+00 : f32
      %330 = vector.shape_cast %329 : vector<8x1xi1> to vector<8x1xi1>
      %331 = vector.broadcast %330 : vector<8x1xi1> to vector<8x16xi1>
      %332 = vector.broadcast %cst_164 : f32 to vector<8x16xf32>
      %333 = arith.select %331, %318, %332 : vector<8x16xi1>, vector<8x16xf32>
      %c0_165 = arith.constant 0 : index
      %c0_166 = arith.constant 0 : index
      %334 = vector.load %arg12[%c0_165, %c0_166] : memref<80x16xf32, #tpu.memory_space<vmem>>, vector<8x16xf32>
      tpu.vector_store %arg12[%c0_165, %c0_166], %333 {strides = array<i32>} : memref<80x16xf32, #tpu.memory_space<vmem>>, vector<8x16xf32>,
      %c0_i32_167 = arith.constant 0 : i32
      %c64_i32_168 = arith.constant 64 : i32
      %335 = arith.muli %c0_i32_167, %c64_i32_168 : i32
      %336 = tpu.assume_multiple %335, 64 : i32
      %c0_169 = arith.constant 0 : index
      %337 = arith.index_cast %336 : i32 to index
      %c0_170 = arith.constant 0 : index
      %338 = vector.load %arg2[%c0_169, %337, %c0_170] : memref<1x64x16xf32, #tpu.memory_space<vmem>>, vector<1x64x16xf32>
      %339 = vector.shape_cast %338 : vector<1x64x16xf32> to vector<64x16xf32>
      %c8_i32_171 = arith.constant 8 : i32
      %340 = arith.addi %c8_i32_171, %336 : i32
      %cst_172 = arith.constant dense<0.000000e+00> : vector<64xf32>
      %341 = vector.multi_reduction <add>, %339, %cst_172 [1] : vector<64x16xf32> to vector<64xf32>
      %342 = vector.shape_cast %341 : vector<64xf32> to vector<64x1xf32>
      %cst_173 = arith.constant 1.600000e+01 : f32
      %343 = vector.broadcast %cst_173 : f32 to vector<64x1xf32>
      %344 = arith.divf %342, %343 : vector<64x1xf32>
      %345 = vector.broadcast %344 : vector<64x1xf32> to vector<64x16xf32>
      %346 = arith.subf %339, %345 : vector<64x16xf32>
      %347 = arith.mulf %346, %346 : vector<64x16xf32>
      %cst_174 = arith.constant dense<0.000000e+00> : vector<64xf32>
      %348 = vector.multi_reduction <add>, %347, %cst_174 [1] : vector<64x16xf32> to vector<64xf32>
      %349 = vector.shape_cast %348 : vector<64xf32> to vector<64x1xf32>
      %cst_175 = arith.constant 1.600000e+01 : f32
      %350 = vector.broadcast %cst_175 : f32 to vector<64x1xf32>
      %351 = arith.divf %349, %350 : vector<64x1xf32>
      %352 = vector.broadcast %344 : vector<64x1xf32> to vector<64x16xf32>
      %353 = arith.subf %339, %352 : vector<64x16xf32>
      %cst_176 = arith.constant 9.99999974E-6 : f32
      %354 = vector.broadcast %cst_176 : f32 to vector<64x1xf32>
      %355 = arith.addf %351, %354 : vector<64x1xf32>
      %356 = math.rsqrt %355 : vector<64x1xf32>
      %357 = vector.broadcast %356 : vector<64x1xf32> to vector<64x16xf32>
      %358 = arith.mulf %353, %357 : vector<64x16xf32>
      %359 = vector.broadcast %0 : vector<1x16xf32> to vector<64x16xf32>
      %360 = arith.mulf %358, %359 : vector<64x16xf32>
      %361 = vector.broadcast %1 : vector<1x16xf32> to vector<64x16xf32>
      %362 = arith.addf %360, %361 : vector<64x16xf32>
      %363 = tpu.iota {dimensions = array<i32: 0>} : vector<64x1xi32>
      %c64_i32_177 = arith.constant 64 : i32
      %364 = arith.muli %arg1, %c64_i32_177 : i32
      %c8_i32_178 = arith.constant 8 : i32
      %365 = arith.subi %364, %c8_i32_178 : i32
      %366 = arith.addi %365, %340 : i32
      %367 = vector.broadcast %366 : i32 to vector<64x1xi32>
      %368 = arith.addi %367, %363 : vector<64x1xi32>
      %c0_i32_179 = arith.constant 0 : i32
      %369 = vector.broadcast %c0_i32_179 : i32 to vector<64x1xi32>
      %370 = arith.cmpi sge, %368, %369 : vector<64x1xi32>
      %c64_i32_180 = arith.constant 64 : i32
      %371 = vector.broadcast %c64_i32_180 : i32 to vector<64x1xi32>
      %372 = arith.cmpi slt, %368, %371 : vector<64x1xi32>
      %373 = arith.andi %370, %372 : vector<64x1xi1>
      %cst_181 = arith.constant 0.000000e+00 : f32
      %374 = vector.shape_cast %373 : vector<64x1xi1> to vector<64x1xi1>
      %375 = vector.broadcast %374 : vector<64x1xi1> to vector<64x16xi1>
      %376 = vector.broadcast %cst_181 : f32 to vector<64x16xf32>
      %377 = arith.select %375, %362, %376 : vector<64x16xi1>, vector<64x16xf32>
      %378 = arith.index_cast %340 : i32 to index
      %c0_182 = arith.constant 0 : index
      %379 = vector.load %arg12[%378, %c0_182] : memref<80x16xf32, #tpu.memory_space<vmem>>, vector<64x16xf32>
      tpu.vector_store %arg12[%378, %c0_182], %377 {strides = array<i32>} : memref<80x16xf32, #tpu.memory_space<vmem>>, vector<64x16xf32>,
      %c1_i32_183 = arith.constant 1 : i32
      %c0_184 = arith.constant 0 : index
      %c0_185 = arith.constant 0 : index
      %c0_186 = arith.constant 0 : index
      %380 = vector.load %arg4[%c0_184, %c0_185, %c0_186] : memref<1x8x16xf32, #tpu.memory_space<vmem>>, vector<1x8x16xf32>
      %381 = vector.shape_cast %380 : vector<1x8x16xf32> to vector<8x16xf32>
      %cst_187 = arith.constant dense<0.000000e+00> : vector<8xf32>
      %382 = vector.multi_reduction <add>, %381, %cst_187 [1] : vector<8x16xf32> to vector<8xf32>
      %383 = vector.shape_cast %382 : vector<8xf32> to vector<8x1xf32>
      %cst_188 = arith.constant 1.600000e+01 : f32
      %384 = vector.broadcast %cst_188 : f32 to vector<8x1xf32>
      %385 = arith.divf %383, %384 : vector<8x1xf32>
      %386 = vector.broadcast %385 : vector<8x1xf32> to vector<8x16xf32>
      %387 = arith.subf %381, %386 : vector<8x16xf32>
      %388 = arith.mulf %387, %387 : vector<8x16xf32>
      %cst_189 = arith.constant dense<0.000000e+00> : vector<8xf32>
      %389 = vector.multi_reduction <add>, %388, %cst_189 [1] : vector<8x16xf32> to vector<8xf32>
      %390 = vector.shape_cast %389 : vector<8xf32> to vector<8x1xf32>
      %cst_190 = arith.constant 1.600000e+01 : f32
      %391 = vector.broadcast %cst_190 : f32 to vector<8x1xf32>
      %392 = arith.divf %390, %391 : vector<8x1xf32>
      %393 = vector.broadcast %385 : vector<8x1xf32> to vector<8x16xf32>
      %394 = arith.subf %381, %393 : vector<8x16xf32>
      %cst_191 = arith.constant 9.99999974E-6 : f32
      %395 = vector.broadcast %cst_191 : f32 to vector<8x1xf32>
      %396 = arith.addf %392, %395 : vector<8x1xf32>
      %397 = math.rsqrt %396 : vector<8x1xf32>
      %398 = vector.broadcast %397 : vector<8x1xf32> to vector<8x16xf32>
      %399 = arith.mulf %394, %398 : vector<8x16xf32>
      %400 = vector.broadcast %0 : vector<1x16xf32> to vector<8x16xf32>
      %401 = arith.mulf %399, %400 : vector<8x16xf32>
      %402 = vector.broadcast %1 : vector<1x16xf32> to vector<8x16xf32>
      %403 = arith.addf %401, %402 : vector<8x16xf32>
      %404 = tpu.iota {dimensions = array<i32: 0>} : vector<8x1xi32>
      %c64_i32_192 = arith.constant 64 : i32
      %405 = arith.muli %arg1, %c64_i32_192 : i32
      %c8_i32_193 = arith.constant 8 : i32
      %406 = arith.subi %405, %c8_i32_193 : i32
      %c72_i32 = arith.constant 72 : i32
      %407 = arith.addi %406, %c72_i32 : i32
      %408 = vector.broadcast %407 : i32 to vector<8x1xi32>
      %409 = arith.addi %408, %404 : vector<8x1xi32>
      %c0_i32_194 = arith.constant 0 : i32
      %410 = vector.broadcast %c0_i32_194 : i32 to vector<8x1xi32>
      %411 = arith.cmpi sge, %409, %410 : vector<8x1xi32>
      %c64_i32_195 = arith.constant 64 : i32
      %412 = vector.broadcast %c64_i32_195 : i32 to vector<8x1xi32>
      %413 = arith.cmpi slt, %409, %412 : vector<8x1xi32>
      %414 = arith.andi %411, %413 : vector<8x1xi1>
      %cst_196 = arith.constant 0.000000e+00 : f32
      %415 = vector.shape_cast %414 : vector<8x1xi1> to vector<8x1xi1>
      %416 = vector.broadcast %415 : vector<8x1xi1> to vector<8x16xi1>
      %417 = vector.broadcast %cst_196 : f32 to vector<8x16xf32>
      %418 = arith.select %416, %403, %417 : vector<8x16xi1>, vector<8x16xf32>
      %c72 = arith.constant 72 : index
      %c0_197 = arith.constant 0 : index
      %419 = vector.load %arg12[%c72, %c0_197] : memref<80x16xf32, #tpu.memory_space<vmem>>, vector<8x16xf32>
      tpu.vector_store %arg12[%c72, %c0_197], %418 {strides = array<i32>} : memref<80x16xf32, #tpu.memory_space<vmem>>, vector<8x16xf32>,
    } else {
    }
    %true = arith.constant true
    %10 = arith.xori %7, %true : i1
    %11 = arith.extui %10 : i1 to i32
    %c0_i32_5 = arith.constant 0 : i32
    %12 = arith.cmpi ne, %11, %c0_i32_5 : i32
    scf.if %12 {
      %c0_151 = arith.constant 0 : index
      %c0_152 = arith.constant 0 : index
      %c0_153 = arith.constant 0 : index
      %295 = vector.load %arg3[%c0_151, %c0_152, %c0_153] : memref<1x8x16xf32, #tpu.memory_space<vmem>>, vector<1x8x16xf32>
      %296 = vector.shape_cast %295 : vector<1x8x16xf32> to vector<8x16xf32>
      %cst_154 = arith.constant dense<0.000000e+00> : vector<8xf32>
      %297 = vector.multi_reduction <add>, %296, %cst_154 [1] : vector<8x16xf32> to vector<8xf32>
      %298 = vector.shape_cast %297 : vector<8xf32> to vector<8x1xf32>
      %cst_155 = arith.constant 1.600000e+01 : f32
      %299 = vector.broadcast %cst_155 : f32 to vector<8x1xf32>
      %300 = arith.divf %298, %299 : vector<8x1xf32>
      %301 = vector.broadcast %300 : vector<8x1xf32> to vector<8x16xf32>
      %302 = arith.subf %296, %301 : vector<8x16xf32>
      %303 = arith.mulf %302, %302 : vector<8x16xf32>
      %cst_156 = arith.constant dense<0.000000e+00> : vector<8xf32>
      %304 = vector.multi_reduction <add>, %303, %cst_156 [1] : vector<8x16xf32> to vector<8xf32>
      %305 = vector.shape_cast %304 : vector<8xf32> to vector<8x1xf32>
      %cst_157 = arith.constant 1.600000e+01 : f32
      %306 = vector.broadcast %cst_157 : f32 to vector<8x1xf32>
      %307 = arith.divf %305, %306 : vector<8x1xf32>
      %308 = vector.broadcast %300 : vector<8x1xf32> to vector<8x16xf32>
      %309 = arith.subf %296, %308 : vector<8x16xf32>
      %cst_158 = arith.constant 9.99999974E-6 : f32
      %310 = vector.broadcast %cst_158 : f32 to vector<8x1xf32>
      %311 = arith.addf %307, %310 : vector<8x1xf32>
      %312 = math.rsqrt %311 : vector<8x1xf32>
      %313 = vector.broadcast %312 : vector<8x1xf32> to vector<8x16xf32>
      %314 = arith.mulf %309, %313 : vector<8x16xf32>
      %315 = vector.broadcast %0 : vector<1x16xf32> to vector<8x16xf32>
      %316 = arith.mulf %314, %315 : vector<8x16xf32>
      %317 = vector.broadcast %1 : vector<1x16xf32> to vector<8x16xf32>
      %318 = arith.addf %316, %317 : vector<8x16xf32>
      %c0_159 = arith.constant 0 : index
      %c0_160 = arith.constant 0 : index
      %319 = vector.load %arg12[%c0_159, %c0_160] : memref<80x16xf32, #tpu.memory_space<vmem>>, vector<8x16xf32>
      tpu.vector_store %arg12[%c0_159, %c0_160], %318 {strides = array<i32>} : memref<80x16xf32, #tpu.memory_space<vmem>>, vector<8x16xf32>,
      %c0_i32_161 = arith.constant 0 : i32
      %c64_i32_162 = arith.constant 64 : i32
      %320 = arith.muli %c0_i32_161, %c64_i32_162 : i32
      %321 = tpu.assume_multiple %320, 64 : i32
      %c0_163 = arith.constant 0 : index
      %322 = arith.index_cast %321 : i32 to index
      %c0_164 = arith.constant 0 : index
      %323 = vector.load %arg2[%c0_163, %322, %c0_164] : memref<1x64x16xf32, #tpu.memory_space<vmem>>, vector<1x64x16xf32>
      %324 = vector.shape_cast %323 : vector<1x64x16xf32> to vector<64x16xf32>
      %c8_i32_165 = arith.constant 8 : i32
      %325 = arith.addi %c8_i32_165, %321 : i32
      %cst_166 = arith.constant dense<0.000000e+00> : vector<64xf32>
      %326 = vector.multi_reduction <add>, %324, %cst_166 [1] : vector<64x16xf32> to vector<64xf32>
      %327 = vector.shape_cast %326 : vector<64xf32> to vector<64x1xf32>
      %cst_167 = arith.constant 1.600000e+01 : f32
      %328 = vector.broadcast %cst_167 : f32 to vector<64x1xf32>
      %329 = arith.divf %327, %328 : vector<64x1xf32>
      %330 = vector.broadcast %329 : vector<64x1xf32> to vector<64x16xf32>
      %331 = arith.subf %324, %330 : vector<64x16xf32>
      %332 = arith.mulf %331, %331 : vector<64x16xf32>
      %cst_168 = arith.constant dense<0.000000e+00> : vector<64xf32>
      %333 = vector.multi_reduction <add>, %332, %cst_168 [1] : vector<64x16xf32> to vector<64xf32>
      %334 = vector.shape_cast %333 : vector<64xf32> to vector<64x1xf32>
      %cst_169 = arith.constant 1.600000e+01 : f32
      %335 = vector.broadcast %cst_169 : f32 to vector<64x1xf32>
      %336 = arith.divf %334, %335 : vector<64x1xf32>
      %337 = vector.broadcast %329 : vector<64x1xf32> to vector<64x16xf32>
      %338 = arith.subf %324, %337 : vector<64x16xf32>
      %cst_170 = arith.constant 9.99999974E-6 : f32
      %339 = vector.broadcast %cst_170 : f32 to vector<64x1xf32>
      %340 = arith.addf %336, %339 : vector<64x1xf32>
      %341 = math.rsqrt %340 : vector<64x1xf32>
      %342 = vector.broadcast %341 : vector<64x1xf32> to vector<64x16xf32>
      %343 = arith.mulf %338, %342 : vector<64x16xf32>
      %344 = vector.broadcast %0 : vector<1x16xf32> to vector<64x16xf32>
      %345 = arith.mulf %343, %344 : vector<64x16xf32>
      %346 = vector.broadcast %1 : vector<1x16xf32> to vector<64x16xf32>
      %347 = arith.addf %345, %346 : vector<64x16xf32>
      %348 = arith.index_cast %325 : i32 to index
      %c0_171 = arith.constant 0 : index
      %349 = vector.load %arg12[%348, %c0_171] : memref<80x16xf32, #tpu.memory_space<vmem>>, vector<64x16xf32>
      tpu.vector_store %arg12[%348, %c0_171], %347 {strides = array<i32>} : memref<80x16xf32, #tpu.memory_space<vmem>>, vector<64x16xf32>,
      %c1_i32_172 = arith.constant 1 : i32
      %c0_173 = arith.constant 0 : index
      %c0_174 = arith.constant 0 : index
      %c0_175 = arith.constant 0 : index
      %350 = vector.load %arg4[%c0_173, %c0_174, %c0_175] : memref<1x8x16xf32, #tpu.memory_space<vmem>>, vector<1x8x16xf32>
      %351 = vector.shape_cast %350 : vector<1x8x16xf32> to vector<8x16xf32>
      %cst_176 = arith.constant dense<0.000000e+00> : vector<8xf32>
      %352 = vector.multi_reduction <add>, %351, %cst_176 [1] : vector<8x16xf32> to vector<8xf32>
      %353 = vector.shape_cast %352 : vector<8xf32> to vector<8x1xf32>
      %cst_177 = arith.constant 1.600000e+01 : f32
      %354 = vector.broadcast %cst_177 : f32 to vector<8x1xf32>
      %355 = arith.divf %353, %354 : vector<8x1xf32>
      %356 = vector.broadcast %355 : vector<8x1xf32> to vector<8x16xf32>
      %357 = arith.subf %351, %356 : vector<8x16xf32>
      %358 = arith.mulf %357, %357 : vector<8x16xf32>
      %cst_178 = arith.constant dense<0.000000e+00> : vector<8xf32>
      %359 = vector.multi_reduction <add>, %358, %cst_178 [1] : vector<8x16xf32> to vector<8xf32>
      %360 = vector.shape_cast %359 : vector<8xf32> to vector<8x1xf32>
      %cst_179 = arith.constant 1.600000e+01 : f32
      %361 = vector.broadcast %cst_179 : f32 to vector<8x1xf32>
      %362 = arith.divf %360, %361 : vector<8x1xf32>
      %363 = vector.broadcast %355 : vector<8x1xf32> to vector<8x16xf32>
      %364 = arith.subf %351, %363 : vector<8x16xf32>
      %cst_180 = arith.constant 9.99999974E-6 : f32
      %365 = vector.broadcast %cst_180 : f32 to vector<8x1xf32>
      %366 = arith.addf %362, %365 : vector<8x1xf32>
      %367 = math.rsqrt %366 : vector<8x1xf32>
      %368 = vector.broadcast %367 : vector<8x1xf32> to vector<8x16xf32>
      %369 = arith.mulf %364, %368 : vector<8x16xf32>
      %370 = vector.broadcast %0 : vector<1x16xf32> to vector<8x16xf32>
      %371 = arith.mulf %369, %370 : vector<8x16xf32>
      %372 = vector.broadcast %1 : vector<1x16xf32> to vector<8x16xf32>
      %373 = arith.addf %371, %372 : vector<8x16xf32>
      %c72 = arith.constant 72 : index
      %c0_181 = arith.constant 0 : index
      %374 = vector.load %arg12[%c72, %c0_181] : memref<80x16xf32, #tpu.memory_space<vmem>>, vector<8x16xf32>
      tpu.vector_store %arg12[%c72, %c0_181], %373 {strides = array<i32>} : memref<80x16xf32, #tpu.memory_space<vmem>>, vector<8x16xf32>,
    } else {
    }
    %c0_6 = arith.constant 0 : index
    %c0_7 = arith.constant 0 : index
    %13 = vector.load %arg7[%c0_6, %c0_7] : memref<28x16xf32, #tpu.memory_space<vmem>>, vector<1x16xf32>
    %c1 = arith.constant 1 : index
    %c0_8 = arith.constant 0 : index
    %14 = vector.load %arg7[%c1, %c0_8] : memref<28x16xf32, #tpu.memory_space<vmem>>, vector<1x16xf32>
    %c2 = arith.constant 2 : index
    %c0_9 = arith.constant 0 : index
    %15 = vector.load %arg7[%c2, %c0_9] : memref<28x16xf32, #tpu.memory_space<vmem>>, vector<1x16xf32>
    %c3 = arith.constant 3 : index
    %c0_10 = arith.constant 0 : index
    %16 = vector.load %arg7[%c3, %c0_10] : memref<28x16xf32, #tpu.memory_space<vmem>>, vector<1x16xf32>
    %c4 = arith.constant 4 : index
    %c0_11 = arith.constant 0 : index
    %17 = vector.load %arg7[%c4, %c0_11] : memref<28x16xf32, #tpu.memory_space<vmem>>, vector<1x16xf32>
    %c5 = arith.constant 5 : index
    %c0_12 = arith.constant 0 : index
    %18 = vector.load %arg7[%c5, %c0_12] : memref<28x16xf32, #tpu.memory_space<vmem>>, vector<1x16xf32>
    %c6 = arith.constant 6 : index
    %c0_13 = arith.constant 0 : index
    %19 = vector.load %arg7[%c6, %c0_13] : memref<28x16xf32, #tpu.memory_space<vmem>>, vector<1x16xf32>
    %c7 = arith.constant 7 : index
    %c0_14 = arith.constant 0 : index
    %20 = vector.load %arg7[%c7, %c0_14] : memref<28x16xf32, #tpu.memory_space<vmem>>, vector<1x16xf32>
    %c8 = arith.constant 8 : index
    %c0_15 = arith.constant 0 : index
    %21 = vector.load %arg7[%c8, %c0_15] : memref<28x16xf32, #tpu.memory_space<vmem>>, vector<1x16xf32>
    %c9 = arith.constant 9 : index
    %c0_16 = arith.constant 0 : index
    %22 = vector.load %arg7[%c9, %c0_16] : memref<28x16xf32, #tpu.memory_space<vmem>>, vector<1x16xf32>
    %c10 = arith.constant 10 : index
    %c0_17 = arith.constant 0 : index
    %23 = vector.load %arg7[%c10, %c0_17] : memref<28x16xf32, #tpu.memory_space<vmem>>, vector<1x16xf32>
    %c11 = arith.constant 11 : index
    %c0_18 = arith.constant 0 : index
    %24 = vector.load %arg7[%c11, %c0_18] : memref<28x16xf32, #tpu.memory_space<vmem>>, vector<1x16xf32>
    %c12 = arith.constant 12 : index
    %c0_19 = arith.constant 0 : index
    %25 = vector.load %arg7[%c12, %c0_19] : memref<28x16xf32, #tpu.memory_space<vmem>>, vector<1x16xf32>
    %c13 = arith.constant 13 : index
    %c0_20 = arith.constant 0 : index
    %26 = vector.load %arg7[%c13, %c0_20] : memref<28x16xf32, #tpu.memory_space<vmem>>, vector<1x16xf32>
    %c14 = arith.constant 14 : index
    %c0_21 = arith.constant 0 : index
    %27 = vector.load %arg7[%c14, %c0_21] : memref<28x16xf32, #tpu.memory_space<vmem>>, vector<1x16xf32>
    %c15 = arith.constant 15 : index
    %c0_22 = arith.constant 0 : index
    %28 = vector.load %arg7[%c15, %c0_22] : memref<28x16xf32, #tpu.memory_space<vmem>>, vector<1x16xf32>
    %c16 = arith.constant 16 : index
    %c0_23 = arith.constant 0 : index
    %29 = vector.load %arg7[%c16, %c0_23] : memref<28x16xf32, #tpu.memory_space<vmem>>, vector<1x16xf32>
    %c17 = arith.constant 17 : index
    %c0_24 = arith.constant 0 : index
    %30 = vector.load %arg7[%c17, %c0_24] : memref<28x16xf32, #tpu.memory_space<vmem>>, vector<1x16xf32>
    %c18 = arith.constant 18 : index
    %c0_25 = arith.constant 0 : index
    %31 = vector.load %arg7[%c18, %c0_25] : memref<28x16xf32, #tpu.memory_space<vmem>>, vector<1x16xf32>
    %c19 = arith.constant 19 : index
    %c0_26 = arith.constant 0 : index
    %32 = vector.load %arg7[%c19, %c0_26] : memref<28x16xf32, #tpu.memory_space<vmem>>, vector<1x16xf32>
    %c20 = arith.constant 20 : index
    %c0_27 = arith.constant 0 : index
    %33 = vector.load %arg7[%c20, %c0_27] : memref<28x16xf32, #tpu.memory_space<vmem>>, vector<1x16xf32>
    %c21 = arith.constant 21 : index
    %c0_28 = arith.constant 0 : index
    %34 = vector.load %arg7[%c21, %c0_28] : memref<28x16xf32, #tpu.memory_space<vmem>>, vector<1x16xf32>
    %c22 = arith.constant 22 : index
    %c0_29 = arith.constant 0 : index
    %35 = vector.load %arg7[%c22, %c0_29] : memref<28x16xf32, #tpu.memory_space<vmem>>, vector<1x16xf32>
    %c23 = arith.constant 23 : index
    %c0_30 = arith.constant 0 : index
    %36 = vector.load %arg7[%c23, %c0_30] : memref<28x16xf32, #tpu.memory_space<vmem>>, vector<1x16xf32>
    %c24 = arith.constant 24 : index
    %c0_31 = arith.constant 0 : index
    %37 = vector.load %arg7[%c24, %c0_31] : memref<28x16xf32, #tpu.memory_space<vmem>>, vector<1x16xf32>
    %c25 = arith.constant 25 : index
    %c0_32 = arith.constant 0 : index
    %38 = vector.load %arg7[%c25, %c0_32] : memref<28x16xf32, #tpu.memory_space<vmem>>, vector<1x16xf32>
    %c26 = arith.constant 26 : index
    %c0_33 = arith.constant 0 : index
    %39 = vector.load %arg7[%c26, %c0_33] : memref<28x16xf32, #tpu.memory_space<vmem>>, vector<1x16xf32>
    %c27 = arith.constant 27 : index
    %c0_34 = arith.constant 0 : index
    %40 = vector.load %arg7[%c27, %c0_34] : memref<28x16xf32, #tpu.memory_space<vmem>>, vector<1x16xf32>
    %c0_35 = arith.constant 0 : index
    %c0_36 = arith.constant 0 : index
    %41 = vector.load %arg8[%c0_35, %c0_36] : memref<4x16xf32, #tpu.memory_space<vmem>>, vector<1x16xf32>
    %c1_37 = arith.constant 1 : index
    %c0_38 = arith.constant 0 : index
    %42 = vector.load %arg8[%c1_37, %c0_38] : memref<4x16xf32, #tpu.memory_space<vmem>>, vector<1x16xf32>
    %c2_39 = arith.constant 2 : index
    %c0_40 = arith.constant 0 : index
    %43 = vector.load %arg8[%c2_39, %c0_40] : memref<4x16xf32, #tpu.memory_space<vmem>>, vector<1x16xf32>
    %c3_41 = arith.constant 3 : index
    %c0_42 = arith.constant 0 : index
    %44 = vector.load %arg8[%c3_41, %c0_42] : memref<4x16xf32, #tpu.memory_space<vmem>>, vector<1x16xf32>
    %c0_43 = arith.constant 0 : index
    %c0_44 = arith.constant 0 : index
    %45 = vector.load %arg10[%c0_43, %c0_44] : memref<1x16xf32, #tpu.memory_space<vmem>>, vector<1x16xf32>
    %c0_i32_45 = arith.constant 0 : i32
    %c64_i32_46 = arith.constant 64 : i32
    %46 = arith.muli %c0_i32_45, %c64_i32_46 : i32
    %47 = tpu.assume_multiple %46, 64 : i32
    %cst = arith.constant 0.000000e+00 : f32
    %48 = vector.broadcast %cst : f32 to vector<64x16xf32>
    %cst_47 = arith.constant 0.000000e+00 : f32
    %49 = vector.broadcast %cst_47 : f32 to vector<64x16xf32>
    %50 = vector.broadcast %41 : vector<1x16xf32> to vector<64x16xf32>
    %51 = arith.addf %49, %50 : vector<64x16xf32>
    %c5_i32 = arith.constant 5 : i32
    %52 = arith.addi %47, %c5_i32 : i32
    %c0_i32_48 = arith.constant 0 : i32
    %53 = arith.addi %52, %c0_i32_48 : i32
    %54 = arith.index_cast %53 : i32 to index
    %c0_49 = arith.constant 0 : index
    %55 = vector.load %arg12[%54, %c0_49] : memref<80x16xf32, #tpu.memory_space<vmem>>, vector<64x16xf32>
    %56 = vector.broadcast %13 : vector<1x16xf32> to vector<64x16xf32>
    %57 = arith.mulf %55, %56 : vector<64x16xf32>
    %58 = arith.addf %51, %57 : vector<64x16xf32>
    %c5_i32_50 = arith.constant 5 : i32
    %59 = arith.addi %47, %c5_i32_50 : i32
    %c1_i32_51 = arith.constant 1 : i32
    %60 = arith.addi %59, %c1_i32_51 : i32
    %61 = arith.index_cast %60 : i32 to index
    %c0_52 = arith.constant 0 : index
    %62 = vector.load %arg12[%61, %c0_52] : memref<80x16xf32, #tpu.memory_space<vmem>>, vector<64x16xf32>
    %63 = vector.broadcast %17 : vector<1x16xf32> to vector<64x16xf32>
    %64 = arith.mulf %62, %63 : vector<64x16xf32>
    %65 = arith.addf %58, %64 : vector<64x16xf32>
    %c5_i32_53 = arith.constant 5 : i32
    %66 = arith.addi %47, %c5_i32_53 : i32
    %c2_i32 = arith.constant 2 : i32
    %67 = arith.addi %66, %c2_i32 : i32
    %68 = arith.index_cast %67 : i32 to index
    %c0_54 = arith.constant 0 : index
    %69 = vector.load %arg12[%68, %c0_54] : memref<80x16xf32, #tpu.memory_space<vmem>>, vector<64x16xf32>
    %70 = vector.broadcast %21 : vector<1x16xf32> to vector<64x16xf32>
    %71 = arith.mulf %69, %70 : vector<64x16xf32>
    %72 = arith.addf %65, %71 : vector<64x16xf32>
    %c5_i32_55 = arith.constant 5 : i32
    %73 = arith.addi %47, %c5_i32_55 : i32
    %c3_i32 = arith.constant 3 : i32
    %74 = arith.addi %73, %c3_i32 : i32
    %75 = arith.index_cast %74 : i32 to index
    %c0_56 = arith.constant 0 : index
    %76 = vector.load %arg12[%75, %c0_56] : memref<80x16xf32, #tpu.memory_space<vmem>>, vector<64x16xf32>
    %77 = vector.broadcast %25 : vector<1x16xf32> to vector<64x16xf32>
    %78 = arith.mulf %76, %77 : vector<64x16xf32>
    %79 = arith.addf %72, %78 : vector<64x16xf32>
    %c5_i32_57 = arith.constant 5 : i32
    %80 = arith.addi %47, %c5_i32_57 : i32
    %c4_i32 = arith.constant 4 : i32
    %81 = arith.addi %80, %c4_i32 : i32
    %82 = arith.index_cast %81 : i32 to index
    %c0_58 = arith.constant 0 : index
    %83 = vector.load %arg12[%82, %c0_58] : memref<80x16xf32, #tpu.memory_space<vmem>>, vector<64x16xf32>
    %84 = vector.broadcast %29 : vector<1x16xf32> to vector<64x16xf32>
    %85 = arith.mulf %83, %84 : vector<64x16xf32>
    %86 = arith.addf %79, %85 : vector<64x16xf32>
    %c5_i32_59 = arith.constant 5 : i32
    %87 = arith.addi %47, %c5_i32_59 : i32
    %c5_i32_60 = arith.constant 5 : i32
    %88 = arith.addi %87, %c5_i32_60 : i32
    %89 = arith.index_cast %88 : i32 to index
    %c0_61 = arith.constant 0 : index
    %90 = vector.load %arg12[%89, %c0_61] : memref<80x16xf32, #tpu.memory_space<vmem>>, vector<64x16xf32>
    %91 = vector.broadcast %33 : vector<1x16xf32> to vector<64x16xf32>
    %92 = arith.mulf %90, %91 : vector<64x16xf32>
    %93 = arith.addf %86, %92 : vector<64x16xf32>
    %c5_i32_62 = arith.constant 5 : i32
    %94 = arith.addi %47, %c5_i32_62 : i32
    %c6_i32 = arith.constant 6 : i32
    %95 = arith.addi %94, %c6_i32 : i32
    %96 = arith.index_cast %95 : i32 to index
    %c0_63 = arith.constant 0 : index
    %97 = vector.load %arg12[%96, %c0_63] : memref<80x16xf32, #tpu.memory_space<vmem>>, vector<64x16xf32>
    %98 = vector.broadcast %37 : vector<1x16xf32> to vector<64x16xf32>
    %99 = arith.mulf %97, %98 : vector<64x16xf32>
    %100 = arith.addf %93, %99 : vector<64x16xf32>
    %cst_64 = arith.constant 0.000000e+00 : f32
    %101 = vector.broadcast %cst_64 : f32 to vector<64x16xf32>
    %102 = arith.cmpf oge, %100, %101 : vector<64x16xf32>
    %cst_65 = arith.constant 3.000000e-01 : f32
    %103 = vector.broadcast %cst_65 : f32 to vector<64x16xf32>
    %104 = arith.mulf %100, %103 : vector<64x16xf32>
    %105 = arith.select %102, %100, %104 : vector<64x16xi1>, vector<64x16xf32>
    %c0_66 = arith.constant 0 : index
    %c0_67 = arith.constant 0 : index
    %106 = vector.load %arg9[%c0_66, %c0_67] : memref<64x16xf32, #tpu.memory_space<vmem>>, vector<16x16xf32>
    %cst_68 = arith.constant dense<0.000000e+00> : vector<64x16xf32>
    %107 = tpu.matmul %105, %106, %cst_68 {dimension_numbers = #tpu.dot_dimension_numbers<[1], [0], [0], [1], [0, 0, 1, 1], [], []>} : vector<64x16xf32>, vector<16x16xf32>, vector<64x16xf32> -> vector<64x16xf32>
    %108 = arith.addf %48, %107 : vector<64x16xf32>
    %cst_69 = arith.constant 0.000000e+00 : f32
    %109 = vector.broadcast %cst_69 : f32 to vector<64x16xf32>
    %110 = vector.broadcast %42 : vector<1x16xf32> to vector<64x16xf32>
    %111 = arith.addf %109, %110 : vector<64x16xf32>
    %c5_i32_70 = arith.constant 5 : i32
    %112 = arith.addi %47, %c5_i32_70 : i32
    %c0_i32_71 = arith.constant 0 : i32
    %113 = arith.addi %112, %c0_i32_71 : i32
    %114 = arith.index_cast %113 : i32 to index
    %c0_72 = arith.constant 0 : index
    %115 = vector.load %arg12[%114, %c0_72] : memref<80x16xf32, #tpu.memory_space<vmem>>, vector<64x16xf32>
    %116 = vector.broadcast %14 : vector<1x16xf32> to vector<64x16xf32>
    %117 = arith.mulf %115, %116 : vector<64x16xf32>
    %118 = arith.addf %111, %117 : vector<64x16xf32>
    %c5_i32_73 = arith.constant 5 : i32
    %119 = arith.addi %47, %c5_i32_73 : i32
    %c1_i32_74 = arith.constant 1 : i32
    %120 = arith.addi %119, %c1_i32_74 : i32
    %121 = arith.index_cast %120 : i32 to index
    %c0_75 = arith.constant 0 : index
    %122 = vector.load %arg12[%121, %c0_75] : memref<80x16xf32, #tpu.memory_space<vmem>>, vector<64x16xf32>
    %123 = vector.broadcast %18 : vector<1x16xf32> to vector<64x16xf32>
    %124 = arith.mulf %122, %123 : vector<64x16xf32>
    %125 = arith.addf %118, %124 : vector<64x16xf32>
    %c5_i32_76 = arith.constant 5 : i32
    %126 = arith.addi %47, %c5_i32_76 : i32
    %c2_i32_77 = arith.constant 2 : i32
    %127 = arith.addi %126, %c2_i32_77 : i32
    %128 = arith.index_cast %127 : i32 to index
    %c0_78 = arith.constant 0 : index
    %129 = vector.load %arg12[%128, %c0_78] : memref<80x16xf32, #tpu.memory_space<vmem>>, vector<64x16xf32>
    %130 = vector.broadcast %22 : vector<1x16xf32> to vector<64x16xf32>
    %131 = arith.mulf %129, %130 : vector<64x16xf32>
    %132 = arith.addf %125, %131 : vector<64x16xf32>
    %c5_i32_79 = arith.constant 5 : i32
    %133 = arith.addi %47, %c5_i32_79 : i32
    %c3_i32_80 = arith.constant 3 : i32
    %134 = arith.addi %133, %c3_i32_80 : i32
    %135 = arith.index_cast %134 : i32 to index
    %c0_81 = arith.constant 0 : index
    %136 = vector.load %arg12[%135, %c0_81] : memref<80x16xf32, #tpu.memory_space<vmem>>, vector<64x16xf32>
    %137 = vector.broadcast %26 : vector<1x16xf32> to vector<64x16xf32>
    %138 = arith.mulf %136, %137 : vector<64x16xf32>
    %139 = arith.addf %132, %138 : vector<64x16xf32>
    %c5_i32_82 = arith.constant 5 : i32
    %140 = arith.addi %47, %c5_i32_82 : i32
    %c4_i32_83 = arith.constant 4 : i32
    %141 = arith.addi %140, %c4_i32_83 : i32
    %142 = arith.index_cast %141 : i32 to index
    %c0_84 = arith.constant 0 : index
    %143 = vector.load %arg12[%142, %c0_84] : memref<80x16xf32, #tpu.memory_space<vmem>>, vector<64x16xf32>
    %144 = vector.broadcast %30 : vector<1x16xf32> to vector<64x16xf32>
    %145 = arith.mulf %143, %144 : vector<64x16xf32>
    %146 = arith.addf %139, %145 : vector<64x16xf32>
    %c5_i32_85 = arith.constant 5 : i32
    %147 = arith.addi %47, %c5_i32_85 : i32
    %c5_i32_86 = arith.constant 5 : i32
    %148 = arith.addi %147, %c5_i32_86 : i32
    %149 = arith.index_cast %148 : i32 to index
    %c0_87 = arith.constant 0 : index
    %150 = vector.load %arg12[%149, %c0_87] : memref<80x16xf32, #tpu.memory_space<vmem>>, vector<64x16xf32>
    %151 = vector.broadcast %34 : vector<1x16xf32> to vector<64x16xf32>
    %152 = arith.mulf %150, %151 : vector<64x16xf32>
    %153 = arith.addf %146, %152 : vector<64x16xf32>
    %c5_i32_88 = arith.constant 5 : i32
    %154 = arith.addi %47, %c5_i32_88 : i32
    %c6_i32_89 = arith.constant 6 : i32
    %155 = arith.addi %154, %c6_i32_89 : i32
    %156 = arith.index_cast %155 : i32 to index
    %c0_90 = arith.constant 0 : index
    %157 = vector.load %arg12[%156, %c0_90] : memref<80x16xf32, #tpu.memory_space<vmem>>, vector<64x16xf32>
    %158 = vector.broadcast %38 : vector<1x16xf32> to vector<64x16xf32>
    %159 = arith.mulf %157, %158 : vector<64x16xf32>
    %160 = arith.addf %153, %159 : vector<64x16xf32>
    %cst_91 = arith.constant 0.000000e+00 : f32
    %161 = vector.broadcast %cst_91 : f32 to vector<64x16xf32>
    %162 = arith.cmpf oge, %160, %161 : vector<64x16xf32>
    %cst_92 = arith.constant 3.000000e-01 : f32
    %163 = vector.broadcast %cst_92 : f32 to vector<64x16xf32>
    %164 = arith.mulf %160, %163 : vector<64x16xf32>
    %165 = arith.select %162, %160, %164 : vector<64x16xi1>, vector<64x16xf32>
    %c16_93 = arith.constant 16 : index
    %c0_94 = arith.constant 0 : index
    %166 = vector.load %arg9[%c16_93, %c0_94] : memref<64x16xf32, #tpu.memory_space<vmem>>, vector<16x16xf32>
    %cst_95 = arith.constant dense<0.000000e+00> : vector<64x16xf32>
    %167 = tpu.matmul %165, %166, %cst_95 {dimension_numbers = #tpu.dot_dimension_numbers<[1], [0], [0], [1], [0, 0, 1, 1], [], []>} : vector<64x16xf32>, vector<16x16xf32>, vector<64x16xf32> -> vector<64x16xf32>
    %168 = arith.addf %108, %167 : vector<64x16xf32>
    %cst_96 = arith.constant 0.000000e+00 : f32
    %169 = vector.broadcast %cst_96 : f32 to vector<64x16xf32>
    %170 = vector.broadcast %43 : vector<1x16xf32> to vector<64x16xf32>
    %171 = arith.addf %169, %170 : vector<64x16xf32>
    %c5_i32_97 = arith.constant 5 : i32
    %172 = arith.addi %47, %c5_i32_97 : i32
    %c0_i32_98 = arith.constant 0 : i32
    %173 = arith.addi %172, %c0_i32_98 : i32
    %174 = arith.index_cast %173 : i32 to index
    %c0_99 = arith.constant 0 : index
    %175 = vector.load %arg12[%174, %c0_99] : memref<80x16xf32, #tpu.memory_space<vmem>>, vector<64x16xf32>
    %176 = vector.broadcast %15 : vector<1x16xf32> to vector<64x16xf32>
    %177 = arith.mulf %175, %176 : vector<64x16xf32>
    %178 = arith.addf %171, %177 : vector<64x16xf32>
    %c5_i32_100 = arith.constant 5 : i32
    %179 = arith.addi %47, %c5_i32_100 : i32
    %c1_i32_101 = arith.constant 1 : i32
    %180 = arith.addi %179, %c1_i32_101 : i32
    %181 = arith.index_cast %180 : i32 to index
    %c0_102 = arith.constant 0 : index
    %182 = vector.load %arg12[%181, %c0_102] : memref<80x16xf32, #tpu.memory_space<vmem>>, vector<64x16xf32>
    %183 = vector.broadcast %19 : vector<1x16xf32> to vector<64x16xf32>
    %184 = arith.mulf %182, %183 : vector<64x16xf32>
    %185 = arith.addf %178, %184 : vector<64x16xf32>
    %c5_i32_103 = arith.constant 5 : i32
    %186 = arith.addi %47, %c5_i32_103 : i32
    %c2_i32_104 = arith.constant 2 : i32
    %187 = arith.addi %186, %c2_i32_104 : i32
    %188 = arith.index_cast %187 : i32 to index
    %c0_105 = arith.constant 0 : index
    %189 = vector.load %arg12[%188, %c0_105] : memref<80x16xf32, #tpu.memory_space<vmem>>, vector<64x16xf32>
    %190 = vector.broadcast %23 : vector<1x16xf32> to vector<64x16xf32>
    %191 = arith.mulf %189, %190 : vector<64x16xf32>
    %192 = arith.addf %185, %191 : vector<64x16xf32>
    %c5_i32_106 = arith.constant 5 : i32
    %193 = arith.addi %47, %c5_i32_106 : i32
    %c3_i32_107 = arith.constant 3 : i32
    %194 = arith.addi %193, %c3_i32_107 : i32
    %195 = arith.index_cast %194 : i32 to index
    %c0_108 = arith.constant 0 : index
    %196 = vector.load %arg12[%195, %c0_108] : memref<80x16xf32, #tpu.memory_space<vmem>>, vector<64x16xf32>
    %197 = vector.broadcast %27 : vector<1x16xf32> to vector<64x16xf32>
    %198 = arith.mulf %196, %197 : vector<64x16xf32>
    %199 = arith.addf %192, %198 : vector<64x16xf32>
    %c5_i32_109 = arith.constant 5 : i32
    %200 = arith.addi %47, %c5_i32_109 : i32
    %c4_i32_110 = arith.constant 4 : i32
    %201 = arith.addi %200, %c4_i32_110 : i32
    %202 = arith.index_cast %201 : i32 to index
    %c0_111 = arith.constant 0 : index
    %203 = vector.load %arg12[%202, %c0_111] : memref<80x16xf32, #tpu.memory_space<vmem>>, vector<64x16xf32>
    %204 = vector.broadcast %31 : vector<1x16xf32> to vector<64x16xf32>
    %205 = arith.mulf %203, %204 : vector<64x16xf32>
    %206 = arith.addf %199, %205 : vector<64x16xf32>
    %c5_i32_112 = arith.constant 5 : i32
    %207 = arith.addi %47, %c5_i32_112 : i32
    %c5_i32_113 = arith.constant 5 : i32
    %208 = arith.addi %207, %c5_i32_113 : i32
    %209 = arith.index_cast %208 : i32 to index
    %c0_114 = arith.constant 0 : index
    %210 = vector.load %arg12[%209, %c0_114] : memref<80x16xf32, #tpu.memory_space<vmem>>, vector<64x16xf32>
    %211 = vector.broadcast %35 : vector<1x16xf32> to vector<64x16xf32>
    %212 = arith.mulf %210, %211 : vector<64x16xf32>
    %213 = arith.addf %206, %212 : vector<64x16xf32>
    %c5_i32_115 = arith.constant 5 : i32
    %214 = arith.addi %47, %c5_i32_115 : i32
    %c6_i32_116 = arith.constant 6 : i32
    %215 = arith.addi %214, %c6_i32_116 : i32
    %216 = arith.index_cast %215 : i32 to index
    %c0_117 = arith.constant 0 : index
    %217 = vector.load %arg12[%216, %c0_117] : memref<80x16xf32, #tpu.memory_space<vmem>>, vector<64x16xf32>
    %218 = vector.broadcast %39 : vector<1x16xf32> to vector<64x16xf32>
    %219 = arith.mulf %217, %218 : vector<64x16xf32>
    %220 = arith.addf %213, %219 : vector<64x16xf32>
    %cst_118 = arith.constant 0.000000e+00 : f32
    %221 = vector.broadcast %cst_118 : f32 to vector<64x16xf32>
    %222 = arith.cmpf oge, %220, %221 : vector<64x16xf32>
    %cst_119 = arith.constant 3.000000e-01 : f32
    %223 = vector.broadcast %cst_119 : f32 to vector<64x16xf32>
    %224 = arith.mulf %220, %223 : vector<64x16xf32>
    %225 = arith.select %222, %220, %224 : vector<64x16xi1>, vector<64x16xf32>
    %c32 = arith.constant 32 : index
    %c0_120 = arith.constant 0 : index
    %226 = vector.load %arg9[%c32, %c0_120] : memref<64x16xf32, #tpu.memory_space<vmem>>, vector<16x16xf32>
    %cst_121 = arith.constant dense<0.000000e+00> : vector<64x16xf32>
    %227 = tpu.matmul %225, %226, %cst_121 {dimension_numbers = #tpu.dot_dimension_numbers<[1], [0], [0], [1], [0, 0, 1, 1], [], []>} : vector<64x16xf32>, vector<16x16xf32>, vector<64x16xf32> -> vector<64x16xf32>
    %228 = arith.addf %168, %227 : vector<64x16xf32>
    %cst_122 = arith.constant 0.000000e+00 : f32
    %229 = vector.broadcast %cst_122 : f32 to vector<64x16xf32>
    %230 = vector.broadcast %44 : vector<1x16xf32> to vector<64x16xf32>
    %231 = arith.addf %229, %230 : vector<64x16xf32>
    %c5_i32_123 = arith.constant 5 : i32
    %232 = arith.addi %47, %c5_i32_123 : i32
    %c0_i32_124 = arith.constant 0 : i32
    %233 = arith.addi %232, %c0_i32_124 : i32
    %234 = arith.index_cast %233 : i32 to index
    %c0_125 = arith.constant 0 : index
    %235 = vector.load %arg12[%234, %c0_125] : memref<80x16xf32, #tpu.memory_space<vmem>>, vector<64x16xf32>
    %236 = vector.broadcast %16 : vector<1x16xf32> to vector<64x16xf32>
    %237 = arith.mulf %235, %236 : vector<64x16xf32>
    %238 = arith.addf %231, %237 : vector<64x16xf32>
    %c5_i32_126 = arith.constant 5 : i32
    %239 = arith.addi %47, %c5_i32_126 : i32
    %c1_i32_127 = arith.constant 1 : i32
    %240 = arith.addi %239, %c1_i32_127 : i32
    %241 = arith.index_cast %240 : i32 to index
    %c0_128 = arith.constant 0 : index
    %242 = vector.load %arg12[%241, %c0_128] : memref<80x16xf32, #tpu.memory_space<vmem>>, vector<64x16xf32>
    %243 = vector.broadcast %20 : vector<1x16xf32> to vector<64x16xf32>
    %244 = arith.mulf %242, %243 : vector<64x16xf32>
    %245 = arith.addf %238, %244 : vector<64x16xf32>
    %c5_i32_129 = arith.constant 5 : i32
    %246 = arith.addi %47, %c5_i32_129 : i32
    %c2_i32_130 = arith.constant 2 : i32
    %247 = arith.addi %246, %c2_i32_130 : i32
    %248 = arith.index_cast %247 : i32 to index
    %c0_131 = arith.constant 0 : index
    %249 = vector.load %arg12[%248, %c0_131] : memref<80x16xf32, #tpu.memory_space<vmem>>, vector<64x16xf32>
    %250 = vector.broadcast %24 : vector<1x16xf32> to vector<64x16xf32>
    %251 = arith.mulf %249, %250 : vector<64x16xf32>
    %252 = arith.addf %245, %251 : vector<64x16xf32>
    %c5_i32_132 = arith.constant 5 : i32
    %253 = arith.addi %47, %c5_i32_132 : i32
    %c3_i32_133 = arith.constant 3 : i32
    %254 = arith.addi %253, %c3_i32_133 : i32
    %255 = arith.index_cast %254 : i32 to index
    %c0_134 = arith.constant 0 : index
    %256 = vector.load %arg12[%255, %c0_134] : memref<80x16xf32, #tpu.memory_space<vmem>>, vector<64x16xf32>
    %257 = vector.broadcast %28 : vector<1x16xf32> to vector<64x16xf32>
    %258 = arith.mulf %256, %257 : vector<64x16xf32>
    %259 = arith.addf %252, %258 : vector<64x16xf32>
    %c5_i32_135 = arith.constant 5 : i32
    %260 = arith.addi %47, %c5_i32_135 : i32
    %c4_i32_136 = arith.constant 4 : i32
    %261 = arith.addi %260, %c4_i32_136 : i32
    %262 = arith.index_cast %261 : i32 to index
    %c0_137 = arith.constant 0 : index
    %263 = vector.load %arg12[%262, %c0_137] : memref<80x16xf32, #tpu.memory_space<vmem>>, vector<64x16xf32>
    %264 = vector.broadcast %32 : vector<1x16xf32> to vector<64x16xf32>
    %265 = arith.mulf %263, %264 : vector<64x16xf32>
    %266 = arith.addf %259, %265 : vector<64x16xf32>
    %c5_i32_138 = arith.constant 5 : i32
    %267 = arith.addi %47, %c5_i32_138 : i32
    %c5_i32_139 = arith.constant 5 : i32
    %268 = arith.addi %267, %c5_i32_139 : i32
    %269 = arith.index_cast %268 : i32 to index
    %c0_140 = arith.constant 0 : index
    %270 = vector.load %arg12[%269, %c0_140] : memref<80x16xf32, #tpu.memory_space<vmem>>, vector<64x16xf32>
    %271 = vector.broadcast %36 : vector<1x16xf32> to vector<64x16xf32>
    %272 = arith.mulf %270, %271 : vector<64x16xf32>
    %273 = arith.addf %266, %272 : vector<64x16xf32>
    %c5_i32_141 = arith.constant 5 : i32
    %274 = arith.addi %47, %c5_i32_141 : i32
    %c6_i32_142 = arith.constant 6 : i32
    %275 = arith.addi %274, %c6_i32_142 : i32
    %276 = arith.index_cast %275 : i32 to index
    %c0_143 = arith.constant 0 : index
    %277 = vector.load %arg12[%276, %c0_143] : memref<80x16xf32, #tpu.memory_space<vmem>>, vector<64x16xf32>
    %278 = vector.broadcast %40 : vector<1x16xf32> to vector<64x16xf32>
    %279 = arith.mulf %277, %278 : vector<64x16xf32>
    %280 = arith.addf %273, %279 : vector<64x16xf32>
    %cst_144 = arith.constant 0.000000e+00 : f32
    %281 = vector.broadcast %cst_144 : f32 to vector<64x16xf32>
    %282 = arith.cmpf oge, %280, %281 : vector<64x16xf32>
    %cst_145 = arith.constant 3.000000e-01 : f32
    %283 = vector.broadcast %cst_145 : f32 to vector<64x16xf32>
    %284 = arith.mulf %280, %283 : vector<64x16xf32>
    %285 = arith.select %282, %280, %284 : vector<64x16xi1>, vector<64x16xf32>
    %c48 = arith.constant 48 : index
    %c0_146 = arith.constant 0 : index
    %286 = vector.load %arg9[%c48, %c0_146] : memref<64x16xf32, #tpu.memory_space<vmem>>, vector<16x16xf32>
    %cst_147 = arith.constant dense<0.000000e+00> : vector<64x16xf32>
    %287 = tpu.matmul %285, %286, %cst_147 {dimension_numbers = #tpu.dot_dimension_numbers<[1], [0], [0], [1], [0, 0, 1, 1], [], []>} : vector<64x16xf32>, vector<16x16xf32>, vector<64x16xf32> -> vector<64x16xf32>
    %288 = arith.addf %228, %287 : vector<64x16xf32>
    %289 = vector.broadcast %45 : vector<1x16xf32> to vector<64x16xf32>
    %290 = arith.addf %288, %289 : vector<64x16xf32>
    %c0_148 = arith.constant 0 : index
    %291 = arith.index_cast %47 : i32 to index
    %c0_149 = arith.constant 0 : index
    %292 = vector.load %arg11[%c0_148, %291, %c0_149] : memref<1x64x16xf32, #tpu.memory_space<vmem>>, vector<1x64x16xf32>
    %293 = vector.shape_cast %292 : vector<1x64x16xf32> to vector<64x16xf32>
    %294 = vector.shape_cast %290 : vector<64x16xf32> to vector<1x64x16xf32>
    tpu.vector_store %arg11[%c0_148, %291, %c0_149], %294 {strides = array<i32>} : memref<1x64x16xf32, #tpu.memory_space<vmem>>, vector<1x64x16xf32>,
    %c1_i32_150 = arith.constant 1 : i32
    return
  }
  func.func @transform_0(%arg0: i32, %arg1: i32) -> (i32, i32, i32) {
    %c0_i32 = arith.constant 0 : i32
    %c0_i32_0 = arith.constant 0 : i32
    return %arg0, %arg1, %c0_i32 : i32, i32, i32
  }
  func.func @transform_1(%arg0: i32, %arg1: i32) -> (i32, i32, i32) {
    %c8_i32 = arith.constant 8 : i32
    %0 = arith.muli %arg1, %c8_i32 : i32
    %c1_i32 = arith.constant 1 : i32
    %1 = arith.subi %0, %c1_i32 : i32
    %c0_i32 = arith.constant 0 : i32
    %2 = arith.maxsi %1, %c0_i32 : i32
    %c0_i32_0 = arith.constant 0 : i32
    %c0_i32_1 = arith.constant 0 : i32
    return %arg0, %2, %c0_i32_0 : i32, i32, i32
  }
  func.func @transform_2(%arg0: i32, %arg1: i32) -> (i32, i32, i32) {
    %c1_i32 = arith.constant 1 : i32
    %0 = arith.addi %arg1, %c1_i32 : i32
    %c8_i32 = arith.constant 8 : i32
    %1 = arith.muli %0, %c8_i32 : i32
    %c7_i32 = arith.constant 7 : i32
    %2 = arith.minsi %1, %c7_i32 : i32
    %c0_i32 = arith.constant 0 : i32
    %c0_i32_0 = arith.constant 0 : i32
    return %arg0, %2, %c0_i32 : i32, i32, i32
  }
  func.func @transform_3(%arg0: i32, %arg1: i32) -> (i32, i32) {
    %c0_i32 = arith.constant 0 : i32
    %c0_i32_0 = arith.constant 0 : i32
    %c0_i32_1 = arith.constant 0 : i32
    return %c0_i32, %c0_i32_0 : i32, i32
  }
  func.func @transform_4(%arg0: i32, %arg1: i32) -> (i32, i32) {
    %c0_i32 = arith.constant 0 : i32
    %c0_i32_0 = arith.constant 0 : i32
    %c0_i32_1 = arith.constant 0 : i32
    return %c0_i32, %c0_i32_0 : i32, i32
  }
  func.func @transform_5(%arg0: i32, %arg1: i32) -> (i32, i32) {
    %c0_i32 = arith.constant 0 : i32
    %c0_i32_0 = arith.constant 0 : i32
    %c0_i32_1 = arith.constant 0 : i32
    return %c0_i32, %c0_i32_0 : i32, i32
  }
  func.func @transform_6(%arg0: i32, %arg1: i32) -> (i32, i32) {
    %c0_i32 = arith.constant 0 : i32
    %c0_i32_0 = arith.constant 0 : i32
    %c0_i32_1 = arith.constant 0 : i32
    return %c0_i32, %c0_i32_0 : i32, i32
  }
  func.func @transform_7(%arg0: i32, %arg1: i32) -> (i32, i32) {
    %c0_i32 = arith.constant 0 : i32
    %c0_i32_0 = arith.constant 0 : i32
    %c0_i32_1 = arith.constant 0 : i32
    return %c0_i32, %c0_i32_0 : i32, i32
  }
  func.func @transform_8(%arg0: i32, %arg1: i32) -> (i32, i32) {
    %c0_i32 = arith.constant 0 : i32
    %c0_i32_0 = arith.constant 0 : i32
    %c0_i32_1 = arith.constant 0 : i32
    return %c0_i32, %c0_i32_0 : i32, i32
  }
  func.func @transform_9(%arg0: i32, %arg1: i32) -> (i32, i32, i32) {
    %c0_i32 = arith.constant 0 : i32
    %c0_i32_0 = arith.constant 0 : i32
    return %arg0, %arg1, %c0_i32 : i32, i32, i32
  }
}

</mosaic_0001>

<llo_original>
// kernel: tpu_custom_call.1
$region0: #{tpu_custom_call.1}
  #allocation0 [shape = 'u32[]', space=smem, size = 0x4, offset = 0x4, fixed_abs, tag = 'smem constant byte address 0x4 - core index']
  #allocation1 [shape = 'u32[72,128]{1,0:T(1,128)}', space=vmem, size = 0x9000, scoped, tag = 'internal scratch']
  #allocation2 [shape = 'f32[80,16]{1,0:T(8,128)}', space=vmem, size = 0xa000, scoped, tag = 'scratch operand']
  #allocation3 [shape = 'f32[64,64]{1,0:T(8,128)}', space=vmem, size = 0x8000, scoped, tag = 'scratch operand']
  %s0 = inlined_call_operand.vmem [shape: f32[2,64,16], index: 0, kind: input, shape index: {}]
  %s1 = inlined_call_operand.vmem [shape: f32[2,64,16], index: 1, kind: input, shape index: {}]
  %s2 = inlined_call_operand.vmem [shape: f32[2,64,16], index: 2, kind: input, shape index: {}]
  %s3 = inlined_call_operand.vmem [shape: f32[1,16], index: 3, kind: input, shape index: {}]
  %s4 = inlined_call_operand.vmem [shape: f32[1,16], index: 4, kind: input, shape index: {}]
  %s5 = inlined_call_operand.vmem [shape: f32[28,16], index: 5, kind: input, shape index: {}]
  %s6 = inlined_call_operand.vmem [shape: f32[4,16], index: 6, kind: input, shape index: {}]
  %s7 = inlined_call_operand.vmem [shape: f32[64,16], index: 7, kind: input, shape index: {}]
  %s8 = inlined_call_operand.vmem [shape: f32[1,16], index: 8, kind: input, shape index: {}]
  %s9 = inlined_call_operand.vmem [shape: f32[2,64,16], index: 9, kind: output, shape index: {}]
  %s10 = sld [smem:[#allocation0]]
  $region77: #{tpu_custom_call.1} parent=0
    _
  %s12 = ssub.s32 1, %s10
  %s13 = scalar_select 0, %s12, %s10
  loop: start=0, step=1, limit=4
  $region2: #{tpu_custom_call.1} parent=0 // loop_pre_header
    _
  $region3: #{tpu_custom_call.1} parent=0 // loop_header
    %s15 = sphi 0, %s19
    %p16 = scmp.ge.s32.totalorder %s15, 4
    %s22 = sphi 0, %s34
    %s23 = sphi 0, %s30
    %s24 = sphi 0, %s22
    %s25 = sphi 0, %s23
    %s26 = sphi 0, %s24
    %s27 = sphi 0, %s25
    %s39 = sphi 0, %s41
    %s42 = sphi 0, %s39
    %s43 = sphi 0, %s42
    %s59 = sphi 0, %s43
    %s75 = sphi 0, %s77
    %s78 = sphi 0, %s75
    %s79 = sphi 0, %s78
    %s95 = sphi 0, %s79
    %s111 = sphi 0, %s113
    %s114 = sphi 0, %s111
    %s115 = sphi 0, %s114
    %s131 = sphi 0, %s115
    %s135 = sphi 0, %s135
    %s137 = sphi 0, %s135
    %s138 = sphi 0, %s137
    %s152 = sphi 0, %s138
    %s156 = sphi 0, %s156
    %s158 = sphi 0, %s156
    %s159 = sphi 0, %s158
    %s173 = sphi 0, %s159
    %s177 = sphi 0, %s177
    %s179 = sphi 0, %s177
    %s180 = sphi 0, %s179
    %s194 = sphi 0, %s180
    %s198 = sphi 0, %s198
    %s200 = sphi 0, %s198
    %s201 = sphi 0, %s200
    %s215 = sphi 0, %s201
    %s219 = sphi 0, %s219
    %s221 = sphi 0, %s219
    %s222 = sphi 0, %s221
    %s236 = sphi 0, %s222
    %s240 = sphi 0, %s240
    %s242 = sphi 0, %s240
    %s243 = sphi 0, %s242
    %s257 = sphi 0, %s243
    %s265 = sphi 0, %s267
    %s268 = sphi 0, %s265
    %s269 = sphi 0, %s268
    %s285 = sphi 0, %s269
  $region4: #{tpu_custom_call.1} parent=0 // loop_header_branch
    %18 = sbr.rel (%p16) target = $region8
  $region5: #{tpu_custom_call.1} parent=0 // loop_body
    %s20 = ssub.s32 %s15, 1
    %s21 = ssub.s32 %s15, 2
    %s28 = sadd.s32 1, %s23
    %p29 = scmp.ge.s32.totalorder %s28, 1
    %s30 = scalar_select %p29, 0, %s28
    %s31 = sadd.s32 1, %s22
    %s32 = scalar_select %p29, %s31, %s22
    %p33 = scmp.ge.s32.totalorder %s32, 2
    %s34 = scalar_select %p33, 0, %s32
    %s35 = ssub.s32 %s22, %s34
    %s36 = ssub.s32 %s23, %s30
    %s37 = sor.u32 %s35, %s36
    %p38 = scmp.eq.s32.totalorder %s37, 0
    %s40 = sadd.s32 %s39, 1
    %s41 = scalar_select %p38, %s39, %s40
    %p44 = pneg %p38
    %p45 = scmp.eq.s32.totalorder %s15, 1
    %p46 = por %p44, %p45
    %p47 = scmp.ne.s32.totalorder %s39, %s42
    %p48 = scmp.eq.s32.totalorder %s15, 0
    %p49 = por %p47, %p48
    %p50 = scmp.ne.s32.totalorder %s39, %s42
    %p51 = scmp.eq.s32.totalorder %s20, 1
    %p52 = por %p50, %p51
    %p53 = scmp.ne.s32.totalorder %s42, %s43
    %p54 = scmp.eq.s32.totalorder %s20, 0
    %p55 = por %p53, %p54
    %p56 = scmp.ne.s32.totalorder %s42, %s43
    %p57 = scmp.eq.s32.totalorder %s21, 1
    %p58 = por %p56, %p57
    %p60 = scmp.ne.s32.totalorder %s43, %s59
    %p61 = scmp.eq.s32.totalorder %s21, 0
    %p62 = por %p60, %p61
    %s63 = smul.u32 %s23, 8
    %s64 = ssub.s32 %s63, 1
    %p65 = scmp.gt.s32.totalorder %s64, 0
    %s66 = scalar_select %p65, %s64, 0
    %s67 = smul.u32 %s30, 8
    %s68 = ssub.s32 %s67, 1
    %p69 = scmp.gt.s32.totalorder %s68, 0
    %s70 = scalar_select %p69, %s68, 0
    %s71 = ssub.s32 %s22, %s34
    %s72 = ssub.s32 %s66, %s70
    %s73 = sor.u32 %s71, %s72
    %p74 = scmp.eq.s32.totalorder %s73, 0
    %s76 = sadd.s32 %s75, 1
    %s77 = scalar_select %p74, %s75, %s76
    %p80 = pneg %p74
    %p81 = scmp.eq.s32.totalorder %s15, 1
    %p82 = por %p80, %p81
    %p83 = scmp.ne.s32.totalorder %s75, %s78
    %p84 = scmp.eq.s32.totalorder %s15, 0
    %p85 = por %p83, %p84
    %p86 = scmp.ne.s32.totalorder %s75, %s78
    %p87 = scmp.eq.s32.totalorder %s20, 1
    %p88 = por %p86, %p87
    %p89 = scmp.ne.s32.totalorder %s78, %s79
    %p90 = scmp.eq.s32.totalorder %s20, 0
    %p91 = por %p89, %p90
    %p92 = scmp.ne.s32.totalorder %s78, %s79
    %p93 = scmp.eq.s32.totalorder %s21, 1
    %p94 = por %p92, %p93
    %p96 = scmp.ne.s32.totalorder %s79, %s95
    %p97 = scmp.eq.s32.totalorder %s21, 0
    %p98 = por %p96, %p97
    %s99 = sadd.s32 %s23, 1
    %s100 = smul.u32 %s99, 8
    %p101 = scmp.lt.s32.totalorder %s100, 7
    %s102 = scalar_select %p101, %s100, 7
    %s103 = sadd.s32 %s30, 1
    %s104 = smul.u32 %s103, 8
    %p105 = scmp.lt.s32.totalorder %s104, 7
    %s106 = scalar_select %p105, %s104, 7
    %s107 = ssub.s32 %s22, %s34
    %s108 = ssub.s32 %s102, %s106
    %s109 = sor.u32 %s107, %s108
    %p110 = scmp.eq.s32.totalorder %s109, 0
    %s112 = sadd.s32 %s111, 1
    %s113 = scalar_select %p110, %s111, %s112
    %p116 = pneg %p110
    %p117 = scmp.eq.s32.totalorder %s15, 1
    %p118 = por %p116, %p117
    %p119 = scmp.ne.s32.totalorder %s111, %s114
    %p120 = scmp.eq.s32.totalorder %s15, 0
    %p121 = por %p119, %p120
    %p122 = scmp.ne.s32.totalorder %s111, %s114
    %p123 = scmp.eq.s32.totalorder %s20, 1
    %p124 = por %p122, %p123
    %p125 = scmp.ne.s32.totalorder %s114, %s115
    %p126 = scmp.eq.s32.totalorder %s20, 0
    %p127 = por %p125, %p126
    %p128 = scmp.ne.s32.totalorder %s114, %s115
    %p129 = scmp.eq.s32.totalorder %s21, 1
    %p130 = por %p128, %p129
    %p132 = scmp.ne.s32.totalorder %s115, %s131
    %p133 = scmp.eq.s32.totalorder %s21, 0
    %p134 = por %p132, %p133
    %s136 = sadd.s32 %s135, 1
    %p139 = scmp.eq.s32.totalorder %s15, 1
    %p140 = scmp.ne.s32.totalorder %s135, %s137
    %p141 = scmp.eq.s32.totalorder %s15, 0
    %p142 = por %p140, %p141
    %p143 = scmp.ne.s32.totalorder %s135, %s137
    %p144 = scmp.eq.s32.totalorder %s20, 1
    %p145 = por %p143, %p144
    %p146 = scmp.ne.s32.totalorder %s137, %s138
    %p147 = scmp.eq.s32.totalorder %s20, 0
    %p148 = por %p146, %p147
    %p149 = scmp.ne.s32.totalorder %s137, %s138
    %p150 = scmp.eq.s32.totalorder %s21, 1
    %p151 = por %p149, %p150
    %p153 = scmp.ne.s32.totalorder %s138, %s152
    %p154 = scmp.eq.s32.totalorder %s21, 0
    %p155 = por %p153, %p154
    %s157 = sadd.s32 %s156, 1
    %p160 = scmp.eq.s32.totalorder %s15, 1
    %p161 = scmp.ne.s32.totalorder %s156, %s158
    %p162 = scmp.eq.s32.totalorder %s15, 0
    %p163 = por %p161, %p162
    %p164 = scmp.ne.s32.totalorder %s156, %s158
    %p165 = scmp.eq.s32.totalorder %s20, 1
    %p166 = por %p164, %p165
    %p167 = scmp.ne.s32.totalorder %s158, %s159
    %p168 = scmp.eq.s32.totalorder %s20, 0
    %p169 = por %p167, %p168
    %p170 = scmp.ne.s32.totalorder %s158, %s159
    %p171 = scmp.eq.s32.totalorder %s21, 1
    %p172 = por %p170, %p171
    %p174 = scmp.ne.s32.totalorder %s159, %s173
    %p175 = scmp.eq.s32.totalorder %s21, 0
    %p176 = por %p174, %p175
    %s178 = sadd.s32 %s177, 1
    %p181 = scmp.eq.s32.totalorder %s15, 1
    %p182 = scmp.ne.s32.totalorder %s177, %s179
    %p183 = scmp.eq.s32.totalorder %s15, 0
    %p184 = por %p182, %p183
    %p185 = scmp.ne.s32.totalorder %s177, %s179
    %p186 = scmp.eq.s32.totalorder %s20, 1
    %p187 = por %p185, %p186
    %p188 = scmp.ne.s32.totalorder %s179, %s180
    %p189 = scmp.eq.s32.totalorder %s20, 0
    %p190 = por %p188, %p189
    %p191 = scmp.ne.s32.totalorder %s179, %s180
    %p192 = scmp.eq.s32.totalorder %s21, 1
    %p193 = por %p191, %p192
    %p195 = scmp.ne.s32.totalorder %s180, %s194
    %p196 = scmp.eq.s32.totalorder %s21, 0
    %p197 = por %p195, %p196
    %s199 = sadd.s32 %s198, 1
    %p202 = scmp.eq.s32.totalorder %s15, 1
    %p203 = scmp.ne.s32.totalorder %s198, %s200
    %p204 = scmp.eq.s32.totalorder %s15, 0
    %p205 = por %p203, %p204
    %p206 = scmp.ne.s32.totalorder %s198, %s200
    %p207 = scmp.eq.s32.totalorder %s20, 1
    %p208 = por %p206, %p207
    %p209 = scmp.ne.s32.totalorder %s200, %s201
    %p210 = scmp.eq.s32.totalorder %s20, 0
    %p211 = por %p209, %p210
    %p212 = scmp.ne.s32.totalorder %s200, %s201
    %p213 = scmp.eq.s32.totalorder %s21, 1
    %p214 = por %p212, %p213
    %p216 = scmp.ne.s32.totalorder %s201, %s215
    %p217 = scmp.eq.s32.totalorder %s21, 0
    %p218 = por %p216, %p217
    %s220 = sadd.s32 %s219, 1
    %p223 = scmp.eq.s32.totalorder %s15, 1
    %p224 = scmp.ne.s32.totalorder %s219, %s221
    %p225 = scmp.eq.s32.totalorder %s15, 0
    %p226 = por %p224, %p225
    %p227 = scmp.ne.s32.totalorder %s219, %s221
    %p228 = scmp.eq.s32.totalorder %s20, 1
    %p229 = por %p227, %p228
    %p230 = scmp.ne.s32.totalorder %s221, %s222
    %p231 = scmp.eq.s32.totalorder %s20, 0
    %p232 = por %p230, %p231
    %p233 = scmp.ne.s32.totalorder %s221, %s222
    %p234 = scmp.eq.s32.totalorder %s21, 1
    %p235 = por %p233, %p234
    %p237 = scmp.ne.s32.totalorder %s222, %s236
    %p238 = scmp.eq.s32.totalorder %s21, 0
    %p239 = por %p237, %p238
    %s241 = sadd.s32 %s240, 1
    %p244 = scmp.eq.s32.totalorder %s15, 1
    %p245 = scmp.ne.s32.totalorder %s240, %s242
    %p246 = scmp.eq.s32.totalorder %s15, 0
    %p247 = por %p245, %p246
    %p248 = scmp.ne.s32.totalorder %s240, %s242
    %p249 = scmp.eq.s32.totalorder %s20, 1
    %p250 = por %p248, %p249
    %p251 = scmp.ne.s32.totalorder %s242, %s243
    %p252 = scmp.eq.s32.totalorder %s20, 0
    %p253 = por %p251, %p252
    %p254 = scmp.ne.s32.totalorder %s242, %s243
    %p255 = scmp.eq.s32.totalorder %s21, 1
    %p256 = por %p254, %p255
    %p258 = scmp.ne.s32.totalorder %s243, %s257
    %p259 = scmp.eq.s32.totalorder %s21, 0
    %p260 = por %p258, %p259
    %s261 = ssub.s32 %s22, %s34
    %s262 = ssub.s32 %s23, %s30
    %s263 = sor.u32 %s261, %s262
    %p264 = scmp.eq.s32.totalorder %s263, 0
    %s266 = sadd.s32 %s265, 1
    %s267 = scalar_select %p264, %s265, %s266
    %p270 = pneg %p264
    %p271 = scmp.eq.s32.totalorder %s15, 1
    %p272 = por %p270, %p271
    %p273 = scmp.ne.s32.totalorder %s265, %s268
    %p274 = scmp.eq.s32.totalorder %s15, 0
    %p275 = por %p273, %p274
    %p276 = scmp.ne.s32.totalorder %s265, %s268
    %p277 = scmp.eq.s32.totalorder %s20, 1
    %p278 = por %p276, %p277
    %p279 = scmp.ne.s32.totalorder %s268, %s269
    %p280 = scmp.eq.s32.totalorder %s20, 0
    %p281 = por %p279, %p280
    %p282 = scmp.ne.s32.totalorder %s268, %s269
    %p283 = scmp.eq.s32.totalorder %s21, 1
    %p284 = por %p282, %p283
    %p286 = scmp.ne.s32.totalorder %s269, %s285
    %p287 = scmp.eq.s32.totalorder %s21, 0
    %p288 = por %p286, %p287
    %p289 = scmp.le.s32.totalorder 1, %s15
    %p290 = scmp.lt.s32.totalorder %s15, 3
    %p291 = pnand %p289, %p290
    %p292 = pneg %p291
    // Predicated region
    $region9: #{tpu_custom_call.1} parent=5 // pred_check
      _
    $region10: #{tpu_custom_call.1} parent=5 // pred_check_branch
      %294 = sbr.rel (%p291) target = $region12
    $region11: #{tpu_custom_call.1} parent=5 // pred_region
      %s295 = ssub.s32 %s15, 1
      // Predicated region
      $region13: #{tpu_custom_call.1} parent=11 // pred_check
        %p296 = pneg %p148
      $region14: #{tpu_custom_call.1} parent=11 // pred_check_branch
        %298 = sbr.rel (%p296) target = $region16
      $region15: #{tpu_custom_call.1} parent=11 // pred_region
        _
      $region16: #{tpu_custom_call.1} parent=11 // pred_fallthru
        _
      // Predicated region
      $region17: #{tpu_custom_call.1} parent=11 // pred_check
        %p299 = pneg %p169
      $region18: #{tpu_custom_call.1} parent=11 // pred_check_branch
        %301 = sbr.rel (%p299) target = $region20
      $region19: #{tpu_custom_call.1} parent=11 // pred_region
        _
      $region20: #{tpu_custom_call.1} parent=11 // pred_fallthru
        _
      // Predicated region
      $region21: #{tpu_custom_call.1} parent=11 // pred_check
        %p302 = pneg %p190
      $region22: #{tpu_custom_call.1} parent=11 // pred_check_branch
        %304 = sbr.rel (%p302) target = $region24
      $region23: #{tpu_custom_call.1} parent=11 // pred_region
        _
      $region24: #{tpu_custom_call.1} parent=11 // pred_fallthru
        _
      // Predicated region
      $region25: #{tpu_custom_call.1} parent=11 // pred_check
        %p305 = pneg %p211
      $region26: #{tpu_custom_call.1} parent=11 // pred_check_branch
        %307 = sbr.rel (%p305) target = $region28
      $region27: #{tpu_custom_call.1} parent=11 // pred_region
        _
      $region28: #{tpu_custom_call.1} parent=11 // pred_fallthru
        _
      // Predicated region
      $region29: #{tpu_custom_call.1} parent=11 // pred_check
        %p308 = pneg %p232
      $region30: #{tpu_custom_call.1} parent=11 // pred_check_branch
        %310 = sbr.rel (%p308) target = $region32
      $region31: #{tpu_custom_call.1} parent=11 // pred_region
        _
      $region32: #{tpu_custom_call.1} parent=11 // pred_fallthru
        _
      // Predicated region
      $region33: #{tpu_custom_call.1} parent=11 // pred_check
        %p311 = pneg %p253
      $region34: #{tpu_custom_call.1} parent=11 // pred_check_branch
        %313 = sbr.rel (%p311) target = $region36
      $region35: #{tpu_custom_call.1} parent=11 // pred_region
        _
      $region36: #{tpu_custom_call.1} parent=11 // pred_fallthru
        _
    $region12: #{tpu_custom_call.1} parent=5 // pred_fallthru
      _
    %p314 = scmp.lt.s32.totalorder %s15, 2
    // Predicated region
    $region37: #{tpu_custom_call.1} parent=5 // pred_check
      %p315 = pneg %p314
    $region38: #{tpu_custom_call.1} parent=5 // pred_check_branch
      %317 = sbr.rel (%p315) target = $region40
    $region39: #{tpu_custom_call.1} parent=5 // pred_region
      // Predicated region
      $region41: #{tpu_custom_call.1} parent=39 // pred_check
        %p318 = pneg %p49
      $region42: #{tpu_custom_call.1} parent=39 // pred_check_branch
        %320 = sbr.rel (%p318) target = $region44
      $region43: #{tpu_custom_call.1} parent=39 // pred_region
        %s321 = smul.u32 8, %s23
        %p322 = scmp.lt.s32.totalorder %s22, 1
        %s323 = scalar_select %p322, %s22, 1
        %p324 = scmp.lt.s32.totalorder %s321, 7
        %s325 = scalar_select %p324, %s321, 7
        %s326 = smul.addr %s323, 8
        %s327 = sadd.s32 %s325, %s326
        %s328 = smul.addr %s327, 8
        %s329 = scalar_lea.vmem %s0, %s328
        %s330 = smul.u32 8, %s23
      $region44: #{tpu_custom_call.1} parent=39 // pred_fallthru
        _
      // Predicated region
      $region45: #{tpu_custom_call.1} parent=39 // pred_check
        %p331 = pneg %p85
      $region46: #{tpu_custom_call.1} parent=39 // pred_check_branch
        %333 = sbr.rel (%p331) target = $region48
      $region47: #{tpu_custom_call.1} parent=39 // pred_region
        %s334 = smul.u32 %s23, 8
        %s335 = ssub.s32 %s334, 1
        %p336 = scmp.gt.s32.totalorder %s335, 0
        %s337 = scalar_select %p336, %s335, 0
        %p338 = scmp.lt.s32.totalorder %s22, 1
        %s339 = scalar_select %p338, %s22, 1
        %p340 = scmp.lt.s32.totalorder %s337, 7
        %s341 = scalar_select %p340, %s337, 7
        %s342 = smul.addr %s339, 8
        %s343 = sadd.s32 %s341, %s342
        %s344 = smul.addr %s343, 8
        %s345 = scalar_lea.vmem %s1, %s344
        %s346 = smul.u32 %s23, 8
        %s347 = ssub.s32 %s346, 1
        %p348 = scmp.gt.s32.totalorder %s347, 0
        %s349 = scalar_select %p348, %s347, 0
      $region48: #{tpu_custom_call.1} parent=39 // pred_fallthru
        _
      // Predicated region
      $region49: #{tpu_custom_call.1} parent=39 // pred_check
        %p350 = pneg %p121
      $region50: #{tpu_custom_call.1} parent=39 // pred_check_branch
        %352 = sbr.rel (%p350) target = $region52
      $region51: #{tpu_custom_call.1} parent=39 // pred_region
        %s353 = sadd.s32 %s23, 1
        %s354 = smul.u32 %s353, 8
        %p355 = scmp.lt.s32.totalorder %s354, 7
        %s356 = scalar_select %p355, %s354, 7
        %p357 = scmp.lt.s32.totalorder %s22, 1
        %s358 = scalar_select %p357, %s22, 1
        %p359 = scmp.lt.s32.totalorder %s356, 7
        %s360 = scalar_select %p359, %s356, 7
        %s361 = smul.addr %s358, 8
        %s362 = sadd.s32 %s360, %s361
        %s363 = smul.addr %s362, 8
        %s364 = scalar_lea.vmem %s2, %s363
        %s365 = sadd.s32 %s23, 1
        %s366 = smul.u32 %s365, 8
        %p367 = scmp.lt.s32.totalorder %s366, 7
        %s368 = scalar_select %p367, %s366, 7
      $region52: #{tpu_custom_call.1} parent=39 // pred_fallthru
        _
    $region40: #{tpu_custom_call.1} parent=5 // pred_fallthru
      _
    %p369 = scmp.le.s32.totalorder 1, %s15
    %p370 = scmp.lt.s32.totalorder %s15, 3
    %p371 = pnand %p369, %p370
    %p372 = pneg %p371
    // Predicated region
    $region53: #{tpu_custom_call.1} parent=5 // pred_check
      _
    $region54: #{tpu_custom_call.1} parent=5 // pred_check_branch
      %374 = sbr.rel (%p371) target = $region56
    $region55: #{tpu_custom_call.1} parent=5 // pred_region
      %s375 = ssub.s32 %s15, 1
      %s376 = smul.u32 8, %s25
      %p377 = scmp.lt.s32.totalorder %s24, 1
      %s378 = scalar_select %p377, %s24, 1
      %p379 = scmp.lt.s32.totalorder %s376, 7
      %s380 = scalar_select %p379, %s376, 7
      %s381 = smul.addr %s378, 8
      %s382 = sadd.s32 %s380, %s381
      %s383 = smul.addr %s382, 8
      %s384 = scalar_lea.vmem %s0, %s383
      %p385 = pneg %p55
      %p386 = pneg %p52
      %s387 = smul.u32 %s25, 8
      %s388 = ssub.s32 %s387, 1
      %p389 = scmp.gt.s32.totalorder %s388, 0
      %s390 = scalar_select %p389, %s388, 0
      %p391 = scmp.lt.s32.totalorder %s24, 1
      %s392 = scalar_select %p391, %s24, 1
      %p393 = scmp.lt.s32.totalorder %s390, 7
      %s394 = scalar_select %p393, %s390, 7
      %s395 = smul.addr %s392, 8
      %s396 = sadd.s32 %s394, %s395
      %s397 = smul.addr %s396, 8
      %s398 = scalar_lea.vmem %s1, %s397
      %p399 = pneg %p91
      %p400 = pneg %p88
      %s401 = sadd.s32 %s25, 1
      %s402 = smul.u32 %s401, 8
      %p403 = scmp.lt.s32.totalorder %s402, 7
      %s404 = scalar_select %p403, %s402, 7
      %p405 = scmp.lt.s32.totalorder %s24, 1
      %s406 = scalar_select %p405, %s24, 1
      %p407 = scmp.lt.s32.totalorder %s404, 7
      %s408 = scalar_select %p407, %s404, 7
      %s409 = smul.addr %s406, 8
      %s410 = sadd.s32 %s408, %s409
      %s411 = smul.addr %s410, 8
      %s412 = scalar_lea.vmem %s2, %s411
      %p413 = pneg %p127
      %p414 = pneg %p124
      %p415 = pneg %p148
      %p416 = pneg %p145
      %p417 = pneg %p169
      %p418 = pneg %p166
      %p419 = pneg %p190
      %p420 = pneg %p187
      %p421 = pneg %p211
      %p422 = pneg %p208
      %p423 = pneg %p232
      %p424 = pneg %p229
      %p425 = pneg %p253
      %p426 = pneg %p250
      %p427 = pneg %p281
      %p428 = pneg %p278
      %s429 = smul.u32 8, %s25
      %p430 = scmp.lt.s32.totalorder %s24, 1
      %s431 = scalar_select %p430, %s24, 1
      %p432 = scmp.lt.s32.totalorder %s429, 7
      %s433 = scalar_select %p432, %s429, 7
      %s434 = smul.addr %s431, 8
      %s435 = sadd.s32 %s433, %s434
      %s436 = smul.addr %s435, 8
      %s437 = scalar_lea.vmem %s9, %s436
      %s438 = smul.u32 8, %s25
      %p439 = scmp.lt.s32.totalorder %s24, 1
      %s440 = scalar_select %p439, %s24, 1
      %p441 = scmp.lt.s32.totalorder %s438, 7
      %s442 = scalar_select %p441, %s438, 7
      %s443 = smul.addr %s440, 8
      %s444 = sadd.s32 %s442, %s443
      %s445 = smul.addr %s444, 8
      %s446 = scalar_lea.vmem %s0, %s445
      %s447 = smul.u32 8, %s25
      %s448 = smul.u32 %s25, 8
      %s449 = ssub.s32 %s448, 1
      %p450 = scmp.gt.s32.totalorder %s449, 0
      %s451 = scalar_select %p450, %s449, 0
      %p452 = scmp.lt.s32.totalorder %s24, 1
      %s453 = scalar_select %p452, %s24, 1
      %p454 = scmp.lt.s32.totalorder %s451, 7
      %s455 = scalar_select %p454, %s451, 7
      %s456 = smul.addr %s453, 8
      %s457 = sadd.s32 %s455, %s456
      %s458 = smul.addr %s457, 8
      %s459 = scalar_lea.vmem %s1, %s458
      %s460 = smul.u32 %s25, 8
      %s461 = ssub.s32 %s460, 1
      %p462 = scmp.gt.s32.totalorder %s461, 0
      %s463 = scalar_select %p462, %s461, 0
      %s464 = sadd.s32 %s25, 1
      %s465 = smul.u32 %s464, 8
      %p466 = scmp.lt.s32.totalorder %s465, 7
      %s467 = scalar_select %p466, %s465, 7
      %p468 = scmp.lt.s32.totalorder %s24, 1
      %s469 = scalar_select %p468, %s24, 1
      %p470 = scmp.lt.s32.totalorder %s467, 7
      %s471 = scalar_select %p470, %s467, 7
      %s472 = smul.addr %s469, 8
      %s473 = sadd.s32 %s471, %s472
      %s474 = smul.addr %s473, 8
      %s475 = scalar_lea.vmem %s2, %s474
      %s476 = sadd.s32 %s25, 1
      %s477 = smul.u32 %s476, 8
      %p478 = scmp.lt.s32.totalorder %s477, 7
      %s479 = scalar_select %p478, %s477, 7
      %s480 = smul.u32 8, %s25
      %p481 = scmp.lt.s32.totalorder %s24, 1
      %s482 = scalar_select %p481, %s24, 1
      %p483 = scmp.lt.s32.totalorder %s480, 7
      %s484 = scalar_select %p483, %s480, 7
      %s485 = smul.addr %s482, 8
      %s486 = sadd.s32 %s484, %s485
      %s487 = smul.addr %s486, 8
      %s488 = scalar_lea.vmem %s9, %s487
      %s489 = smul.u32 8, %s25
      %v490 = vld [vmem:[%s3] sm:$0x1]
      %v491 = vld [vmem:[%s4] sm:$0x1]
      %p492 = scmp.eq.s32.totalorder %s25, 0
      %s493 = sadd.s32 %s25, 1
      %s494 = smul.u32 %s493, 64
      %s495 = sadd.s32 %s494, 8
      %p496 = scmp.gt.s32.totalorder %s495, 64
      %p497 = por %p492, %p496
      // Predicated region
      $region57: #{tpu_custom_call.1} parent=55 // pred_check
        %p498 = pneg %p497
      $region58: #{tpu_custom_call.1} parent=55 // pred_check_branch
        %500 = sbr.rel (%p498) target = $region60
      $region59: #{tpu_custom_call.1} parent=55 // pred_region
        %v501 = vld [vmem:[%s459] sm:$0xff]
        %vm502 = vcmask 130048
        %v503 = vsel %vm502, %v501, 0.0
        %504 = vadd.xlane.f32.xlu0 %v503
        %v505 = vpop.xlane.xlu0 %504
        %v506 = vrcp.pop 16.0
        %v507 = vmul.f32 16.0, %v506
        %v508 = vsub.f32 1.0, %v507
        %v509 = vmul.f32 %v506, %v508
        %v510 = vadd.f32 %v506, %v509
        %vm511 = vweird.f32 %v506
        %v512 = vsel %vm511, %v506, %v510
        %v513 = vmul.f32 %v505, %v512
        %v514 = vsub.f32 %v501, %v513
        %v515 = vmul.f32 %v514, %v514
        %v516 = vsel %vm502, %v515, 0.0
        %517 = vadd.xlane.f32.xlu0 %v516
        %v518 = vpop.xlane.xlu0 %517
        %v519 = vmul.f32 %v518, %v512
        %v520 = vadd.f32 %v519, 1e-05
        %v521 = vrsqrt.pop %v520
        %v522 = vmul.f32 %v521, %v520
        %v523 = vmul.f32 %v522, %v521
        %v524 = vmul.f32 0.5, %v523
        %v525 = vsub.f32 1.5, %v524
        %v526 = vmul.f32 %v521, %v525
        %vm527 = vweird.f32 %v520
        %vm528 = vweird.f32 %v521
        %vm529 = vmor %vm527, %vm528
        %v530 = vsel %vm529, %v521, %v526
        %v531 = vmul.f32 %v514, %v530
        %v533 = vperm.slane %v490, 0
        %v535 = vmul.f32 %v531, %v533
        %v537 = vperm.slane %v491, 0
        %v539 = vadd.f32 %v535, %v537
        %v540 = vlaneseq
        %v541 = vshrl.u32 %v540, 7
        %s542 = smul.u32 %s25, 64
        %s543 = ssub.s32 %s542, 8
        %v544 = vstv %s543
        %v545 = vadd.s32 %v544, %v541
        %vm546 = vcmp.ge.s32.totalorder %v545, 0
        %vm547 = vcmp.lt.s32.totalorder %v545, 64
        %vm548 = vmand %vm546, %vm547
        %v549 = vsel %vm548, 1, 0
        %vm550 = vcmp.eq.s32.totalorder %v549, 1
        %v551 = vsel %vm550, %v539, 0.0
        %552 = vst.msk [vmem:[#allocation2] sm:$0xff] %vm502, %v551
        %v553 = vld [vmem:[%s446] sm:$0xff]
        %v554 = vld [vmem:[%s446 + $0x8] sm:$0xff]
        %v555 = vld [vmem:[%s446 + $0x10] sm:$0xff]
        %v556 = vld [vmem:[%s446 + $0x18] sm:$0xff]
        %v557 = vld [vmem:[%s446 + $0x20] sm:$0xff]
        %v558 = vld [vmem:[%s446 + $0x28] sm:$0xff]
        %v559 = vld [vmem:[%s446 + $0x30] sm:$0xff]
        %v560 = vld [vmem:[%s446 + $0x38] sm:$0xff]
        %s561 = sadd.s32 0, 8
        %v562 = vsel %vm502, %v553, 0.0
        %563 = vadd.xlane.f32.xlu0 %v562
        %v564 = vpop.xlane.xlu0 %563
        %v565 = vsel %vm502, %v554, 0.0
        %566 = vadd.xlane.f32.xlu0 %v565
        %v567 = vpop.xlane.xlu0 %566
        %v568 = vsel %vm502, %v555, 0.0
        %569 = vadd.xlane.f32.xlu0 %v568
        %v570 = vpop.xlane.xlu0 %569
        %v571 = vsel %vm502, %v556, 0.0
        %572 = vadd.xlane.f32.xlu0 %v571
        %v573 = vpop.xlane.xlu0 %572
        %v574 = vsel %vm502, %v557, 0.0
        %575 = vadd.xlane.f32.xlu0 %v574
        %v576 = vpop.xlane.xlu0 %575
        %v577 = vsel %vm502, %v558, 0.0
        %578 = vadd.xlane.f32.xlu0 %v577
        %v579 = vpop.xlane.xlu0 %578
        %v580 = vsel %vm502, %v559, 0.0
        %581 = vadd.xlane.f32.xlu0 %v580
        %v582 = vpop.xlane.xlu0 %581
        %v583 = vsel %vm502, %v560, 0.0
        %584 = vadd.xlane.f32.xlu0 %v583
        %v585 = vpop.xlane.xlu0 %584
        %v586 = vmul.f32 %v564, %v512
        %v587 = vmul.f32 %v567, %v512
        %v588 = vmul.f32 %v570, %v512
        %v589 = vmul.f32 %v573, %v512
        %v590 = vmul.f32 %v576, %v512
        %v591 = vmul.f32 %v579, %v512
        %v592 = vmul.f32 %v582, %v512
        %v593 = vmul.f32 %v585, %v512
        %v594 = vsub.f32 %v553, %v586
        %v595 = vsub.f32 %v554, %v587
        %v596 = vsub.f32 %v555, %v588
        %v597 = vsub.f32 %v556, %v589
        %v598 = vsub.f32 %v557, %v590
        %v599 = vsub.f32 %v558, %v591
        %v600 = vsub.f32 %v559, %v592
        %v601 = vsub.f32 %v560, %v593
        %v602 = vmul.f32 %v594, %v594
        %v603 = vmul.f32 %v595, %v595
        %v604 = vmul.f32 %v596, %v596
        %v605 = vmul.f32 %v597, %v597
        %v606 = vmul.f32 %v598, %v598
        %v607 = vmul.f32 %v599, %v599
        %v608 = vmul.f32 %v600, %v600
        %v609 = vmul.f32 %v601, %v601
        %v610 = vsel %vm502, %v602, 0.0
        %611 = vadd.xlane.f32.xlu0 %v610
        %v612 = vpop.xlane.xlu0 %611
        %v613 = vsel %vm502, %v603, 0.0
        %614 = vadd.xlane.f32.xlu0 %v613
        %v615 = vpop.xlane.xlu0 %614
        %v616 = vsel %vm502, %v604, 0.0
        %617 = vadd.xlane.f32.xlu0 %v616
        %v618 = vpop.xlane.xlu0 %617
        %v619 = vsel %vm502, %v605, 0.0
        %620 = vadd.xlane.f32.xlu0 %v619
        %v621 = vpop.xlane.xlu0 %620
        %v622 = vsel %vm502, %v606, 0.0
        %623 = vadd.xlane.f32.xlu0 %v622
        %v624 = vpop.xlane.xlu0 %623
        %v625 = vsel %vm502, %v607, 0.0
        %626 = vadd.xlane.f32.xlu0 %v625
        %v627 = vpop.xlane.xlu0 %626
        %v628 = vsel %vm502, %v608, 0.0
        %629 = vadd.xlane.f32.xlu0 %v628
        %v630 = vpop.xlane.xlu0 %629
        %v631 = vsel %vm502, %v609, 0.0
        %632 = vadd.xlane.f32.xlu0 %v631
        %v633 = vpop.xlane.xlu0 %632
        %v634 = vmul.f32 %v612, %v512
        %v635 = vmul.f32 %v615, %v512
        %v636 = vmul.f32 %v618, %v512
        %v637 = vmul.f32 %v621, %v512
        %v638 = vmul.f32 %v624, %v512
        %v639 = vmul.f32 %v627, %v512
        %v640 = vmul.f32 %v630, %v512
        %v641 = vmul.f32 %v633, %v512
        %v642 = vadd.f32 %v634, 1e-05
        %v643 = vadd.f32 %v635, 1e-05
        %v644 = vadd.f32 %v636, 1e-05
        %v645 = vadd.f32 %v637, 1e-05
        %v646 = vadd.f32 %v638, 1e-05
        %v647 = vadd.f32 %v639, 1e-05
        %v648 = vadd.f32 %v640, 1e-05
        %v649 = vadd.f32 %v641, 1e-05
        %v650 = vrsqrt.pop %v642
        %v651 = vmul.f32 %v650, %v642
        %v652 = vmul.f32 %v651, %v650
        %v653 = vmul.f32 0.5, %v652
        %v654 = vsub.f32 1.5, %v653
        %v655 = vmul.f32 %v650, %v654
        %vm656 = vweird.f32 %v642
        %vm657 = vweird.f32 %v650
        %vm658 = vmor %vm656, %vm657
        %v659 = vsel %vm658, %v650, %v655
        %v660 = vrsqrt.pop %v643
        %v661 = vmul.f32 %v660, %v643
        %v662 = vmul.f32 %v661, %v660
        %v663 = vmul.f32 0.5, %v662
        %v664 = vsub.f32 1.5, %v663
        %v665 = vmul.f32 %v660, %v664
        %vm666 = vweird.f32 %v643
        %vm667 = vweird.f32 %v660
        %vm668 = vmor %vm666, %vm667
        %v669 = vsel %vm668, %v660, %v665
        %v670 = vrsqrt.pop %v644
        %v671 = vmul.f32 %v670, %v644
        %v672 = vmul.f32 %v671, %v670
        %v673 = vmul.f32 0.5, %v672
        %v674 = vsub.f32 1.5, %v673
        %v675 = vmul.f32 %v670, %v674
        %vm676 = vweird.f32 %v644
        %vm677 = vweird.f32 %v670
        %vm678 = vmor %vm676, %vm677
        %v679 = vsel %vm678, %v670, %v675
        %v680 = vrsqrt.pop %v645
        %v681 = vmul.f32 %v680, %v645
        %v682 = vmul.f32 %v681, %v680
        %v683 = vmul.f32 0.5, %v682
        %v684 = vsub.f32 1.5, %v683
        %v685 = vmul.f32 %v680, %v684
        %vm686 = vweird.f32 %v645
        %vm687 = vweird.f32 %v680
        %vm688 = vmor %vm686, %vm687
        %v689 = vsel %vm688, %v680, %v685
        %v690 = vrsqrt.pop %v646
        %v691 = vmul.f32 %v690, %v646
        %v692 = vmul.f32 %v691, %v690
        %v693 = vmul.f32 0.5, %v692
        %v694 = vsub.f32 1.5, %v693
        %v695 = vmul.f32 %v690, %v694
        %vm696 = vweird.f32 %v646
        %vm697 = vweird.f32 %v690
        %vm698 = vmor %vm696, %vm697
        %v699 = vsel %vm698, %v690, %v695
        %v700 = vrsqrt.pop %v647
        %v701 = vmul.f32 %v700, %v647
        %v702 = vmul.f32 %v701, %v700
        %v703 = vmul.f32 0.5, %v702
        %v704 = vsub.f32 1.5, %v703
        %v705 = vmul.f32 %v700, %v704
        %vm706 = vweird.f32 %v647
        %vm707 = vweird.f32 %v700
        %vm708 = vmor %vm706, %vm707
        %v709 = vsel %vm708, %v700, %v705
        %v710 = vrsqrt.pop %v648
        %v711 = vmul.f32 %v710, %v648
        %v712 = vmul.f32 %v711, %v710
        %v713 = vmul.f32 0.5, %v712
        %v714 = vsub.f32 1.5, %v713
        %v715 = vmul.f32 %v710, %v714
        %vm716 = vweird.f32 %v648
        %vm717 = vweird.f32 %v710
        %vm718 = vmor %vm716, %vm717
        %v719 = vsel %vm718, %v710, %v715
        %v720 = vrsqrt.pop %v649
        %v721 = vmul.f32 %v720, %v649
        %v722 = vmul.f32 %v721, %v720
        %v723 = vmul.f32 0.5, %v722
        %v724 = vsub.f32 1.5, %v723
        %v725 = vmul.f32 %v720, %v724
        %vm726 = vweird.f32 %v649
        %vm727 = vweird.f32 %v720
        %vm728 = vmor %vm726, %vm727
        %v729 = vsel %vm728, %v720, %v725
        %v730 = vmul.f32 %v594, %v659
        %v731 = vmul.f32 %v595, %v669
        %v732 = vmul.f32 %v596, %v679
        %v733 = vmul.f32 %v597, %v689
        %v734 = vmul.f32 %v598, %v699
        %v735 = vmul.f32 %v599, %v709
        %v736 = vmul.f32 %v600, %v719
        %v737 = vmul.f32 %v601, %v729
        %v738 = vmul.f32 %v730, %v533
        %v739 = vmul.f32 %v731, %v533
        %v740 = vmul.f32 %v732, %v533
        %v741 = vmul.f32 %v733, %v533
        %v742 = vmul.f32 %v734, %v533
        %v743 = vmul.f32 %v735, %v533
        %v744 = vmul.f32 %v736, %v533
        %v745 = vmul.f32 %v737, %v533
        %v746 = vadd.f32 %v738, %v537
        %v747 = vadd.f32 %v739, %v537
        %v748 = vadd.f32 %v740, %v537
        %v749 = vadd.f32 %v741, %v537
        %v750 = vadd.f32 %v742, %v537
        %v751 = vadd.f32 %v743, %v537
        %v752 = vadd.f32 %v744, %v537
        %v753 = vadd.f32 %v745, %v537
        %v754 = vadd.s32 %v541, 8
        %v755 = vadd.s32 %v541, 16
        %v756 = vadd.s32 %v541, 24
        %v757 = vadd.s32 %v541, 32
        %v758 = vadd.s32 %v541, 40
        %v759 = vadd.s32 %v541, 48
        %v760 = vadd.s32 %v541, 56
        %s761 = sadd.s32 %s543, %s561
        %v762 = vstv %s761
        %v763 = vadd.s32 %v762, %v541
        %v764 = vadd.s32 %v762, %v754
        %v765 = vadd.s32 %v762, %v755
        %v766 = vadd.s32 %v762, %v756
        %v767 = vadd.s32 %v762, %v757
        %v768 = vadd.s32 %v762, %v758
        %v769 = vadd.s32 %v762, %v759
        %v770 = vadd.s32 %v762, %v760
        %vm771 = vcmp.ge.s32.totalorder %v763, 0
        %vm772 = vcmp.ge.s32.totalorder %v764, 0
        %vm773 = vcmp.ge.s32.totalorder %v765, 0
        %vm774 = vcmp.ge.s32.totalorder %v766, 0
        %vm775 = vcmp.ge.s32.totalorder %v767, 0
        %vm776 = vcmp.ge.s32.totalorder %v768, 0
        %vm777 = vcmp.ge.s32.totalorder %v769, 0
        %vm778 = vcmp.ge.s32.totalorder %v770, 0
        %vm779 = vcmp.lt.s32.totalorder %v763, 64
        %vm780 = vcmp.lt.s32.totalorder %v764, 64
        %vm781 = vcmp.lt.s32.totalorder %v765, 64
        %vm782 = vcmp.lt.s32.totalorder %v766, 64
        %vm783 = vcmp.lt.s32.totalorder %v767, 64
        %vm784 = vcmp.lt.s32.totalorder %v768, 64
        %vm785 = vcmp.lt.s32.totalorder %v769, 64
        %vm786 = vcmp.lt.s32.totalorder %v770, 64
        %vm787 = vmand %vm771, %vm779
        %vm788 = vmand %vm772, %vm780
        %vm789 = vmand %vm773, %vm781
        %vm790 = vmand %vm774, %vm782
        %vm791 = vmand %vm775, %vm783
        %vm792 = vmand %vm776, %vm784
        %vm793 = vmand %vm777, %vm785
        %vm794 = vmand %vm778, %vm786
        %v795 = vsel %vm787, 1, 0
        %v796 = vsel %vm788, 1, 0
        %v797 = vsel %vm789, 1, 0
        %v798 = vsel %vm790, 1, 0
        %v799 = vsel %vm791, 1, 0
        %v800 = vsel %vm792, 1, 0
        %v801 = vsel %vm793, 1, 0
        %v802 = vsel %vm794, 1, 0
        %vm803 = vcmp.eq.s32.totalorder %v795, 1
        %vm804 = vcmp.eq.s32.totalorder %v796, 1
        %vm805 = vcmp.eq.s32.totalorder %v797, 1
        %vm806 = vcmp.eq.s32.totalorder %v798, 1
        %vm807 = vcmp.eq.s32.totalorder %v799, 1
        %vm808 = vcmp.eq.s32.totalorder %v800, 1
        %vm809 = vcmp.eq.s32.totalorder %v801, 1
        %vm810 = vcmp.eq.s32.totalorder %v802, 1
        %v811 = vsel %vm803, %v746, 0.0
        %v812 = vsel %vm804, %v747, 0.0
        %v813 = vsel %vm805, %v748, 0.0
        %v814 = vsel %vm806, %v749, 0.0
        %v815 = vsel %vm807, %v750, 0.0
        %v816 = vsel %vm808, %v751, 0.0
        %v817 = vsel %vm809, %v752, 0.0
        %v818 = vsel %vm810, %v753, 0.0
        %s819 = scalar_lea.vmem [#allocation2], %s561
        %820 = vst.msk [vmem:[%s819] sm:$0xff] %vm502, %v811
        %821 = vst.msk [vmem:[%s819 + $0x8] sm:$0xff] %vm502, %v812
        %822 = vst.msk [vmem:[%s819 + $0x10] sm:$0xff] %vm502, %v813
        %823 = vst.msk [vmem:[%s819 + $0x18] sm:$0xff] %vm502, %v814
        %824 = vst.msk [vmem:[%s819 + $0x20] sm:$0xff] %vm502, %v815
        %825 = vst.msk [vmem:[%s819 + $0x28] sm:$0xff] %vm502, %v816
        %826 = vst.msk [vmem:[%s819 + $0x30] sm:$0xff] %vm502, %v817
        %827 = vst.msk [vmem:[%s819 + $0x38] sm:$0xff] %vm502, %v818
        %v828 = vld [vmem:[%s475] sm:$0xff]
        %v829 = vsel %vm502, %v828, 0.0
        %830 = vadd.xlane.f32.xlu0 %v829
        %v831 = vpop.xlane.xlu0 %830
        %v832 = vmul.f32 %v831, %v512
        %v833 = vsub.f32 %v828, %v832
        %v834 = vmul.f32 %v833, %v833
        %v835 = vsel %vm502, %v834, 0.0
        %836 = vadd.xlane.f32.xlu0 %v835
        %v837 = vpop.xlane.xlu0 %836
        %v838 = vmul.f32 %v837, %v512
        %v839 = vadd.f32 %v838, 1e-05
        %v840 = vrsqrt.pop %v839
        %v841 = vmul.f32 %v840, %v839
        %v842 = vmul.f32 %v841, %v840
        %v843 = vmul.f32 0.5, %v842
        %v844 = vsub.f32 1.5, %v843
        %v845 = vmul.f32 %v840, %v844
        %vm846 = vweird.f32 %v839
        %vm847 = vweird.f32 %v840
        %vm848 = vmor %vm846, %vm847
        %v849 = vsel %vm848, %v840, %v845
        %v850 = vmul.f32 %v833, %v849
        %v851 = vmul.f32 %v850, %v533
        %v852 = vadd.f32 %v851, %v537
        %s853 = sadd.s32 %s542, 64
        %v854 = vstv %s853
        %v855 = vadd.s32 %v854, %v541
        %vm856 = vcmp.ge.s32.totalorder %v855, 0
        %vm857 = vcmp.lt.s32.totalorder %v855, 64
        %vm858 = vmand %vm856, %vm857
        %v859 = vsel %vm858, 1, 0
        %vm860 = vcmp.eq.s32.totalorder %v859, 1
        %v861 = vsel %vm860, %v852, 0.0
        %862 = vst.msk [vmem:[#allocation2 + $0x48] sm:$0xff] %vm502, %v861
      $region60: #{tpu_custom_call.1} parent=55 // pred_fallthru
        _
      %p863 = pneg %p497
      // Predicated region
      $region61: #{tpu_custom_call.1} parent=55 // pred_check
        _
      $region62: #{tpu_custom_call.1} parent=55 // pred_check_branch
        %865 = sbr.rel (%p497) target = $region64
      $region63: #{tpu_custom_call.1} parent=55 // pred_region
        %v866 = vld [vmem:[%s459] sm:$0xff]
        %vm867 = vcmask 130048
        %v868 = vsel %vm867, %v866, 0.0
        %869 = vadd.xlane.f32.xlu0 %v868
        %v870 = vpop.xlane.xlu0 %869
        %v871 = vrcp.pop 16.0
        %v872 = vmul.f32 16.0, %v871
        %v873 = vsub.f32 1.0, %v872
        %v874 = vmul.f32 %v871, %v873
        %v875 = vadd.f32 %v871, %v874
        %vm876 = vweird.f32 %v871
        %v877 = vsel %vm876, %v871, %v875
        %v878 = vmul.f32 %v870, %v877
        %v879 = vsub.f32 %v866, %v878
        %v880 = vmul.f32 %v879, %v879
        %v881 = vsel %vm867, %v880, 0.0
        %882 = vadd.xlane.f32.xlu0 %v881
        %v883 = vpop.xlane.xlu0 %882
        %v884 = vmul.f32 %v883, %v877
        %v885 = vadd.f32 %v884, 1e-05
        %v886 = vrsqrt.pop %v885
        %v887 = vmul.f32 %v886, %v885
        %v888 = vmul.f32 %v887, %v886
        %v889 = vmul.f32 0.5, %v888
        %v890 = vsub.f32 1.5, %v889
        %v891 = vmul.f32 %v886, %v890
        %vm892 = vweird.f32 %v885
        %vm893 = vweird.f32 %v886
        %vm894 = vmor %vm892, %vm893
        %v895 = vsel %vm894, %v886, %v891
        %v896 = vmul.f32 %v879, %v895
        %v898 = vperm.slane %v490, 0
        %v900 = vmul.f32 %v896, %v898
        %v902 = vperm.slane %v491, 0
        %v904 = vadd.f32 %v900, %v902
        %905 = vst.msk [vmem:[#allocation2] sm:$0xff] %vm867, %v904
        %v906 = vld [vmem:[%s446] sm:$0xff]
        %v907 = vld [vmem:[%s446 + $0x8] sm:$0xff]
        %v908 = vld [vmem:[%s446 + $0x10] sm:$0xff]
        %v909 = vld [vmem:[%s446 + $0x18] sm:$0xff]
        %v910 = vld [vmem:[%s446 + $0x20] sm:$0xff]
        %v911 = vld [vmem:[%s446 + $0x28] sm:$0xff]
        %v912 = vld [vmem:[%s446 + $0x30] sm:$0xff]
        %v913 = vld [vmem:[%s446 + $0x38] sm:$0xff]
        %s914 = sadd.s32 0, 8
        %v915 = vsel %vm867, %v906, 0.0
        %916 = vadd.xlane.f32.xlu0 %v915
        %v917 = vpop.xlane.xlu0 %916
        %v918 = vsel %vm867, %v907, 0.0
        %919 = vadd.xlane.f32.xlu0 %v918
        %v920 = vpop.xlane.xlu0 %919
        %v921 = vsel %vm867, %v908, 0.0
        %922 = vadd.xlane.f32.xlu0 %v921
        %v923 = vpop.xlane.xlu0 %922
        %v924 = vsel %vm867, %v909, 0.0
        %925 = vadd.xlane.f32.xlu0 %v924
        %v926 = vpop.xlane.xlu0 %925
        %v927 = vsel %vm867, %v910, 0.0
        %928 = vadd.xlane.f32.xlu0 %v927
        %v929 = vpop.xlane.xlu0 %928
        %v930 = vsel %vm867, %v911, 0.0
        %931 = vadd.xlane.f32.xlu0 %v930
        %v932 = vpop.xlane.xlu0 %931
        %v933 = vsel %vm867, %v912, 0.0
        %934 = vadd.xlane.f32.xlu0 %v933
        %v935 = vpop.xlane.xlu0 %934
        %v936 = vsel %vm867, %v913, 0.0
        %937 = vadd.xlane.f32.xlu0 %v936
        %v938 = vpop.xlane.xlu0 %937
        %v939 = vmul.f32 %v917, %v877
        %v940 = vmul.f32 %v920, %v877
        %v941 = vmul.f32 %v923, %v877
        %v942 = vmul.f32 %v926, %v877
        %v943 = vmul.f32 %v929, %v877
        %v944 = vmul.f32 %v932, %v877
        %v945 = vmul.f32 %v935, %v877
        %v946 = vmul.f32 %v938, %v877
        %v947 = vsub.f32 %v906, %v939
        %v948 = vsub.f32 %v907, %v940
        %v949 = vsub.f32 %v908, %v941
        %v950 = vsub.f32 %v909, %v942
        %v951 = vsub.f32 %v910, %v943
        %v952 = vsub.f32 %v911, %v944
        %v953 = vsub.f32 %v912, %v945
        %v954 = vsub.f32 %v913, %v946
        %v955 = vmul.f32 %v947, %v947
        %v956 = vmul.f32 %v948, %v948
        %v957 = vmul.f32 %v949, %v949
        %v958 = vmul.f32 %v950, %v950
        %v959 = vmul.f32 %v951, %v951
        %v960 = vmul.f32 %v952, %v952
        %v961 = vmul.f32 %v953, %v953
        %v962 = vmul.f32 %v954, %v954
        %v963 = vsel %vm867, %v955, 0.0
        %964 = vadd.xlane.f32.xlu0 %v963
        %v965 = vpop.xlane.xlu0 %964
        %v966 = vsel %vm867, %v956, 0.0
        %967 = vadd.xlane.f32.xlu0 %v966
        %v968 = vpop.xlane.xlu0 %967
        %v969 = vsel %vm867, %v957, 0.0
        %970 = vadd.xlane.f32.xlu0 %v969
        %v971 = vpop.xlane.xlu0 %970
        %v972 = vsel %vm867, %v958, 0.0
        %973 = vadd.xlane.f32.xlu0 %v972
        %v974 = vpop.xlane.xlu0 %973
        %v975 = vsel %vm867, %v959, 0.0
        %976 = vadd.xlane.f32.xlu0 %v975
        %v977 = vpop.xlane.xlu0 %976
        %v978 = vsel %vm867, %v960, 0.0
        %979 = vadd.xlane.f32.xlu0 %v978
        %v980 = vpop.xlane.xlu0 %979
        %v981 = vsel %vm867, %v961, 0.0
        %982 = vadd.xlane.f32.xlu0 %v981
        %v983 = vpop.xlane.xlu0 %982
        %v984 = vsel %vm867, %v962, 0.0
        %985 = vadd.xlane.f32.xlu0 %v984
        %v986 = vpop.xlane.xlu0 %985
        %v987 = vmul.f32 %v965, %v877
        %v988 = vmul.f32 %v968, %v877
        %v989 = vmul.f32 %v971, %v877
        %v990 = vmul.f32 %v974, %v877
        %v991 = vmul.f32 %v977, %v877
        %v992 = vmul.f32 %v980, %v877
        %v993 = vmul.f32 %v983, %v877
        %v994 = vmul.f32 %v986, %v877
        %v995 = vadd.f32 %v987, 1e-05
        %v996 = vadd.f32 %v988, 1e-05
        %v997 = vadd.f32 %v989, 1e-05
        %v998 = vadd.f32 %v990, 1e-05
        %v999 = vadd.f32 %v991, 1e-05
        %v1000 = vadd.f32 %v992, 1e-05
        %v1001 = vadd.f32 %v993, 1e-05
        %v1002 = vadd.f32 %v994, 1e-05
        %v1003 = vrsqrt.pop %v995
        %v1004 = vmul.f32 %v1003, %v995
        %v1005 = vmul.f32 %v1004, %v1003
        %v1006 = vmul.f32 0.5, %v1005
        %v1007 = vsub.f32 1.5, %v1006
        %v1008 = vmul.f32 %v1003, %v1007
        %vm1009 = vweird.f32 %v995
        %vm1010 = vweird.f32 %v1003
        %vm1011 = vmor %vm1009, %vm1010
        %v1012 = vsel %vm1011, %v1003, %v1008
        %v1013 = vrsqrt.pop %v996
        %v1014 = vmul.f32 %v1013, %v996
        %v1015 = vmul.f32 %v1014, %v1013
        %v1016 = vmul.f32 0.5, %v1015
        %v1017 = vsub.f32 1.5, %v1016
        %v1018 = vmul.f32 %v1013, %v1017
        %vm1019 = vweird.f32 %v996
        %vm1020 = vweird.f32 %v1013
        %vm1021 = vmor %vm1019, %vm1020
        %v1022 = vsel %vm1021, %v1013, %v1018
        %v1023 = vrsqrt.pop %v997
        %v1024 = vmul.f32 %v1023, %v997
        %v1025 = vmul.f32 %v1024, %v1023
        %v1026 = vmul.f32 0.5, %v1025
        %v1027 = vsub.f32 1.5, %v1026
        %v1028 = vmul.f32 %v1023, %v1027
        %vm1029 = vweird.f32 %v997
        %vm1030 = vweird.f32 %v1023
        %vm1031 = vmor %vm1029, %vm1030
        %v1032 = vsel %vm1031, %v1023, %v1028
        %v1033 = vrsqrt.pop %v998
        %v1034 = vmul.f32 %v1033, %v998
        %v1035 = vmul.f32 %v1034, %v1033
        %v1036 = vmul.f32 0.5, %v1035
        %v1037 = vsub.f32 1.5, %v1036
        %v1038 = vmul.f32 %v1033, %v1037
        %vm1039 = vweird.f32 %v998
        %vm1040 = vweird.f32 %v1033
        %vm1041 = vmor %vm1039, %vm1040
        %v1042 = vsel %vm1041, %v1033, %v1038
        %v1043 = vrsqrt.pop %v999
        %v1044 = vmul.f32 %v1043, %v999
        %v1045 = vmul.f32 %v1044, %v1043
        %v1046 = vmul.f32 0.5, %v1045
        %v1047 = vsub.f32 1.5, %v1046
        %v1048 = vmul.f32 %v1043, %v1047
        %vm1049 = vweird.f32 %v999
        %vm1050 = vweird.f32 %v1043
        %vm1051 = vmor %vm1049, %vm1050
        %v1052 = vsel %vm1051, %v1043, %v1048
        %v1053 = vrsqrt.pop %v1000
        %v1054 = vmul.f32 %v1053, %v1000
        %v1055 = vmul.f32 %v1054, %v1053
        %v1056 = vmul.f32 0.5, %v1055
        %v1057 = vsub.f32 1.5, %v1056
        %v1058 = vmul.f32 %v1053, %v1057
        %vm1059 = vweird.f32 %v1000
        %vm1060 = vweird.f32 %v1053
        %vm1061 = vmor %vm1059, %vm1060
        %v1062 = vsel %vm1061, %v1053, %v1058
        %v1063 = vrsqrt.pop %v1001
        %v1064 = vmul.f32 %v1063, %v1001
        %v1065 = vmul.f32 %v1064, %v1063
        %v1066 = vmul.f32 0.5, %v1065
        %v1067 = vsub.f32 1.5, %v1066
        %v1068 = vmul.f32 %v1063, %v1067
        %vm1069 = vweird.f32 %v1001
        %vm1070 = vweird.f32 %v1063
        %vm1071 = vmor %vm1069, %vm1070
        %v1072 = vsel %vm1071, %v1063, %v1068
        %v1073 = vrsqrt.pop %v1002
        %v1074 = vmul.f32 %v1073, %v1002
        %v1075 = vmul.f32 %v1074, %v1073
        %v1076 = vmul.f32 0.5, %v1075
        %v1077 = vsub.f32 1.5, %v1076
        %v1078 = vmul.f32 %v1073, %v1077
        %vm1079 = vweird.f32 %v1002
        %vm1080 = vweird.f32 %v1073
        %vm1081 = vmor %vm1079, %vm1080
        %v1082 = vsel %vm1081, %v1073, %v1078
        %v1083 = vmul.f32 %v947, %v1012
        %v1084 = vmul.f32 %v948, %v1022
        %v1085 = vmul.f32 %v949, %v1032
        %v1086 = vmul.f32 %v950, %v1042
        %v1087 = vmul.f32 %v951, %v1052
        %v1088 = vmul.f32 %v952, %v1062
        %v1089 = vmul.f32 %v953, %v1072
        %v1090 = vmul.f32 %v954, %v1082
        %v1091 = vmul.f32 %v1083, %v898
        %v1092 = vmul.f32 %v1084, %v898
        %v1093 = vmul.f32 %v1085, %v898
        %v1094 = vmul.f32 %v1086, %v898
        %v1095 = vmul.f32 %v1087, %v898
        %v1096 = vmul.f32 %v1088, %v898
        %v1097 = vmul.f32 %v1089, %v898
        %v1098 = vmul.f32 %v1090, %v898
        %v1099 = vadd.f32 %v1091, %v902
        %v1100 = vadd.f32 %v1092, %v902
        %v1101 = vadd.f32 %v1093, %v902
        %v1102 = vadd.f32 %v1094, %v902
        %v1103 = vadd.f32 %v1095, %v902
        %v1104 = vadd.f32 %v1096, %v902
        %v1105 = vadd.f32 %v1097, %v902
        %v1106 = vadd.f32 %v1098, %v902
        %s1107 = scalar_lea.vmem [#allocation2], %s914
        %1108 = vst.msk [vmem:[%s1107] sm:$0xff] %vm867, %v1099
        %1109 = vst.msk [vmem:[%s1107 + $0x8] sm:$0xff] %vm867, %v1100
        %1110 = vst.msk [vmem:[%s1107 + $0x10] sm:$0xff] %vm867, %v1101
        %1111 = vst.msk [vmem:[%s1107 + $0x18] sm:$0xff] %vm867, %v1102
        %1112 = vst.msk [vmem:[%s1107 + $0x20] sm:$0xff] %vm867, %v1103
        %1113 = vst.msk [vmem:[%s1107 + $0x28] sm:$0xff] %vm867, %v1104
        %1114 = vst.msk [vmem:[%s1107 + $0x30] sm:$0xff] %vm867, %v1105
        %1115 = vst.msk [vmem:[%s1107 + $0x38] sm:$0xff] %vm867, %v1106
        %v1116 = vld [vmem:[%s475] sm:$0xff]
        %v1117 = vsel %vm867, %v1116, 0.0
        %1118 = vadd.xlane.f32.xlu0 %v1117
        %v1119 = vpop.xlane.xlu0 %1118
        %v1120 = vmul.f32 %v1119, %v877
        %v1121 = vsub.f32 %v1116, %v1120
        %v1122 = vmul.f32 %v1121, %v1121
        %v1123 = vsel %vm867, %v1122, 0.0
        %1124 = vadd.xlane.f32.xlu0 %v1123
        %v1125 = vpop.xlane.xlu0 %1124
        %v1126 = vmul.f32 %v1125, %v877
        %v1127 = vadd.f32 %v1126, 1e-05
        %v1128 = vrsqrt.pop %v1127
        %v1129 = vmul.f32 %v1128, %v1127
        %v1130 = vmul.f32 %v1129, %v1128
        %v1131 = vmul.f32 0.5, %v1130
        %v1132 = vsub.f32 1.5, %v1131
        %v1133 = vmul.f32 %v1128, %v1132
        %vm1134 = vweird.f32 %v1127
        %vm1135 = vweird.f32 %v1128
        %vm1136 = vmor %vm1134, %vm1135
        %v1137 = vsel %vm1136, %v1128, %v1133
        %v1138 = vmul.f32 %v1121, %v1137
        %v1139 = vmul.f32 %v1138, %v898
        %v1140 = vadd.f32 %v1139, %v902
        %1141 = vst.msk [vmem:[#allocation2 + $0x48] sm:$0xff] %vm867, %v1140
      $region64: #{tpu_custom_call.1} parent=55 // pred_fallthru
        _
      %v1142 = vld [vmem:[%s5] sm:$0x1]
      %v1143 = vld [vmem:[%s5 + $0x1] sm:$0x1]
      %v1144 = vld [vmem:[%s5 + $0x2] sm:$0x1]
      %v1145 = vld [vmem:[%s5 + $0x3] sm:$0x1]
      %v1146 = vld [vmem:[%s5 + $0x4] sm:$0x1]
      %v1147 = vld [vmem:[%s5 + $0x5] sm:$0x1]
      %v1148 = vld [vmem:[%s5 + $0x6] sm:$0x1]
      %v1149 = vld [vmem:[%s5 + $0x7] sm:$0x1]
      %v1150 = vld [vmem:[%s5 + $0x8] sm:$0x1]
      %v1151 = vld [vmem:[%s5 + $0x9] sm:$0x1]
      %v1152 = vld [vmem:[%s5 + $0xa] sm:$0x1]
      %v1153 = vld [vmem:[%s5 + $0xb] sm:$0x1]
      %v1154 = vld [vmem:[%s5 + $0xc] sm:$0x1]
      %v1155 = vld [vmem:[%s5 + $0xd] sm:$0x1]
      %v1156 = vld [vmem:[%s5 + $0xe] sm:$0x1]
      %v1157 = vld [vmem:[%s5 + $0xf] sm:$0x1]
      %v1158 = vld [vmem:[%s5 + $0x10] sm:$0x1]
      %v1159 = vld [vmem:[%s5 + $0x11] sm:$0x1]
      %v1160 = vld [vmem:[%s5 + $0x12] sm:$0x1]
      %v1161 = vld [vmem:[%s5 + $0x13] sm:$0x1]
      %v1162 = vld [vmem:[%s5 + $0x14] sm:$0x1]
      %v1163 = vld [vmem:[%s5 + $0x15] sm:$0x1]
      %v1164 = vld [vmem:[%s5 + $0x16] sm:$0x1]
      %v1165 = vld [vmem:[%s5 + $0x17] sm:$0x1]
      %v1166 = vld [vmem:[%s5 + $0x18] sm:$0x1]
      %v1167 = vld [vmem:[%s5 + $0x19] sm:$0x1]
      %v1168 = vld [vmem:[%s5 + $0x1a] sm:$0x1]
      %v1169 = vld [vmem:[%s5 + $0x1b] sm:$0x1]
      %v1170 = vld [vmem:[%s6] sm:$0x1]
      %v1171 = vld [vmem:[%s6 + $0x1] sm:$0x1]
      %v1172 = vld [vmem:[%s6 + $0x2] sm:$0x1]
      %v1173 = vld [vmem:[%s6 + $0x3] sm:$0x1]
      %v1174 = vld [vmem:[%s8] sm:$0x1]
      %v1175 = vperm.slane %v1170, 0
      %v1176 = vadd.f32 %v1175, 0.0
      %s1177 = sadd.s32 0, 5
      %s1178 = scalar_lea.vmem [#allocation2], %s1177
      %v1179 = vld [vmem:[%s1178] sm:$0xff]
      %v1180 = vld [vmem:[%s1178 + $0x8] sm:$0xff]
      %v1181 = vld [vmem:[%s1178 + $0x10] sm:$0xff]
      %v1182 = vld [vmem:[%s1178 + $0x18] sm:$0xff]
      %v1183 = vld [vmem:[%s1178 + $0x20] sm:$0xff]
      %v1184 = vld [vmem:[%s1178 + $0x28] sm:$0xff]
      %v1185 = vld [vmem:[%s1178 + $0x30] sm:$0xff]
      %v1186 = vld [vmem:[%s1178 + $0x38] sm:$0xff]
      %v1187 = vperm.slane %v1142, 0
      %v1188 = vmul.f32 %v1179, %v1187
      %v1189 = vmul.f32 %v1180, %v1187
      %v1190 = vmul.f32 %v1181, %v1187
      %v1191 = vmul.f32 %v1182, %v1187
      %v1192 = vmul.f32 %v1183, %v1187
      %v1193 = vmul.f32 %v1184, %v1187
      %v1194 = vmul.f32 %v1185, %v1187
      %v1195 = vmul.f32 %v1186, %v1187
      %v1196 = vadd.f32 %v1176, %v1188
      %v1197 = vadd.f32 %v1176, %v1189
      %v1198 = vadd.f32 %v1176, %v1190
      %v1199 = vadd.f32 %v1176, %v1191
      %v1200 = vadd.f32 %v1176, %v1192
      %v1201 = vadd.f32 %v1176, %v1193
      %v1202 = vadd.f32 %v1176, %v1194
      %v1203 = vadd.f32 %v1176, %v1195
      %s1204 = sadd.s32 0, 6
      %s1205 = scalar_lea.vmem [#allocation2], %s1204
      %v1206 = vld [vmem:[%s1205] sm:$0xff]
      %v1207 = vld [vmem:[%s1205 + $0x8] sm:$0xff]
      %v1208 = vld [vmem:[%s1205 + $0x10] sm:$0xff]
      %v1209 = vld [vmem:[%s1205 + $0x18] sm:$0xff]
      %v1210 = vld [vmem:[%s1205 + $0x20] sm:$0xff]
      %v1211 = vld [vmem:[%s1205 + $0x28] sm:$0xff]
      %v1212 = vld [vmem:[%s1205 + $0x30] sm:$0xff]
      %v1213 = vld [vmem:[%s1205 + $0x38] sm:$0xff]
      %v1214 = vperm.slane %v1146, 0
      %v1215 = vmul.f32 %v1206, %v1214
      %v1216 = vmul.f32 %v1207, %v1214
      %v1217 = vmul.f32 %v1208, %v1214
      %v1218 = vmul.f32 %v1209, %v1214
      %v1219 = vmul.f32 %v1210, %v1214
      %v1220 = vmul.f32 %v1211, %v1214
      %v1221 = vmul.f32 %v1212, %v1214
      %v1222 = vmul.f32 %v1213, %v1214
      %v1223 = vadd.f32 %v1196, %v1215
      %v1224 = vadd.f32 %v1197, %v1216
      %v1225 = vadd.f32 %v1198, %v1217
      %v1226 = vadd.f32 %v1199, %v1218
      %v1227 = vadd.f32 %v1200, %v1219
      %v1228 = vadd.f32 %v1201, %v1220
      %v1229 = vadd.f32 %v1202, %v1221
      %v1230 = vadd.f32 %v1203, %v1222
      %s1231 = sadd.s32 0, 7
      %s1232 = scalar_lea.vmem [#allocation2], %s1231
      %v1233 = vld [vmem:[%s1232] sm:$0xff]
      %v1234 = vld [vmem:[%s1232 + $0x8] sm:$0xff]
      %v1235 = vld [vmem:[%s1232 + $0x10] sm:$0xff]
      %v1236 = vld [vmem:[%s1232 + $0x18] sm:$0xff]
      %v1237 = vld [vmem:[%s1232 + $0x20] sm:$0xff]
      %v1238 = vld [vmem:[%s1232 + $0x28] sm:$0xff]
      %v1239 = vld [vmem:[%s1232 + $0x30] sm:$0xff]
      %v1240 = vld [vmem:[%s1232 + $0x38] sm:$0xff]
      %v1241 = vperm.slane %v1150, 0
      %v1242 = vmul.f32 %v1233, %v1241
      %v1243 = vmul.f32 %v1234, %v1241
      %v1244 = vmul.f32 %v1235, %v1241
      %v1245 = vmul.f32 %v1236, %v1241
      %v1246 = vmul.f32 %v1237, %v1241
      %v1247 = vmul.f32 %v1238, %v1241
      %v1248 = vmul.f32 %v1239, %v1241
      %v1249 = vmul.f32 %v1240, %v1241
      %v1250 = vadd.f32 %v1223, %v1242
      %v1251 = vadd.f32 %v1224, %v1243
      %v1252 = vadd.f32 %v1225, %v1244
      %v1253 = vadd.f32 %v1226, %v1245
      %v1254 = vadd.f32 %v1227, %v1246
      %v1255 = vadd.f32 %v1228, %v1247
      %v1256 = vadd.f32 %v1229, %v1248
      %v1257 = vadd.f32 %v1230, %v1249
      %s1258 = sadd.s32 0, 8
      %s1259 = scalar_lea.vmem [#allocation2], %s1258
      %v1260 = vld [vmem:[%s1259] sm:$0xff]
      %v1261 = vld [vmem:[%s1259 + $0x8] sm:$0xff]
      %v1262 = vld [vmem:[%s1259 + $0x10] sm:$0xff]
      %v1263 = vld [vmem:[%s1259 + $0x18] sm:$0xff]
      %v1264 = vld [vmem:[%s1259 + $0x20] sm:$0xff]
      %v1265 = vld [vmem:[%s1259 + $0x28] sm:$0xff]
      %v1266 = vld [vmem:[%s1259 + $0x30] sm:$0xff]
      %v1267 = vld [vmem:[%s1259 + $0x38] sm:$0xff]
      %v1268 = vperm.slane %v1154, 0
      %v1269 = vmul.f32 %v1260, %v1268
      %v1270 = vmul.f32 %v1261, %v1268
      %v1271 = vmul.f32 %v1262, %v1268
      %v1272 = vmul.f32 %v1263, %v1268
      %v1273 = vmul.f32 %v1264, %v1268
      %v1274 = vmul.f32 %v1265, %v1268
      %v1275 = vmul.f32 %v1266, %v1268
      %v1276 = vmul.f32 %v1267, %v1268
      %v1277 = vadd.f32 %v1250, %v1269
      %v1278 = vadd.f32 %v1251, %v1270
      %v1279 = vadd.f32 %v1252, %v1271
      %v1280 = vadd.f32 %v1253, %v1272
      %v1281 = vadd.f32 %v1254, %v1273
      %v1282 = vadd.f32 %v1255, %v1274
      %v1283 = vadd.f32 %v1256, %v1275
      %v1284 = vadd.f32 %v1257, %v1276
      %s1285 = sadd.s32 0, 9
      %s1286 = scalar_lea.vmem [#allocation2], %s1285
      %v1287 = vld [vmem:[%s1286] sm:$0xff]
      %v1288 = vld [vmem:[%s1286 + $0x8] sm:$0xff]
      %v1289 = vld [vmem:[%s1286 + $0x10] sm:$0xff]
      %v1290 = vld [vmem:[%s1286 + $0x18] sm:$0xff]
      %v1291 = vld [vmem:[%s1286 + $0x20] sm:$0xff]
      %v1292 = vld [vmem:[%s1286 + $0x28] sm:$0xff]
      %v1293 = vld [vmem:[%s1286 + $0x30] sm:$0xff]
      %v1294 = vld [vmem:[%s1286 + $0x38] sm:$0xff]
      %v1295 = vperm.slane %v1158, 0
      %v1296 = vmul.f32 %v1287, %v1295
      %v1297 = vmul.f32 %v1288, %v1295
      %v1298 = vmul.f32 %v1289, %v1295
      %v1299 = vmul.f32 %v1290, %v1295
      %v1300 = vmul.f32 %v1291, %v1295
      %v1301 = vmul.f32 %v1292, %v1295
      %v1302 = vmul.f32 %v1293, %v1295
      %v1303 = vmul.f32 %v1294, %v1295
      %v1304 = vadd.f32 %v1277, %v1296
      %v1305 = vadd.f32 %v1278, %v1297
      %v1306 = vadd.f32 %v1279, %v1298
      %v1307 = vadd.f32 %v1280, %v1299
      %v1308 = vadd.f32 %v1281, %v1300
      %v1309 = vadd.f32 %v1282, %v1301
      %v1310 = vadd.f32 %v1283, %v1302
      %v1311 = vadd.f32 %v1284, %v1303
      %s1312 = sadd.s32 0, 10
      %s1313 = scalar_lea.vmem [#allocation2], %s1312
      %v1314 = vld [vmem:[%s1313] sm:$0xff]
      %v1315 = vld [vmem:[%s1313 + $0x8] sm:$0xff]
      %v1316 = vld [vmem:[%s1313 + $0x10] sm:$0xff]
      %v1317 = vld [vmem:[%s1313 + $0x18] sm:$0xff]
      %v1318 = vld [vmem:[%s1313 + $0x20] sm:$0xff]
      %v1319 = vld [vmem:[%s1313 + $0x28] sm:$0xff]
      %v1320 = vld [vmem:[%s1313 + $0x30] sm:$0xff]
      %v1321 = vld [vmem:[%s1313 + $0x38] sm:$0xff]
      %v1322 = vperm.slane %v1162, 0
      %v1323 = vmul.f32 %v1314, %v1322
      %v1324 = vmul.f32 %v1315, %v1322
      %v1325 = vmul.f32 %v1316, %v1322
      %v1326 = vmul.f32 %v1317, %v1322
      %v1327 = vmul.f32 %v1318, %v1322
      %v1328 = vmul.f32 %v1319, %v1322
      %v1329 = vmul.f32 %v1320, %v1322
      %v1330 = vmul.f32 %v1321, %v1322
      %v1331 = vadd.f32 %v1304, %v1323
      %v1332 = vadd.f32 %v1305, %v1324
      %v1333 = vadd.f32 %v1306, %v1325
      %v1334 = vadd.f32 %v1307, %v1326
      %v1335 = vadd.f32 %v1308, %v1327
      %v1336 = vadd.f32 %v1309, %v1328
      %v1337 = vadd.f32 %v1310, %v1329
      %v1338 = vadd.f32 %v1311, %v1330
      %s1339 = sadd.s32 0, 11
      %s1340 = scalar_lea.vmem [#allocation2], %s1339
      %v1341 = vld [vmem:[%s1340] sm:$0xff]
      %v1342 = vld [vmem:[%s1340 + $0x8] sm:$0xff]
      %v1343 = vld [vmem:[%s1340 + $0x10] sm:$0xff]
      %v1344 = vld [vmem:[%s1340 + $0x18] sm:$0xff]
      %v1345 = vld [vmem:[%s1340 + $0x20] sm:$0xff]
      %v1346 = vld [vmem:[%s1340 + $0x28] sm:$0xff]
      %v1347 = vld [vmem:[%s1340 + $0x30] sm:$0xff]
      %v1348 = vld [vmem:[%s1340 + $0x38] sm:$0xff]
      %v1349 = vperm.slane %v1166, 0
      %v1350 = vmul.f32 %v1341, %v1349
      %v1351 = vmul.f32 %v1342, %v1349
      %v1352 = vmul.f32 %v1343, %v1349
      %v1353 = vmul.f32 %v1344, %v1349
      %v1354 = vmul.f32 %v1345, %v1349
      %v1355 = vmul.f32 %v1346, %v1349
      %v1356 = vmul.f32 %v1347, %v1349
      %v1357 = vmul.f32 %v1348, %v1349
      %v1358 = vadd.f32 %v1331, %v1350
      %v1359 = vadd.f32 %v1332, %v1351
      %v1360 = vadd.f32 %v1333, %v1352
      %v1361 = vadd.f32 %v1334, %v1353
      %v1362 = vadd.f32 %v1335, %v1354
      %v1363 = vadd.f32 %v1336, %v1355
      %v1364 = vadd.f32 %v1337, %v1356
      %v1365 = vadd.f32 %v1338, %v1357
      %vm1366 = vcmp.ge.f32.partialorder %v1358, 0.0
      %vm1367 = vcmp.ge.f32.partialorder %v1359, 0.0
      %vm1368 = vcmp.ge.f32.partialorder %v1360, 0.0
      %vm1369 = vcmp.ge.f32.partialorder %v1361, 0.0
      %vm1370 = vcmp.ge.f32.partialorder %v1362, 0.0
      %vm1371 = vcmp.ge.f32.partialorder %v1363, 0.0
      %vm1372 = vcmp.ge.f32.partialorder %v1364, 0.0
      %vm1373 = vcmp.ge.f32.partialorder %v1365, 0.0
      %v1374 = vmul.f32 %v1358, 0.3
      %v1375 = vmul.f32 %v1359, 0.3
      %v1376 = vmul.f32 %v1360, 0.3
      %v1377 = vmul.f32 %v1361, 0.3
      %v1378 = vmul.f32 %v1362, 0.3
      %v1379 = vmul.f32 %v1363, 0.3
      %v1380 = vmul.f32 %v1364, 0.3
      %v1381 = vmul.f32 %v1365, 0.3
      %v1382 = vsel %vm1366, %v1358, %v1374
      %v1383 = vsel %vm1367, %v1359, %v1375
      %v1384 = vsel %vm1368, %v1360, %v1376
      %v1385 = vsel %vm1369, %v1361, %v1377
      %v1386 = vsel %vm1370, %v1362, %v1378
      %v1387 = vsel %vm1371, %v1363, %v1379
      %v1388 = vsel %vm1372, %v1364, %v1380
      %v1389 = vsel %vm1373, %v1365, %v1381
      %v1390 = vld [vmem:[%s7] sm:$0xff]
      %v1391 = vld [vmem:[%s7 + $0x8] sm:$0xff]
      %v1392 = vperm.slane %v1171, 0
      %v1393 = vadd.f32 %v1392, 0.0
      %v1394 = vperm.slane %v1143, 0
      %v1395 = vmul.f32 %v1179, %v1394
      %v1396 = vmul.f32 %v1180, %v1394
      %v1397 = vmul.f32 %v1181, %v1394
      %v1398 = vmul.f32 %v1182, %v1394
      %v1399 = vmul.f32 %v1183, %v1394
      %v1400 = vmul.f32 %v1184, %v1394
      %v1401 = vmul.f32 %v1185, %v1394
      %v1402 = vmul.f32 %v1186, %v1394
      %v1403 = vadd.f32 %v1393, %v1395
      %v1404 = vadd.f32 %v1393, %v1396
      %v1405 = vadd.f32 %v1393, %v1397
      %v1406 = vadd.f32 %v1393, %v1398
      %v1407 = vadd.f32 %v1393, %v1399
      %v1408 = vadd.f32 %v1393, %v1400
      %v1409 = vadd.f32 %v1393, %v1401
      %v1410 = vadd.f32 %v1393, %v1402
      %v1411 = vperm.slane %v1147, 0
      %v1412 = vmul.f32 %v1206, %v1411
      %v1413 = vmul.f32 %v1207, %v1411
      %v1414 = vmul.f32 %v1208, %v1411
      %v1415 = vmul.f32 %v1209, %v1411
      %v1416 = vmul.f32 %v1210, %v1411
      %v1417 = vmul.f32 %v1211, %v1411
      %v1418 = vmul.f32 %v1212, %v1411
      %v1419 = vmul.f32 %v1213, %v1411
      %v1420 = vadd.f32 %v1403, %v1412
      %v1421 = vadd.f32 %v1404, %v1413
      %v1422 = vadd.f32 %v1405, %v1414
      %v1423 = vadd.f32 %v1406, %v1415
      %v1424 = vadd.f32 %v1407, %v1416
      %v1425 = vadd.f32 %v1408, %v1417
      %v1426 = vadd.f32 %v1409, %v1418
      %v1427 = vadd.f32 %v1410, %v1419
      %v1428 = vperm.slane %v1151, 0
      %v1429 = vmul.f32 %v1233, %v1428
      %v1430 = vmul.f32 %v1234, %v1428
      %v1431 = vmul.f32 %v1235, %v1428
      %v1432 = vmul.f32 %v1236, %v1428
      %v1433 = vmul.f32 %v1237, %v1428
      %v1434 = vmul.f32 %v1238, %v1428
      %v1435 = vmul.f32 %v1239, %v1428
      %v1436 = vmul.f32 %v1240, %v1428
      %v1437 = vadd.f32 %v1420, %v1429
      %v1438 = vadd.f32 %v1421, %v1430
      %v1439 = vadd.f32 %v1422, %v1431
      %v1440 = vadd.f32 %v1423, %v1432
      %v1441 = vadd.f32 %v1424, %v1433
      %v1442 = vadd.f32 %v1425, %v1434
      %v1443 = vadd.f32 %v1426, %v1435
      %v1444 = vadd.f32 %v1427, %v1436
      %v1445 = vperm.slane %v1155, 0
      %v1446 = vmul.f32 %v1260, %v1445
      %v1447 = vmul.f32 %v1261, %v1445
      %v1448 = vmul.f32 %v1262, %v1445
      %v1449 = vmul.f32 %v1263, %v1445
      %v1450 = vmul.f32 %v1264, %v1445
      %v1451 = vmul.f32 %v1265, %v1445
      %v1452 = vmul.f32 %v1266, %v1445
      %v1453 = vmul.f32 %v1267, %v1445
      %v1454 = vadd.f32 %v1437, %v1446
      %v1455 = vadd.f32 %v1438, %v1447
      %v1456 = vadd.f32 %v1439, %v1448
      %v1457 = vadd.f32 %v1440, %v1449
      %v1458 = vadd.f32 %v1441, %v1450
      %v1459 = vadd.f32 %v1442, %v1451
      %v1460 = vadd.f32 %v1443, %v1452
      %v1461 = vadd.f32 %v1444, %v1453
      %v1462 = vperm.slane %v1159, 0
      %v1463 = vmul.f32 %v1287, %v1462
      %v1464 = vmul.f32 %v1288, %v1462
      %v1465 = vmul.f32 %v1289, %v1462
      %v1466 = vmul.f32 %v1290, %v1462
      %v1467 = vmul.f32 %v1291, %v1462
      %v1468 = vmul.f32 %v1292, %v1462
      %v1469 = vmul.f32 %v1293, %v1462
      %v1470 = vmul.f32 %v1294, %v1462
      %v1471 = vadd.f32 %v1454, %v1463
      %v1472 = vadd.f32 %v1455, %v1464
      %v1473 = vadd.f32 %v1456, %v1465
      %v1474 = vadd.f32 %v1457, %v1466
      %v1475 = vadd.f32 %v1458, %v1467
      %v1476 = vadd.f32 %v1459, %v1468
      %v1477 = vadd.f32 %v1460, %v1469
      %v1478 = vadd.f32 %v1461, %v1470
      %v1479 = vperm.slane %v1163, 0
      %v1480 = vmul.f32 %v1314, %v1479
      %v1481 = vmul.f32 %v1315, %v1479
      %v1482 = vmul.f32 %v1316, %v1479
      %v1483 = vmul.f32 %v1317, %v1479
      %v1484 = vmul.f32 %v1318, %v1479
      %v1485 = vmul.f32 %v1319, %v1479
      %v1486 = vmul.f32 %v1320, %v1479
      %v1487 = vmul.f32 %v1321, %v1479
      %v1488 = vadd.f32 %v1471, %v1480
      %v1489 = vadd.f32 %v1472, %v1481
      %v1490 = vadd.f32 %v1473, %v1482
      %v1491 = vadd.f32 %v1474, %v1483
      %v1492 = vadd.f32 %v1475, %v1484
      %v1493 = vadd.f32 %v1476, %v1485
      %v1494 = vadd.f32 %v1477, %v1486
      %v1495 = vadd.f32 %v1478, %v1487
      %v1496 = vperm.slane %v1167, 0
      %v1497 = vmul.f32 %v1341, %v1496
      %v1498 = vmul.f32 %v1342, %v1496
      %v1499 = vmul.f32 %v1343, %v1496
      %v1500 = vmul.f32 %v1344, %v1496
      %v1501 = vmul.f32 %v1345, %v1496
      %v1502 = vmul.f32 %v1346, %v1496
      %v1503 = vmul.f32 %v1347, %v1496
      %v1504 = vmul.f32 %v1348, %v1496
      %v1505 = vadd.f32 %v1488, %v1497
      %v1506 = vadd.f32 %v1489, %v1498
      %v1507 = vadd.f32 %v1490, %v1499
      %v1508 = vadd.f32 %v1491, %v1500
      %v1509 = vadd.f32 %v1492, %v1501
      %v1510 = vadd.f32 %v1493, %v1502
      %v1511 = vadd.f32 %v1494, %v1503
      %v1512 = vadd.f32 %v1495, %v1504
      %vm1513 = vcmp.ge.f32.partialorder %v1505, 0.0
      %vm1514 = vcmp.ge.f32.partialorder %v1506, 0.0
      %vm1515 = vcmp.ge.f32.partialorder %v1507, 0.0
      %vm1516 = vcmp.ge.f32.partialorder %v1508, 0.0
      %vm1517 = vcmp.ge.f32.partialorder %v1509, 0.0
      %vm1518 = vcmp.ge.f32.partialorder %v1510, 0.0
      %vm1519 = vcmp.ge.f32.partialorder %v1511, 0.0
      %vm1520 = vcmp.ge.f32.partialorder %v1512, 0.0
      %v1521 = vmul.f32 %v1505, 0.3
      %v1522 = vmul.f32 %v1506, 0.3
      %v1523 = vmul.f32 %v1507, 0.3
      %v1524 = vmul.f32 %v1508, 0.3
      %v1525 = vmul.f32 %v1509, 0.3
      %v1526 = vmul.f32 %v1510, 0.3
      %v1527 = vmul.f32 %v1511, 0.3
      %v1528 = vmul.f32 %v1512, 0.3
      %v1529 = vsel %vm1513, %v1505, %v1521
      %v1530 = vsel %vm1514, %v1506, %v1522
      %v1531 = vsel %vm1515, %v1507, %v1523
      %v1532 = vsel %vm1516, %v1508, %v1524
      %v1533 = vsel %vm1517, %v1509, %v1525
      %v1534 = vsel %vm1518, %v1510, %v1526
      %v1535 = vsel %vm1519, %v1511, %v1527
      %v1536 = vsel %vm1520, %v1512, %v1528
      %v1537 = vld [vmem:[%s7 + $0x10] sm:$0xff]
      %v1538 = vld [vmem:[%s7 + $0x18] sm:$0xff]
      %vm1539 = vcmask 130048
      %v1541 = vsel %vm1539, %v1529, 0
      %v1544 = vsel %vm1539, %v1530, 0
      %v1547 = vsel %vm1539, %v1531, 0
      %v1550 = vsel %vm1539, %v1532, 0
      %v1553 = vsel %vm1539, %v1533, 0
      %v1556 = vsel %vm1539, %v1534, 0
      %v1559 = vsel %vm1539, %v1535, 0
      %v1562 = vsel %vm1539, %v1536, 0
      %1564 = vmatpush.msra.mxu0 0.0
      %1565 = vmatpush.msra.mxu0 0.0
      %1566 = vmatpush.msra.mxu0 0.0
      %1567 = vmatpush.msra.mxu0 0.0
      %1568 = vmatpush.msra.mxu0 0.0
      %1569 = vmatpush.msra.mxu0 0.0
      %1570 = vmatpush.msra.mxu0 0.0
      %1571 = vmatpush.msra.mxu0 0.0
      %1572 = vmatpush.msra.mxu0 0.0
      %1573 = vmatpush.msra.mxu0 0.0
      %1574 = vmatpush.msra.mxu0 0.0
      %1575 = vmatpush.msra.mxu0 0.0
      %1576 = vmatpush.msra.mxu0 0.0
      %1577 = vmatpush.msra.mxu0 0.0
      %1578 = vmatpush.msra.mxu0 %v1538
      %1579 = vmatpush.msra.mxu0 %v1537
      %1580 = vmatmul.f32.gmra.mxu0 %v1541
      %v1581 = vpop.f32.mrf.mxu0
      %v1582 = vadd.f32 0.0, %v1581
      %1583 = vmatmul.f32.gmra.mxu0 %v1544
      %v1584 = vpop.f32.mrf.mxu0
      %v1585 = vadd.f32 0.0, %v1584
      %1586 = vmatmul.f32.gmra.mxu0 %v1547
      %v1587 = vpop.f32.mrf.mxu0
      %v1588 = vadd.f32 0.0, %v1587
      %1589 = vmatmul.f32.gmra.mxu0 %v1550
      %v1590 = vpop.f32.mrf.mxu0
      %v1591 = vadd.f32 0.0, %v1590
      %1592 = vmatmul.f32.gmra.mxu0 %v1553
      %v1593 = vpop.f32.mrf.mxu0
      %v1594 = vadd.f32 0.0, %v1593
      %1595 = vmatmul.f32.gmra.mxu0 %v1556
      %v1596 = vpop.f32.mrf.mxu0
      %v1597 = vadd.f32 0.0, %v1596
      %1598 = vmatmul.f32.gmra.mxu0 %v1559
      %v1599 = vpop.f32.mrf.mxu0
      %v1600 = vadd.f32 0.0, %v1599
      %1601 = vmatmul.f32.gmra.mxu0 %v1562
      %v1602 = vpop.f32.mrf.mxu0
      %v1603 = vadd.f32 0.0, %v1602
      %1604 = vdwg.mxu0
      %v1606 = vsel %vm1539, %v1382, 0
      %v1609 = vsel %vm1539, %v1383, 0
      %v1612 = vsel %vm1539, %v1384, 0
      %v1615 = vsel %vm1539, %v1385, 0
      %v1618 = vsel %vm1539, %v1386, 0
      %v1621 = vsel %vm1539, %v1387, 0
      %v1624 = vsel %vm1539, %v1388, 0
      %v1627 = vsel %vm1539, %v1389, 0
      %1629 = vmatpush.msra.mxu0 0.0
      %1630 = vmatpush.msra.mxu0 0.0
      %1631 = vmatpush.msra.mxu0 0.0
      %1632 = vmatpush.msra.mxu0 0.0
      %1633 = vmatpush.msra.mxu0 0.0
      %1634 = vmatpush.msra.mxu0 0.0
      %1635 = vmatpush.msra.mxu0 0.0
      %1636 = vmatpush.msra.mxu0 0.0
      %1637 = vmatpush.msra.mxu0 0.0
      %1638 = vmatpush.msra.mxu0 0.0
      %1639 = vmatpush.msra.mxu0 0.0
      %1640 = vmatpush.msra.mxu0 0.0
      %1641 = vmatpush.msra.mxu0 0.0
      %1642 = vmatpush.msra.mxu0 0.0
      %1643 = vmatpush.msra.mxu0 %v1391
      %1644 = vmatpush.msra.mxu0 %v1390
      %1645 = vmatmul.f32.gmra.mxu0 %v1606
      %v1646 = vpop.f32.mrf.mxu0
      %v1647 = vadd.f32 %v1582, %v1646
      %1648 = vmatmul.f32.gmra.mxu0 %v1609
      %v1649 = vpop.f32.mrf.mxu0
      %v1650 = vadd.f32 %v1585, %v1649
      %1651 = vmatmul.f32.gmra.mxu0 %v1612
      %v1652 = vpop.f32.mrf.mxu0
      %v1653 = vadd.f32 %v1588, %v1652
      %1654 = vmatmul.f32.gmra.mxu0 %v1615
      %v1655 = vpop.f32.mrf.mxu0
      %v1656 = vadd.f32 %v1591, %v1655
      %1657 = vmatmul.f32.gmra.mxu0 %v1618
      %v1658 = vpop.f32.mrf.mxu0
      %v1659 = vadd.f32 %v1594, %v1658
      %1660 = vmatmul.f32.gmra.mxu0 %v1621
      %v1661 = vpop.f32.mrf.mxu0
      %v1662 = vadd.f32 %v1597, %v1661
      %1663 = vmatmul.f32.gmra.mxu0 %v1624
      %v1664 = vpop.f32.mrf.mxu0
      %v1665 = vadd.f32 %v1600, %v1664
      %1666 = vmatmul.f32.gmra.mxu0 %v1627
      %v1667 = vpop.f32.mrf.mxu0
      %v1668 = vadd.f32 %v1603, %v1667
      %1669 = vdwg.mxu0
      %v1670 = vperm.slane %v1172, 0
      %v1671 = vadd.f32 %v1670, 0.0
      %v1672 = vperm.slane %v1144, 0
      %v1673 = vmul.f32 %v1179, %v1672
      %v1674 = vmul.f32 %v1180, %v1672
      %v1675 = vmul.f32 %v1181, %v1672
      %v1676 = vmul.f32 %v1182, %v1672
      %v1677 = vmul.f32 %v1183, %v1672
      %v1678 = vmul.f32 %v1184, %v1672
      %v1679 = vmul.f32 %v1185, %v1672
      %v1680 = vmul.f32 %v1186, %v1672
      %v1681 = vadd.f32 %v1671, %v1673
      %v1682 = vadd.f32 %v1671, %v1674
      %v1683 = vadd.f32 %v1671, %v1675
      %v1684 = vadd.f32 %v1671, %v1676
      %v1685 = vadd.f32 %v1671, %v1677
      %v1686 = vadd.f32 %v1671, %v1678
      %v1687 = vadd.f32 %v1671, %v1679
      %v1688 = vadd.f32 %v1671, %v1680
      %v1689 = vperm.slane %v1148, 0
      %v1690 = vmul.f32 %v1206, %v1689
      %v1691 = vmul.f32 %v1207, %v1689
      %v1692 = vmul.f32 %v1208, %v1689
      %v1693 = vmul.f32 %v1209, %v1689
      %v1694 = vmul.f32 %v1210, %v1689
      %v1695 = vmul.f32 %v1211, %v1689
      %v1696 = vmul.f32 %v1212, %v1689
      %v1697 = vmul.f32 %v1213, %v1689
      %v1698 = vadd.f32 %v1681, %v1690
      %v1699 = vadd.f32 %v1682, %v1691
      %v1700 = vadd.f32 %v1683, %v1692
      %v1701 = vadd.f32 %v1684, %v1693
      %v1702 = vadd.f32 %v1685, %v1694
      %v1703 = vadd.f32 %v1686, %v1695
      %v1704 = vadd.f32 %v1687, %v1696
      %v1705 = vadd.f32 %v1688, %v1697
      %v1706 = vperm.slane %v1152, 0
      %v1707 = vmul.f32 %v1233, %v1706
      %v1708 = vmul.f32 %v1234, %v1706
      %v1709 = vmul.f32 %v1235, %v1706
      %v1710 = vmul.f32 %v1236, %v1706
      %v1711 = vmul.f32 %v1237, %v1706
      %v1712 = vmul.f32 %v1238, %v1706
      %v1713 = vmul.f32 %v1239, %v1706
      %v1714 = vmul.f32 %v1240, %v1706
      %v1715 = vadd.f32 %v1698, %v1707
      %v1716 = vadd.f32 %v1699, %v1708
      %v1717 = vadd.f32 %v1700, %v1709
      %v1718 = vadd.f32 %v1701, %v1710
      %v1719 = vadd.f32 %v1702, %v1711
      %v1720 = vadd.f32 %v1703, %v1712
      %v1721 = vadd.f32 %v1704, %v1713
      %v1722 = vadd.f32 %v1705, %v1714
      %v1723 = vperm.slane %v1156, 0
      %v1724 = vmul.f32 %v1260, %v1723
      %v1725 = vmul.f32 %v1261, %v1723
      %v1726 = vmul.f32 %v1262, %v1723
      %v1727 = vmul.f32 %v1263, %v1723
      %v1728 = vmul.f32 %v1264, %v1723
      %v1729 = vmul.f32 %v1265, %v1723
      %v1730 = vmul.f32 %v1266, %v1723
      %v1731 = vmul.f32 %v1267, %v1723
      %v1732 = vadd.f32 %v1715, %v1724
      %v1733 = vadd.f32 %v1716, %v1725
      %v1734 = vadd.f32 %v1717, %v1726
      %v1735 = vadd.f32 %v1718, %v1727
      %v1736 = vadd.f32 %v1719, %v1728
      %v1737 = vadd.f32 %v1720, %v1729
      %v1738 = vadd.f32 %v1721, %v1730
      %v1739 = vadd.f32 %v1722, %v1731
      %v1740 = vperm.slane %v1160, 0
      %v1741 = vmul.f32 %v1287, %v1740
      %v1742 = vmul.f32 %v1288, %v1740
      %v1743 = vmul.f32 %v1289, %v1740
      %v1744 = vmul.f32 %v1290, %v1740
      %v1745 = vmul.f32 %v1291, %v1740
      %v1746 = vmul.f32 %v1292, %v1740
      %v1747 = vmul.f32 %v1293, %v1740
      %v1748 = vmul.f32 %v1294, %v1740
      %v1749 = vadd.f32 %v1732, %v1741
      %v1750 = vadd.f32 %v1733, %v1742
      %v1751 = vadd.f32 %v1734, %v1743
      %v1752 = vadd.f32 %v1735, %v1744
      %v1753 = vadd.f32 %v1736, %v1745
      %v1754 = vadd.f32 %v1737, %v1746
      %v1755 = vadd.f32 %v1738, %v1747
      %v1756 = vadd.f32 %v1739, %v1748
      %v1757 = vperm.slane %v1164, 0
      %v1758 = vmul.f32 %v1314, %v1757
      %v1759 = vmul.f32 %v1315, %v1757
      %v1760 = vmul.f32 %v1316, %v1757
      %v1761 = vmul.f32 %v1317, %v1757
      %v1762 = vmul.f32 %v1318, %v1757
      %v1763 = vmul.f32 %v1319, %v1757
      %v1764 = vmul.f32 %v1320, %v1757
      %v1765 = vmul.f32 %v1321, %v1757
      %v1766 = vadd.f32 %v1749, %v1758
      %v1767 = vadd.f32 %v1750, %v1759
      %v1768 = vadd.f32 %v1751, %v1760
      %v1769 = vadd.f32 %v1752, %v1761
      %v1770 = vadd.f32 %v1753, %v1762
      %v1771 = vadd.f32 %v1754, %v1763
      %v1772 = vadd.f32 %v1755, %v1764
      %v1773 = vadd.f32 %v1756, %v1765
      %v1774 = vperm.slane %v1168, 0
      %v1775 = vmul.f32 %v1341, %v1774
      %v1776 = vmul.f32 %v1342, %v1774
      %v1777 = vmul.f32 %v1343, %v1774
      %v1778 = vmul.f32 %v1344, %v1774
      %v1779 = vmul.f32 %v1345, %v1774
      %v1780 = vmul.f32 %v1346, %v1774
      %v1781 = vmul.f32 %v1347, %v1774
      %v1782 = vmul.f32 %v1348, %v1774
      %v1783 = vadd.f32 %v1766, %v1775
      %v1784 = vadd.f32 %v1767, %v1776
      %v1785 = vadd.f32 %v1768, %v1777
      %v1786 = vadd.f32 %v1769, %v1778
      %v1787 = vadd.f32 %v1770, %v1779
      %v1788 = vadd.f32 %v1771, %v1780
      %v1789 = vadd.f32 %v1772, %v1781
      %v1790 = vadd.f32 %v1773, %v1782
      %vm1791 = vcmp.ge.f32.partialorder %v1783, 0.0
      %vm1792 = vcmp.ge.f32.partialorder %v1784, 0.0
      %vm1793 = vcmp.ge.f32.partialorder %v1785, 0.0
      %vm1794 = vcmp.ge.f32.partialorder %v1786, 0.0
      %vm1795 = vcmp.ge.f32.partialorder %v1787, 0.0
      %vm1796 = vcmp.ge.f32.partialorder %v1788, 0.0
      %vm1797 = vcmp.ge.f32.partialorder %v1789, 0.0
      %vm1798 = vcmp.ge.f32.partialorder %v1790, 0.0
      %v1799 = vmul.f32 %v1783, 0.3
      %v1800 = vmul.f32 %v1784, 0.3
      %v1801 = vmul.f32 %v1785, 0.3
      %v1802 = vmul.f32 %v1786, 0.3
      %v1803 = vmul.f32 %v1787, 0.3
      %v1804 = vmul.f32 %v1788, 0.3
      %v1805 = vmul.f32 %v1789, 0.3
      %v1806 = vmul.f32 %v1790, 0.3
      %v1807 = vsel %vm1791, %v1783, %v1799
      %v1808 = vsel %vm1792, %v1784, %v1800
      %v1809 = vsel %vm1793, %v1785, %v1801
      %v1810 = vsel %vm1794, %v1786, %v1802
      %v1811 = vsel %vm1795, %v1787, %v1803
      %v1812 = vsel %vm1796, %v1788, %v1804
      %v1813 = vsel %vm1797, %v1789, %v1805
      %v1814 = vsel %vm1798, %v1790, %v1806
      %v1815 = vld [vmem:[%s7 + $0x20] sm:$0xff]
      %v1816 = vld [vmem:[%s7 + $0x28] sm:$0xff]
      %v1818 = vsel %vm1539, %v1807, 0
      %v1821 = vsel %vm1539, %v1808, 0
      %v1824 = vsel %vm1539, %v1809, 0
      %v1827 = vsel %vm1539, %v1810, 0
      %v1830 = vsel %vm1539, %v1811, 0
      %v1833 = vsel %vm1539, %v1812, 0
      %v1836 = vsel %vm1539, %v1813, 0
      %v1839 = vsel %vm1539, %v1814, 0
      %1841 = vmatpush.msra.mxu0 0.0
      %1842 = vmatpush.msra.mxu0 0.0
      %1843 = vmatpush.msra.mxu0 0.0
      %1844 = vmatpush.msra.mxu0 0.0
      %1845 = vmatpush.msra.mxu0 0.0
      %1846 = vmatpush.msra.mxu0 0.0
      %1847 = vmatpush.msra.mxu0 0.0
      %1848 = vmatpush.msra.mxu0 0.0
      %1849 = vmatpush.msra.mxu0 0.0
      %1850 = vmatpush.msra.mxu0 0.0
      %1851 = vmatpush.msra.mxu0 0.0
      %1852 = vmatpush.msra.mxu0 0.0
      %1853 = vmatpush.msra.mxu0 0.0
      %1854 = vmatpush.msra.mxu0 0.0
      %1855 = vmatpush.msra.mxu0 %v1816
      %1856 = vmatpush.msra.mxu0 %v1815
      %1857 = vmatmul.f32.gmra.mxu0 %v1818
      %v1858 = vpop.f32.mrf.mxu0
      %v1859 = vadd.f32 0.0, %v1858
      %1860 = vmatmul.f32.gmra.mxu0 %v1821
      %v1861 = vpop.f32.mrf.mxu0
      %v1862 = vadd.f32 0.0, %v1861
      %1863 = vmatmul.f32.gmra.mxu0 %v1824
      %v1864 = vpop.f32.mrf.mxu0
      %v1865 = vadd.f32 0.0, %v1864
      %1866 = vmatmul.f32.gmra.mxu0 %v1827
      %v1867 = vpop.f32.mrf.mxu0
      %v1868 = vadd.f32 0.0, %v1867
      %1869 = vmatmul.f32.gmra.mxu0 %v1830
      %v1870 = vpop.f32.mrf.mxu0
      %v1871 = vadd.f32 0.0, %v1870
      %1872 = vmatmul.f32.gmra.mxu0 %v1833
      %v1873 = vpop.f32.mrf.mxu0
      %v1874 = vadd.f32 0.0, %v1873
      %1875 = vmatmul.f32.gmra.mxu0 %v1836
      %v1876 = vpop.f32.mrf.mxu0
      %v1877 = vadd.f32 0.0, %v1876
      %1878 = vmatmul.f32.gmra.mxu0 %v1839
      %v1879 = vpop.f32.mrf.mxu0
      %v1880 = vadd.f32 0.0, %v1879
      %1881 = vdwg.mxu0
      %v1882 = vadd.f32 %v1647, %v1859
      %v1883 = vadd.f32 %v1650, %v1862
      %v1884 = vadd.f32 %v1653, %v1865
      %v1885 = vadd.f32 %v1656, %v1868
      %v1886 = vadd.f32 %v1659, %v1871
      %v1887 = vadd.f32 %v1662, %v1874
      %v1888 = vadd.f32 %v1665, %v1877
      %v1889 = vadd.f32 %v1668, %v1880
      %v1890 = vperm.slane %v1173, 0
      %v1891 = vadd.f32 %v1890, 0.0
      %v1892 = vperm.slane %v1145, 0
      %v1893 = vmul.f32 %v1179, %v1892
      %v1894 = vmul.f32 %v1180, %v1892
      %v1895 = vmul.f32 %v1181, %v1892
      %v1896 = vmul.f32 %v1182, %v1892
      %v1897 = vmul.f32 %v1183, %v1892
      %v1898 = vmul.f32 %v1184, %v1892
      %v1899 = vmul.f32 %v1185, %v1892
      %v1900 = vmul.f32 %v1186, %v1892
      %v1901 = vadd.f32 %v1891, %v1893
      %v1902 = vadd.f32 %v1891, %v1894
      %v1903 = vadd.f32 %v1891, %v1895
      %v1904 = vadd.f32 %v1891, %v1896
      %v1905 = vadd.f32 %v1891, %v1897
      %v1906 = vadd.f32 %v1891, %v1898
      %v1907 = vadd.f32 %v1891, %v1899
      %v1908 = vadd.f32 %v1891, %v1900
      %v1909 = vperm.slane %v1149, 0
      %v1910 = vmul.f32 %v1206, %v1909
      %v1911 = vmul.f32 %v1207, %v1909
      %v1912 = vmul.f32 %v1208, %v1909
      %v1913 = vmul.f32 %v1209, %v1909
      %v1914 = vmul.f32 %v1210, %v1909
      %v1915 = vmul.f32 %v1211, %v1909
      %v1916 = vmul.f32 %v1212, %v1909
      %v1917 = vmul.f32 %v1213, %v1909
      %v1918 = vadd.f32 %v1901, %v1910
      %v1919 = vadd.f32 %v1902, %v1911
      %v1920 = vadd.f32 %v1903, %v1912
      %v1921 = vadd.f32 %v1904, %v1913
      %v1922 = vadd.f32 %v1905, %v1914
      %v1923 = vadd.f32 %v1906, %v1915
      %v1924 = vadd.f32 %v1907, %v1916
      %v1925 = vadd.f32 %v1908, %v1917
      %v1926 = vperm.slane %v1153, 0
      %v1927 = vmul.f32 %v1233, %v1926
      %v1928 = vmul.f32 %v1234, %v1926
      %v1929 = vmul.f32 %v1235, %v1926
      %v1930 = vmul.f32 %v1236, %v1926
      %v1931 = vmul.f32 %v1237, %v1926
      %v1932 = vmul.f32 %v1238, %v1926
      %v1933 = vmul.f32 %v1239, %v1926
      %v1934 = vmul.f32 %v1240, %v1926
      %v1935 = vadd.f32 %v1918, %v1927
      %v1936 = vadd.f32 %v1919, %v1928
      %v1937 = vadd.f32 %v1920, %v1929
      %v1938 = vadd.f32 %v1921, %v1930
      %v1939 = vadd.f32 %v1922, %v1931
      %v1940 = vadd.f32 %v1923, %v1932
      %v1941 = vadd.f32 %v1924, %v1933
      %v1942 = vadd.f32 %v1925, %v1934
      %v1943 = vperm.slane %v1157, 0
      %v1944 = vmul.f32 %v1260, %v1943
      %v1945 = vmul.f32 %v1261, %v1943
      %v1946 = vmul.f32 %v1262, %v1943
      %v1947 = vmul.f32 %v1263, %v1943
      %v1948 = vmul.f32 %v1264, %v1943
      %v1949 = vmul.f32 %v1265, %v1943
      %v1950 = vmul.f32 %v1266, %v1943
      %v1951 = vmul.f32 %v1267, %v1943
      %v1952 = vadd.f32 %v1935, %v1944
      %v1953 = vadd.f32 %v1936, %v1945
      %v1954 = vadd.f32 %v1937, %v1946
      %v1955 = vadd.f32 %v1938, %v1947
      %v1956 = vadd.f32 %v1939, %v1948
      %v1957 = vadd.f32 %v1940, %v1949
      %v1958 = vadd.f32 %v1941, %v1950
      %v1959 = vadd.f32 %v1942, %v1951
      %v1960 = vperm.slane %v1161, 0
      %v1961 = vmul.f32 %v1287, %v1960
      %v1962 = vmul.f32 %v1288, %v1960
      %v1963 = vmul.f32 %v1289, %v1960
      %v1964 = vmul.f32 %v1290, %v1960
      %v1965 = vmul.f32 %v1291, %v1960
      %v1966 = vmul.f32 %v1292, %v1960
      %v1967 = vmul.f32 %v1293, %v1960
      %v1968 = vmul.f32 %v1294, %v1960
      %v1969 = vadd.f32 %v1952, %v1961
      %v1970 = vadd.f32 %v1953, %v1962
      %v1971 = vadd.f32 %v1954, %v1963
      %v1972 = vadd.f32 %v1955, %v1964
      %v1973 = vadd.f32 %v1956, %v1965
      %v1974 = vadd.f32 %v1957, %v1966
      %v1975 = vadd.f32 %v1958, %v1967
      %v1976 = vadd.f32 %v1959, %v1968
      %v1977 = vperm.slane %v1165, 0
      %v1978 = vmul.f32 %v1314, %v1977
      %v1979 = vmul.f32 %v1315, %v1977
      %v1980 = vmul.f32 %v1316, %v1977
      %v1981 = vmul.f32 %v1317, %v1977
      %v1982 = vmul.f32 %v1318, %v1977
      %v1983 = vmul.f32 %v1319, %v1977
      %v1984 = vmul.f32 %v1320, %v1977
      %v1985 = vmul.f32 %v1321, %v1977
      %v1986 = vadd.f32 %v1969, %v1978
      %v1987 = vadd.f32 %v1970, %v1979
      %v1988 = vadd.f32 %v1971, %v1980
      %v1989 = vadd.f32 %v1972, %v1981
      %v1990 = vadd.f32 %v1973, %v1982
      %v1991 = vadd.f32 %v1974, %v1983
      %v1992 = vadd.f32 %v1975, %v1984
      %v1993 = vadd.f32 %v1976, %v1985
      %v1994 = vperm.slane %v1169, 0
      %v1995 = vmul.f32 %v1341, %v1994
      %v1996 = vmul.f32 %v1342, %v1994
      %v1997 = vmul.f32 %v1343, %v1994
      %v1998 = vmul.f32 %v1344, %v1994
      %v1999 = vmul.f32 %v1345, %v1994
      %v2000 = vmul.f32 %v1346, %v1994
      %v2001 = vmul.f32 %v1347, %v1994
      %v2002 = vmul.f32 %v1348, %v1994
      %v2003 = vadd.f32 %v1986, %v1995
      %v2004 = vadd.f32 %v1987, %v1996
      %v2005 = vadd.f32 %v1988, %v1997
      %v2006 = vadd.f32 %v1989, %v1998
      %v2007 = vadd.f32 %v1990, %v1999
      %v2008 = vadd.f32 %v1991, %v2000
      %v2009 = vadd.f32 %v1992, %v2001
      %v2010 = vadd.f32 %v1993, %v2002
      %vm2011 = vcmp.ge.f32.partialorder %v2003, 0.0
      %vm2012 = vcmp.ge.f32.partialorder %v2004, 0.0
      %vm2013 = vcmp.ge.f32.partialorder %v2005, 0.0
      %vm2014 = vcmp.ge.f32.partialorder %v2006, 0.0
      %vm2015 = vcmp.ge.f32.partialorder %v2007, 0.0
      %vm2016 = vcmp.ge.f32.partialorder %v2008, 0.0
      %vm2017 = vcmp.ge.f32.partialorder %v2009, 0.0
      %vm2018 = vcmp.ge.f32.partialorder %v2010, 0.0
      %v2019 = vmul.f32 %v2003, 0.3
      %v2020 = vmul.f32 %v2004, 0.3
      %v2021 = vmul.f32 %v2005, 0.3
      %v2022 = vmul.f32 %v2006, 0.3
      %v2023 = vmul.f32 %v2007, 0.3
      %v2024 = vmul.f32 %v2008, 0.3
      %v2025 = vmul.f32 %v2009, 0.3
      %v2026 = vmul.f32 %v2010, 0.3
      %v2027 = vsel %vm2011, %v2003, %v2019
      %v2028 = vsel %vm2012, %v2004, %v2020
      %v2029 = vsel %vm2013, %v2005, %v2021
      %v2030 = vsel %vm2014, %v2006, %v2022
      %v2031 = vsel %vm2015, %v2007, %v2023
      %v2032 = vsel %vm2016, %v2008, %v2024
      %v2033 = vsel %vm2017, %v2009, %v2025
      %v2034 = vsel %vm2018, %v2010, %v2026
      %v2035 = vld [vmem:[%s7 + $0x30] sm:$0xff]
      %v2036 = vld [vmem:[%s7 + $0x38] sm:$0xff]
      %v2038 = vsel %vm1539, %v2027, 0
      %v2041 = vsel %vm1539, %v2028, 0
      %v2044 = vsel %vm1539, %v2029, 0
      %v2047 = vsel %vm1539, %v2030, 0
      %v2050 = vsel %vm1539, %v2031, 0
      %v2053 = vsel %vm1539, %v2032, 0
      %v2056 = vsel %vm1539, %v2033, 0
      %v2059 = vsel %vm1539, %v2034, 0
      %2061 = vmatpush.msra.mxu0 0.0
      %2062 = vmatpush.msra.mxu0 0.0
      %2063 = vmatpush.msra.mxu0 0.0
      %2064 = vmatpush.msra.mxu0 0.0
      %2065 = vmatpush.msra.mxu0 0.0
      %2066 = vmatpush.msra.mxu0 0.0
      %2067 = vmatpush.msra.mxu0 0.0
      %2068 = vmatpush.msra.mxu0 0.0
      %2069 = vmatpush.msra.mxu0 0.0
      %2070 = vmatpush.msra.mxu0 0.0
      %2071 = vmatpush.msra.mxu0 0.0
      %2072 = vmatpush.msra.mxu0 0.0
      %2073 = vmatpush.msra.mxu0 0.0
      %2074 = vmatpush.msra.mxu0 0.0
      %2075 = vmatpush.msra.mxu0 %v2036
      %2076 = vmatpush.msra.mxu0 %v2035
      %2077 = vmatmul.f32.gmra.mxu0 %v2038
      %v2078 = vpop.f32.mrf.mxu0
      %v2079 = vadd.f32 0.0, %v2078
      %2080 = vmatmul.f32.gmra.mxu0 %v2041
      %v2081 = vpop.f32.mrf.mxu0
      %v2082 = vadd.f32 0.0, %v2081
      %2083 = vmatmul.f32.gmra.mxu0 %v2044
      %v2084 = vpop.f32.mrf.mxu0
      %v2085 = vadd.f32 0.0, %v2084
      %2086 = vmatmul.f32.gmra.mxu0 %v2047
      %v2087 = vpop.f32.mrf.mxu0
      %v2088 = vadd.f32 0.0, %v2087
      %2089 = vmatmul.f32.gmra.mxu0 %v2050
      %v2090 = vpop.f32.mrf.mxu0
      %v2091 = vadd.f32 0.0, %v2090
      %2092 = vmatmul.f32.gmra.mxu0 %v2053
      %v2093 = vpop.f32.mrf.mxu0
      %v2094 = vadd.f32 0.0, %v2093
      %2095 = vmatmul.f32.gmra.mxu0 %v2056
      %v2096 = vpop.f32.mrf.mxu0
      %v2097 = vadd.f32 0.0, %v2096
      %2098 = vmatmul.f32.gmra.mxu0 %v2059
      %v2099 = vpop.f32.mrf.mxu0
      %v2100 = vadd.f32 0.0, %v2099
      %2101 = vdwg.mxu0
      %v2102 = vadd.f32 %v1882, %v2079
      %v2103 = vadd.f32 %v1883, %v2082
      %v2104 = vadd.f32 %v1884, %v2085
      %v2105 = vadd.f32 %v1885, %v2088
      %v2106 = vadd.f32 %v1886, %v2091
      %v2107 = vadd.f32 %v1887, %v2094
      %v2108 = vadd.f32 %v1888, %v2097
      %v2109 = vadd.f32 %v1889, %v2100
      %v2111 = vperm.slane %v1174, 0
      %v2113 = vadd.f32 %v2102, %v2111
      %v2114 = vadd.f32 %v2103, %v2111
      %v2115 = vadd.f32 %v2104, %v2111
      %v2116 = vadd.f32 %v2105, %v2111
      %v2117 = vadd.f32 %v2106, %v2111
      %v2118 = vadd.f32 %v2107, %v2111
      %v2119 = vadd.f32 %v2108, %v2111
      %v2120 = vadd.f32 %v2109, %v2111
      %2121 = vst.msk [vmem:[%s488] sm:$0xff] %vm1539, %v2113
      %2122 = vst.msk [vmem:[%s488 + $0x8] sm:$0xff] %vm1539, %v2114
      %2123 = vst.msk [vmem:[%s488 + $0x10] sm:$0xff] %vm1539, %v2115
      %2124 = vst.msk [vmem:[%s488 + $0x18] sm:$0xff] %vm1539, %v2116
      %2125 = vst.msk [vmem:[%s488 + $0x20] sm:$0xff] %vm1539, %v2117
      %2126 = vst.msk [vmem:[%s488 + $0x28] sm:$0xff] %vm1539, %v2118
      %2127 = vst.msk [vmem:[%s488 + $0x30] sm:$0xff] %vm1539, %v2119
      %2128 = vst.msk [vmem:[%s488 + $0x38] sm:$0xff] %vm1539, %v2120
      %s2129 = smul.u32 8, %s25
      %p2130 = scmp.lt.s32.totalorder %s24, 1
      %s2131 = scalar_select %p2130, %s24, 1
      %p2132 = scmp.lt.s32.totalorder %s2129, 7
      %s2133 = scalar_select %p2132, %s2129, 7
      %s2134 = smul.addr %s2131, 8
      %s2135 = sadd.s32 %s2133, %s2134
      %s2136 = smul.addr %s2135, 8
      %s2137 = scalar_lea.vmem %s9, %s2136
      // Predicated region
      $region65: #{tpu_custom_call.1} parent=55 // pred_check
        %p2138 = pneg %p278
      $region66: #{tpu_custom_call.1} parent=55 // pred_check_branch
        %2140 = sbr.rel (%p2138) target = $region68
      $region67: #{tpu_custom_call.1} parent=55 // pred_region
        %s2141 = smul.u32 8, %s25
      $region68: #{tpu_custom_call.1} parent=55 // pred_fallthru
        _
    $region56: #{tpu_custom_call.1} parent=5 // pred_fallthru
      _
    %p2142 = scmp.le.s32.totalorder 2, %s15
    // Predicated region
    $region69: #{tpu_custom_call.1} parent=5 // pred_check
      %p2143 = pneg %p2142
    $region70: #{tpu_custom_call.1} parent=5 // pred_check_branch
      %2145 = sbr.rel (%p2143) target = $region72
    $region71: #{tpu_custom_call.1} parent=5 // pred_region
      %s2146 = ssub.s32 %s15, 2
      // Predicated region
      $region73: #{tpu_custom_call.1} parent=71 // pred_check
        %p2147 = pneg %p284
      $region74: #{tpu_custom_call.1} parent=71 // pred_check_branch
        %2149 = sbr.rel (%p2147) target = $region76
      $region75: #{tpu_custom_call.1} parent=71 // pred_region
        %s2150 = smul.u32 8, %s27
        %p2151 = scmp.lt.s32.totalorder %s26, 1
        %s2152 = scalar_select %p2151, %s26, 1
        %p2153 = scmp.lt.s32.totalorder %s2150, 7
        %s2154 = scalar_select %p2153, %s2150, 7
        %s2155 = smul.addr %s2152, 8
        %s2156 = sadd.s32 %s2154, %s2155
        %s2157 = smul.addr %s2156, 8
        %s2158 = scalar_lea.vmem %s9, %s2157
      $region76: #{tpu_custom_call.1} parent=71 // pred_fallthru
        _
    $region72: #{tpu_custom_call.1} parent=5 // pred_fallthru
      _
  $region6: #{tpu_custom_call.1} parent=0 // loop_footer
    %s19 = sadd.s32 1, %s15
  $region7: #{tpu_custom_call.1} parent=0 // loop_footer_branch
    %14 = sbr.rel target = $region3
  $region8: #{tpu_custom_call.1} parent=0 // loop_exit
    _

</llo_original>
